<compile_context>
chip_gen: v7x
topology: tpu7x:2x2x1
jax: 0.10.0
libtpu: 0.0.40
codegen_flags: <defaults>
</compile_context>

<pallas_src>
import functools
import math

import numpy as np
import jax
import jax.numpy as jnp
from jax.experimental import pallas as pl
from jax.experimental.pallas import tpu as pltpu

MAP_SIZE = 16
SPATIAL_OUT = 32
SFC_HIDDEN = 128
HEAD_HIDDEN = (128, 64)

# (kernel, stride, pad, C_in, C_out, H_in) for the three conv layers.
_CONV_CFG = (
    (5, 2, 2, 4, 16, MAP_SIZE),        # 16x16 -> 8x8
    (3, 2, 1, 16, 32, MAP_SIZE // 2),  # 8x8   -> 4x4
    (3, 2, 1, 32, 32, MAP_SIZE // 4),  # 4x4   -> 2x2
)


def _conv_out(h, k, s, p):
    return (h + 2 * p - k) // s + 1


# ---------------------------------------------------------------------------
# Fused kernel: 3 conv layers (as dense matmuls) + spatial FC + Q head, all in VMEM.
# ---------------------------------------------------------------------------
def _fused_qnet_kernel(
    # inputs
    x_ref, spf_ref,
    c0w_ref, c0b_ref, c1w_ref, c1b_ref, c2w_ref, c2b_ref,
    s0w_ref, s0b_ref, s1w_ref, s1b_ref,
    hxw_ref, hsw_ref, h0b_ref, h1w_ref, h1b_ref, h2w_ref, h2b_ref,
    # output
    o_ref,
    *, bx, bs,
):
    f32 = jnp.float32

    def dense_relu(a, w_ref, b_ref):
        return jnp.maximum(
            jnp.dot(a, w_ref[...], preferred_element_type=f32) + b_ref[...], 0.0)

    # ---- conv stack (each conv folded into a dense [in_flat, out_flat] matrix) ----
    a = spf_ref[...]                        # [bs, 4*16*16]  (NCHW flatten)
    a = dense_relu(a, c0w_ref, c0b_ref)     # [bs, 16*8*8]
    a = dense_relu(a, c1w_ref, c1b_ref)     # [bs, 32*4*4]
    a = dense_relu(a, c2w_ref, c2b_ref)     # [bs, 32*2*2]

    # ---- spatial FC head ----
    h = dense_relu(a, s0w_ref, s0b_ref)     # [bs, 128]
    sf = jnp.dot(h, s1w_ref[...], preferred_element_type=f32) + s1b_ref[...]  # [bs, 32]

    if bs == 1 and bx > 1:                  # torch: spatial_features.repeat(x.size(0), 1)
        sf = jnp.broadcast_to(sf, (bx, SPATIAL_OUT))

    # ---- Q head (the [x, spatial_features] concat is folded into split hfc0 weights) ----
    h = jnp.dot(x_ref[...], hxw_ref[...], preferred_element_type=f32)
    h = h + jnp.dot(sf, hsw_ref[...], preferred_element_type=f32)
    h = jnp.maximum(h + h0b_ref[...], 0.0)
    h = jnp.maximum(jnp.dot(h, h1w_ref[...], preferred_element_type=f32) + h1b_ref[...], 0.0)
    q = jnp.dot(h, h2w_ref[...], preferred_element_type=f32) + h2b_ref[...]
    o_ref[...] = q.astype(o_ref.dtype)


# ---------------------------------------------------------------------------
# Wrapper: one pallas_call, whole-array VMEM specs, no grid (shapes are tiny).
# ---------------------------------------------------------------------------
def enhanced_qnetwork_forward(prepared, x, spatial_state):
    """Matches EnhancedQNetwork.forward(x, spatial_state) with use_spatial=True.

    x: [Bx, input_dim] (or [input_dim]);
    spatial_state: [Bs, 4, MAP_SIZE, MAP_SIZE] (NCHW) or [4, MAP_SIZE, MAP_SIZE].
    """
    f32 = jnp.float32
    x = jnp.asarray(x, f32)
    if x.ndim == 1:
        x = x[None, :]
    sp = jnp.asarray(spatial_state, f32)
    if sp.ndim == 3:
        sp = sp[None]
    bx, bs = x.shape[0], sp.shape[0]
    if not (bs == bx or bs == 1):
        raise ValueError(f"incompatible batch sizes: x={bx}, spatial={bs}")
    sp_flat = sp.reshape(bs, -1)            # NCHW flatten == torch .view order

    out_dim = prepared["hfc2_w"].shape[1]
    vmem = pl.BlockSpec(memory_space=pltpu.MemorySpace.VMEM)

    args = (
        x, sp_flat,
        prepared["conv0_w"], prepared["conv0_b"],
        prepared["conv1_w"], prepared["conv1_b"],
        prepared["conv2_w"], prepared["conv2_b"],
        prepared["sfc0_w"], prepared["sfc0_b"],
        prepared["sfc1_w"], prepared["sfc1_b"],
        prepared["hfc0_wx"], prepared["hfc0_wsf"], prepared["hfc0_b"],
        prepared["hfc1_w"], prepared["hfc1_b"],
        prepared["hfc2_w"], prepared["hfc2_b"],
    )
    return pl.pallas_call(
        functools.partial(_fused_qnet_kernel, bx=bx, bs=bs),
        out_shape=jax.ShapeDtypeStruct((bx, out_dim), f32),
        in_specs=[vmem] * len(args),
        out_specs=vmem,
        compiler_params=pltpu.CompilerParams(vmem_limit_bytes=48 * 1024 * 1024),
    )(*args)


# ---------------------------------------------------------------------------
# Parameter init (PyTorch layout / init) and one-time kernel-layout conversion.
# ---------------------------------------------------------------------------
def _uniform(key, shape, bound):
    return jax.random.uniform(key, shape, jnp.float32, -bound, bound)


def init_params(key, input_dim, output_dim):
    """PyTorch-layout parameters with PyTorch-style uniform(-1/sqrt(fan_in)) init."""
    ks = jax.random.split(key, 16)
    p = {}
    i = 0
    for li, (k, s, pad, cin, cout, h_in) in enumerate(_CONV_CFG):
        bnd = 1.0 / math.sqrt(cin * k * k)
        p[f"conv{li}_w"] = _uniform(ks[i], (cout, cin, k, k), bnd); i += 1
        p[f"conv{li}_b"] = _uniform(ks[i], (cout,), bnd); i += 1
    hw = MAP_SIZE // 8
    fc_in = _CONV_CFG[-1][4] * hw * hw     # 32 * 2 * 2 = 128 (NCHW flatten order)
    for li, (din, dout) in enumerate([(fc_in, SFC_HIDDEN), (SFC_HIDDEN, SPATIAL_OUT)]):
        bnd = 1.0 / math.sqrt(din)
        p[f"sfc{li}_w"] = _uniform(ks[i], (din, dout), bnd); i += 1
        p[f"sfc{li}_b"] = _uniform(ks[i], (dout,), bnd); i += 1
    dims = [(input_dim + SPATIAL_OUT, HEAD_HIDDEN[0]),
            (HEAD_HIDDEN[0], HEAD_HIDDEN[1]),
            (HEAD_HIDDEN[1], output_dim)]
    for li, (din, dout) in enumerate(dims):
        bnd = 1.0 / math.sqrt(din)
        p[f"hfc{li}_w"] = _uniform(ks[i], (din, dout), bnd); i += 1
        p[f"hfc{li}_b"] = _uniform(ks[i], (dout,), bnd); i += 1
    return p


def _conv_as_matrix(w, k, s, pad, cin, cout, h_in):
    """Dense matrix W_eff such that NCHW_flat(conv(x)) = NCHW_flat(x) @ W_eff."""
    ho = _conv_out(h_in, k, s, pad)
    w = np.asarray(w, np.float32)                               # [cout, cin, k, k]
    W_eff = np.zeros((cin * h_in * h_in, cout * ho * ho), np.float32)
    c_rows = np.arange(cin) * h_in * h_in
    o_cols = np.arange(cout) * ho * ho
    for r in range(ho):
        for col in range(ho):
            for kh in range(k):
                ih = s * r - pad + kh
                if ih < 0 or ih >= h_in:
                    continue
                for kw in range(k):
                    iw = s * col - pad + kw
                    if iw < 0 or iw >= h_in:
                        continue
                    in_idx = c_rows + ih * h_in + iw
                    out_idx = o_cols + r * ho + col
                    W_eff[np.ix_(in_idx, out_idx)] = w[:, :, kh, kw].T   # [cin, cout]
    return jnp.asarray(W_eff)


def prepare_params(params, input_dim):
    """One-time conversion to kernel-ready layouts (outside the hot path)."""
    f32 = jnp.float32
    q = {}
    for li, (k, s, pad, cin, cout, h_in) in enumerate(_CONV_CFG):
        ho = _conv_out(h_in, k, s, pad)
        q[f"conv{li}_w"] = _conv_as_matrix(params[f"conv{li}_w"], k, s, pad, cin, cout, h_in)
        b = np.asarray(params[f"conv{li}_b"], np.float32)
        q[f"conv{li}_b"] = jnp.asarray(np.repeat(b, ho * ho).reshape(1, -1))  # NCHW-flat bias
    # sfc0 expects exactly the NCHW-flattened conv2 output -> use torch weights directly.
    q["sfc0_w"] = params["sfc0_w"].astype(f32)
    q["sfc0_b"] = params["sfc0_b"].astype(f32).reshape(1, -1)
    q["sfc1_w"] = params["sfc1_w"].astype(f32)
    q["sfc1_b"] = params["sfc1_b"].astype(f32).reshape(1, -1)
    # Fold the [x, spatial_features] concat into a split hfc0 weight:
    w = params["hfc0_w"].astype(f32)                            # [input_dim+32, 128]
    q["hfc0_wx"] = w[:input_dim]
    q["hfc0_wsf"] = w[input_dim:]
    q["hfc0_b"] = params["hfc0_b"].astype(f32).reshape(1, -1)
    q["hfc1_w"] = params["hfc1_w"].astype(f32)
    q["hfc1_b"] = params["hfc1_b"].astype(f32).reshape(1, -1)
    q["hfc2_w"] = params["hfc2_w"].astype(f32)
    q["hfc2_b"] = params["hfc2_b"].astype(f32).reshape(1, -1)
    return q


# ---------------------------------------------------------------------------
# Pure-JAX reference (mirrors the PyTorch module) for correctness checking.
# ---------------------------------------------------------------------------
def reference_forward(params, x, spatial_state):
    hi = jax.lax.Precision.HIGHEST
    x = jnp.asarray(x, jnp.float32)
    if x.ndim == 1:
        x = x[None, :]
    a = jnp.asarray(spatial_state, jnp.float32)
    if a.ndim == 3:
        a = a[None]
    for li, (k, s, pad, cin, cout, h_in) in enumerate(_CONV_CFG):
        w, b = params[f"conv{li}_w"], params[f"conv{li}_b"]
        a = jax.lax.conv_general_dilated(
            a, w, window_strides=(s, s), padding=[(pad, pad), (pad, pad)],
            dimension_numbers=("NCHW", "OIHW", "NCHW"), precision=hi)
        a = jnp.maximum(a + b[None, :, None, None], 0.0)
    a = a.reshape(a.shape[0], -1)
    h = jnp.maximum(jnp.dot(a, params["sfc0_w"], precision=hi) + params["sfc0_b"], 0.0)
    sf = jnp.dot(h, params["sfc1_w"], precision=hi) + params["sfc1_b"]
    if x.shape[0] > 1 and sf.shape[0] == 1:
        sf = jnp.broadcast_to(sf, (x.shape[0], sf.shape[1]))
    c = jnp.concatenate([x, sf], axis=1)
    h = jnp.maximum(jnp.dot(c, params["hfc0_w"], precision=hi) + params["hfc0_b"], 0.0)
    h = jnp.maximum(jnp.dot(h, params["hfc1_w"], precision=hi) + params["hfc1_b"], 0.0)
    return jnp.dot(h, params["hfc2_w"], precision=hi) + params["hfc2_b"]


if __name__ == "__main__":
    INPUT_DIM = 16
    OUTPUT_DIM = 8
    BATCH = 2

    key = jax.random.PRNGKey(0)
    k_params, k_x, k_sp = jax.random.split(key, 3)

    params = init_params(k_params, INPUT_DIM, OUTPUT_DIM)
    prepared = prepare_params(params, INPUT_DIM)

    x = jax.random.normal(k_x, (BATCH, INPUT_DIM), jnp.float32)
    spatial_state = jax.random.normal(k_sp, (BATCH, 4, MAP_SIZE, MAP_SIZE), jnp.float32)

    fwd = jax.jit(enhanced_qnetwork_forward)
    q_values = fwd(prepared, x, spatial_state)
    jax.block_until_ready(q_values)
    assert q_values.shape == (BATCH, OUTPUT_DIM)

    ref = reference_forward(params, x, spatial_state)
    assert jnp.allclose(q_values, ref, rtol=1e-2, atol=1e-2), (q_values, ref)

    print("KERNEL_OK")
</pallas_src>

<mosaic_0001>
module attributes {stable_mosaic.version = 11 : i64} {
  func.func @_fused_qnet_kernel(%arg0: memref<2x16xf32, #tpu.memory_space<vmem>>, %arg1: memref<2x1024xf32, #tpu.memory_space<vmem>>, %arg2: memref<1024x1024xf32, #tpu.memory_space<vmem>>, %arg3: memref<1x1024xf32, #tpu.memory_space<vmem>>, %arg4: memref<1024x512xf32, #tpu.memory_space<vmem>>, %arg5: memref<1x512xf32, #tpu.memory_space<vmem>>, %arg6: memref<512x128xf32, #tpu.memory_space<vmem>>, %arg7: memref<1x128xf32, #tpu.memory_space<vmem>>, %arg8: memref<128x128xf32, #tpu.memory_space<vmem>>, %arg9: memref<1x128xf32, #tpu.memory_space<vmem>>, %arg10: memref<128x32xf32, #tpu.memory_space<vmem>>, %arg11: memref<1x32xf32, #tpu.memory_space<vmem>>, %arg12: memref<16x128xf32, #tpu.memory_space<vmem>>, %arg13: memref<32x128xf32, #tpu.memory_space<vmem>>, %arg14: memref<1x128xf32, #tpu.memory_space<vmem>>, %arg15: memref<128x64xf32, #tpu.memory_space<vmem>>, %arg16: memref<1x64xf32, #tpu.memory_space<vmem>>, %arg17: memref<64x8xf32, #tpu.memory_space<vmem>>, %arg18: memref<1x8xf32, #tpu.memory_space<vmem>>, %arg19: memref<2x8xf32, #tpu.memory_space<vmem>>) attributes {dimension_semantics = [], scalar_prefetch = 0 : i64, scratch_operands = 0 : i64, tpu.core_type = #tpu.core_type<tc>} {
    %c0 = arith.constant 0 : index
    %c0_0 = arith.constant 0 : index
    %0 = vector.load %arg1[%c0, %c0_0] : memref<2x1024xf32, #tpu.memory_space<vmem>>, vector<2x1024xf32>
    %c0_1 = arith.constant 0 : index
    %c0_2 = arith.constant 0 : index
    %1 = vector.load %arg2[%c0_1, %c0_2] : memref<1024x1024xf32, #tpu.memory_space<vmem>>, vector<1024x1024xf32>
    %cst = arith.constant dense<0.000000e+00> : vector<2x1024xf32>
    %2 = tpu.matmul %0, %1, %cst {dimension_numbers = #tpu.dot_dimension_numbers<[1], [0], [0], [1], [0, 0, 1, 1], [], []>} : vector<2x1024xf32>, vector<1024x1024xf32>, vector<2x1024xf32> -> vector<2x1024xf32>
    %c0_3 = arith.constant 0 : index
    %c0_4 = arith.constant 0 : index
    %3 = vector.load %arg3[%c0_3, %c0_4] : memref<1x1024xf32, #tpu.memory_space<vmem>>, vector<1x1024xf32>
    %4 = vector.broadcast %3 : vector<1x1024xf32> to vector<2x1024xf32>
    %5 = arith.addf %2, %4 : vector<2x1024xf32>
    %cst_5 = arith.constant 0.000000e+00 : f32
    %6 = vector.broadcast %cst_5 : f32 to vector<2x1024xf32>
    %7 = arith.maximumf %5, %6 : vector<2x1024xf32>
    %c0_6 = arith.constant 0 : index
    %c0_7 = arith.constant 0 : index
    %8 = vector.load %arg4[%c0_6, %c0_7] : memref<1024x512xf32, #tpu.memory_space<vmem>>, vector<1024x512xf32>
    %cst_8 = arith.constant dense<0.000000e+00> : vector<2x512xf32>
    %9 = tpu.matmul %7, %8, %cst_8 {dimension_numbers = #tpu.dot_dimension_numbers<[1], [0], [0], [1], [0, 0, 1, 1], [], []>} : vector<2x1024xf32>, vector<1024x512xf32>, vector<2x512xf32> -> vector<2x512xf32>
    %c0_9 = arith.constant 0 : index
    %c0_10 = arith.constant 0 : index
    %10 = vector.load %arg5[%c0_9, %c0_10] : memref<1x512xf32, #tpu.memory_space<vmem>>, vector<1x512xf32>
    %11 = vector.broadcast %10 : vector<1x512xf32> to vector<2x512xf32>
    %12 = arith.addf %9, %11 : vector<2x512xf32>
    %cst_11 = arith.constant 0.000000e+00 : f32
    %13 = vector.broadcast %cst_11 : f32 to vector<2x512xf32>
    %14 = arith.maximumf %12, %13 : vector<2x512xf32>
    %c0_12 = arith.constant 0 : index
    %c0_13 = arith.constant 0 : index
    %15 = vector.load %arg6[%c0_12, %c0_13] : memref<512x128xf32, #tpu.memory_space<vmem>>, vector<512x128xf32>
    %cst_14 = arith.constant dense<0.000000e+00> : vector<2x128xf32>
    %16 = tpu.matmul %14, %15, %cst_14 {dimension_numbers = #tpu.dot_dimension_numbers<[1], [0], [0], [1], [0, 0, 1, 1], [], []>} : vector<2x512xf32>, vector<512x128xf32>, vector<2x128xf32> -> vector<2x128xf32>
    %c0_15 = arith.constant 0 : index
    %c0_16 = arith.constant 0 : index
    %17 = vector.load %arg7[%c0_15, %c0_16] : memref<1x128xf32, #tpu.memory_space<vmem>>, vector<1x128xf32>
    %18 = vector.broadcast %17 : vector<1x128xf32> to vector<2x128xf32>
    %19 = arith.addf %16, %18 : vector<2x128xf32>
    %cst_17 = arith.constant 0.000000e+00 : f32
    %20 = vector.broadcast %cst_17 : f32 to vector<2x128xf32>
    %21 = arith.maximumf %19, %20 : vector<2x128xf32>
    %c0_18 = arith.constant 0 : index
    %c0_19 = arith.constant 0 : index
    %22 = vector.load %arg8[%c0_18, %c0_19] : memref<128x128xf32, #tpu.memory_space<vmem>>, vector<128x128xf32>
    %cst_20 = arith.constant dense<0.000000e+00> : vector<2x128xf32>
    %23 = tpu.matmul %21, %22, %cst_20 {dimension_numbers = #tpu.dot_dimension_numbers<[1], [0], [0], [1], [0, 0, 1, 1], [], []>} : vector<2x128xf32>, vector<128x128xf32>, vector<2x128xf32> -> vector<2x128xf32>
    %c0_21 = arith.constant 0 : index
    %c0_22 = arith.constant 0 : index
    %24 = vector.load %arg9[%c0_21, %c0_22] : memref<1x128xf32, #tpu.memory_space<vmem>>, vector<1x128xf32>
    %25 = vector.broadcast %24 : vector<1x128xf32> to vector<2x128xf32>
    %26 = arith.addf %23, %25 : vector<2x128xf32>
    %cst_23 = arith.constant 0.000000e+00 : f32
    %27 = vector.broadcast %cst_23 : f32 to vector<2x128xf32>
    %28 = arith.maximumf %26, %27 : vector<2x128xf32>
    %c0_24 = arith.constant 0 : index
    %c0_25 = arith.constant 0 : index
    %29 = vector.load %arg10[%c0_24, %c0_25] : memref<128x32xf32, #tpu.memory_space<vmem>>, vector<128x32xf32>
    %cst_26 = arith.constant dense<0.000000e+00> : vector<2x32xf32>
    %30 = tpu.matmul %28, %29, %cst_26 {dimension_numbers = #tpu.dot_dimension_numbers<[1], [0], [0], [1], [0, 0, 1, 1], [], []>} : vector<2x128xf32>, vector<128x32xf32>, vector<2x32xf32> -> vector<2x32xf32>
    %c0_27 = arith.constant 0 : index
    %c0_28 = arith.constant 0 : index
    %31 = vector.load %arg11[%c0_27, %c0_28] : memref<1x32xf32, #tpu.memory_space<vmem>>, vector<1x32xf32>
    %32 = vector.broadcast %31 : vector<1x32xf32> to vector<2x32xf32>
    %33 = arith.addf %30, %32 : vector<2x32xf32>
    %c0_29 = arith.constant 0 : index
    %c0_30 = arith.constant 0 : index
    %34 = vector.load %arg0[%c0_29, %c0_30] : memref<2x16xf32, #tpu.memory_space<vmem>>, vector<2x16xf32>
    %c0_31 = arith.constant 0 : index
    %c0_32 = arith.constant 0 : index
    %35 = vector.load %arg12[%c0_31, %c0_32] : memref<16x128xf32, #tpu.memory_space<vmem>>, vector<16x128xf32>
    %cst_33 = arith.constant dense<0.000000e+00> : vector<2x128xf32>
    %36 = tpu.matmul %34, %35, %cst_33 {dimension_numbers = #tpu.dot_dimension_numbers<[1], [0], [0], [1], [0, 0, 1, 1], [], []>} : vector<2x16xf32>, vector<16x128xf32>, vector<2x128xf32> -> vector<2x128xf32>
    %c0_34 = arith.constant 0 : index
    %c0_35 = arith.constant 0 : index
    %37 = vector.load %arg13[%c0_34, %c0_35] : memref<32x128xf32, #tpu.memory_space<vmem>>, vector<32x128xf32>
    %cst_36 = arith.constant dense<0.000000e+00> : vector<2x128xf32>
    %38 = tpu.matmul %33, %37, %cst_36 {dimension_numbers = #tpu.dot_dimension_numbers<[1], [0], [0], [1], [0, 0, 1, 1], [], []>} : vector<2x32xf32>, vector<32x128xf32>, vector<2x128xf32> -> vector<2x128xf32>
    %39 = arith.addf %36, %38 : vector<2x128xf32>
    %c0_37 = arith.constant 0 : index
    %c0_38 = arith.constant 0 : index
    %40 = vector.load %arg14[%c0_37, %c0_38] : memref<1x128xf32, #tpu.memory_space<vmem>>, vector<1x128xf32>
    %41 = vector.broadcast %40 : vector<1x128xf32> to vector<2x128xf32>
    %42 = arith.addf %39, %41 : vector<2x128xf32>
    %cst_39 = arith.constant 0.000000e+00 : f32
    %43 = vector.broadcast %cst_39 : f32 to vector<2x128xf32>
    %44 = arith.maximumf %42, %43 : vector<2x128xf32>
    %c0_40 = arith.constant 0 : index
    %c0_41 = arith.constant 0 : index
    %45 = vector.load %arg15[%c0_40, %c0_41] : memref<128x64xf32, #tpu.memory_space<vmem>>, vector<128x64xf32>
    %cst_42 = arith.constant dense<0.000000e+00> : vector<2x64xf32>
    %46 = tpu.matmul %44, %45, %cst_42 {dimension_numbers = #tpu.dot_dimension_numbers<[1], [0], [0], [1], [0, 0, 1, 1], [], []>} : vector<2x128xf32>, vector<128x64xf32>, vector<2x64xf32> -> vector<2x64xf32>
    %c0_43 = arith.constant 0 : index
    %c0_44 = arith.constant 0 : index
    %47 = vector.load %arg16[%c0_43, %c0_44] : memref<1x64xf32, #tpu.memory_space<vmem>>, vector<1x64xf32>
    %48 = vector.broadcast %47 : vector<1x64xf32> to vector<2x64xf32>
    %49 = arith.addf %46, %48 : vector<2x64xf32>
    %cst_45 = arith.constant 0.000000e+00 : f32
    %50 = vector.broadcast %cst_45 : f32 to vector<2x64xf32>
    %51 = arith.maximumf %49, %50 : vector<2x64xf32>
    %c0_46 = arith.constant 0 : index
    %c0_47 = arith.constant 0 : index
    %52 = vector.load %arg17[%c0_46, %c0_47] : memref<64x8xf32, #tpu.memory_space<vmem>>, vector<64x8xf32>
    %cst_48 = arith.constant dense<0.000000e+00> : vector<2x8xf32>
    %53 = tpu.matmul %51, %52, %cst_48 {dimension_numbers = #tpu.dot_dimension_numbers<[1], [0], [0], [1], [0, 0, 1, 1], [], []>} : vector<2x64xf32>, vector<64x8xf32>, vector<2x8xf32> -> vector<2x8xf32>
    %c0_49 = arith.constant 0 : index
    %c0_50 = arith.constant 0 : index
    %54 = vector.load %arg18[%c0_49, %c0_50] : memref<1x8xf32, #tpu.memory_space<vmem>>, vector<1x8xf32>
    %55 = vector.broadcast %54 : vector<1x8xf32> to vector<2x8xf32>
    %56 = arith.addf %53, %55 : vector<2x8xf32>
    %c0_51 = arith.constant 0 : index
    %c0_52 = arith.constant 0 : index
    %57 = vector.load %arg19[%c0_51, %c0_52] : memref<2x8xf32, #tpu.memory_space<vmem>>, vector<2x8xf32>
    tpu.vector_store %arg19[%c0_51, %c0_52], %56 {strides = array<i32>} : memref<2x8xf32, #tpu.memory_space<vmem>>, vector<2x8xf32>,
    return
  }
}

</mosaic_0001>

<llo_original>
// kernel: enhanced_qnetwork_forward.1
$region0: #{enhanced_qnetwork_forward.1}
  #allocation0 [shape = 'u32[]', space=smem, size = 0x4, offset = 0x4, fixed_abs, tag = 'smem constant byte address 0x4 - core index']
  #allocation1 [shape = 'u32[144,128]{1,0:T(1,128)}', space=vmem, size = 0x12000, scoped, tag = 'internal scratch']
  %s0 = inlined_call_operand.hbm [shape: f32[2,16], index: 0, kind: input, shape index: {}]
  %s1 = inlined_call_operand.vmem [shape: f32[2,1024], index: 1, kind: input, shape index: {}]
  %s2 = inlined_call_operand.hbm [shape: f32[1024,1024], index: 2, kind: input, shape index: {}]
  %s3 = inlined_call_operand.hbm [shape: f32[1,1024], index: 3, kind: input, shape index: {}]
  %s4 = inlined_call_operand.hbm [shape: f32[1024,512], index: 4, kind: input, shape index: {}]
  %s5 = inlined_call_operand.hbm [shape: f32[1,512], index: 5, kind: input, shape index: {}]
  %s6 = inlined_call_operand.hbm [shape: f32[512,128], index: 6, kind: input, shape index: {}]
  %s7 = inlined_call_operand.hbm [shape: f32[1,128], index: 7, kind: input, shape index: {}]
  %s8 = inlined_call_operand.hbm [shape: f32[128,128], index: 8, kind: input, shape index: {}]
  %s9 = inlined_call_operand.hbm [shape: f32[1,128], index: 9, kind: input, shape index: {}]
  %s10 = inlined_call_operand.vmem [shape: f32[128,32], index: 10, kind: input, shape index: {}]
  %s11 = inlined_call_operand.hbm [shape: f32[1,32], index: 11, kind: input, shape index: {}]
  %s12 = inlined_call_operand.hbm [shape: f32[16,128], index: 12, kind: input, shape index: {}]
  %s13 = inlined_call_operand.hbm [shape: f32[32,128], index: 13, kind: input, shape index: {}]
  %s14 = inlined_call_operand.hbm [shape: f32[1,128], index: 14, kind: input, shape index: {}]
  %s15 = inlined_call_operand.vmem [shape: f32[128,64], index: 15, kind: input, shape index: {}]
  %s16 = inlined_call_operand.hbm [shape: f32[1,64], index: 16, kind: input, shape index: {}]
  %s17 = inlined_call_operand.vmem [shape: f32[64,8], index: 17, kind: input, shape index: {}]
  %s18 = inlined_call_operand.hbm [shape: f32[1,8], index: 18, kind: input, shape index: {}]
  %s19 = inlined_call_operand.hbm [shape: f32[2,8], index: 19, kind: output, shape index: {}]
  %s20 = sld [smem:[#allocation0]]
  $region146: #{enhanced_qnetwork_forward.1} parent=0
    _
  %s22 = ssub.s32 1, %s20
  %s23 = scalar_select 0, %s22, %s20
  $region1: #{enhanced_qnetwork_forward.1} parent=0
    #allocation2 [shape = 'u8[1024]{0}', space=vmem, size = 0x400, scoped, tag = 'input window, operand 0, single buffered']
    #allocation3 [shape = 's32[1]{0}', space=sflag, size = 0x4, scoped, tag = 'scoped memory for enhanced_qnetwork_forward.1']
    #allocation4 [shape = 's32[1]{0}', space=sflag, size = 0x4, scoped, tag = 'scoped memory for enhanced_qnetwork_forward.1']
    #allocation5 [shape = 'u8[4194304]{0}', space=vmem, size = 0x400000, scoped, tag = 'input window, operand 2, single buffered']
    #allocation6 [shape = 's32[1]{0}', space=sflag, size = 0x4, scoped, tag = 'scoped memory for enhanced_qnetwork_forward.1']
    #allocation7 [shape = 'u8[4096]{0}', space=vmem, size = 0x1000, scoped, tag = 'input window, operand 3, single buffered']
    #allocation8 [shape = 'u8[2097152]{0}', space=vmem, size = 0x200000, scoped, tag = 'input window, operand 4, single buffered']
    #allocation9 [shape = 's32[1]{0}', space=sflag, size = 0x4, scoped, tag = 'scoped memory for enhanced_qnetwork_forward.1']
    #allocation10 [shape = 'u8[2048]{0}', space=vmem, size = 0x800, scoped, tag = 'input window, operand 5, single buffered']
    #allocation11 [shape = 'u8[262144]{0}', space=vmem, size = 0x40000, scoped, tag = 'input window, operand 6, single buffered']
    #allocation12 [shape = 's32[1]{0}', space=sflag, size = 0x4, scoped, tag = 'scoped memory for enhanced_qnetwork_forward.1']
    #allocation13 [shape = 'u8[512]{0}', space=vmem, size = 0x400, scoped, tag = 'input window, operand 7, single buffered']
    #allocation14 [shape = 'u8[65536]{0}', space=vmem, size = 0x10000, scoped, tag = 'input window, operand 8, single buffered']
    #allocation15 [shape = 's32[1]{0}', space=sflag, size = 0x4, scoped, tag = 'scoped memory for enhanced_qnetwork_forward.1']
    #allocation16 [shape = 'u8[512]{0}', space=vmem, size = 0x400, scoped, tag = 'input window, operand 9, single buffered']
    #allocation17 [shape = 'u8[512]{0}', space=vmem, size = 0x400, scoped, tag = 'input window, operand 11, single buffered']
    #allocation18 [shape = 's32[1]{0}', space=sflag, size = 0x4, scoped, tag = 'scoped memory for enhanced_qnetwork_forward.1']
    #allocation19 [shape = 'u8[8192]{0}', space=vmem, size = 0x2000, scoped, tag = 'input window, operand 12, single buffered']
    #allocation20 [shape = 'u8[16384]{0}', space=vmem, size = 0x4000, scoped, tag = 'input window, operand 13, single buffered']
    #allocation21 [shape = 's32[1]{0}', space=sflag, size = 0x4, scoped, tag = 'scoped memory for enhanced_qnetwork_forward.1']
    #allocation22 [shape = 'u8[512]{0}', space=vmem, size = 0x400, scoped, tag = 'input window, operand 14, single buffered']
    #allocation23 [shape = 'u8[512]{0}', space=vmem, size = 0x400, scoped, tag = 'input window, operand 16, single buffered']
    #allocation24 [shape = 's32[1]{0}', space=sflag, size = 0x4, scoped, tag = 'scoped memory for enhanced_qnetwork_forward.1']
    #allocation25 [shape = 'u8[512]{0}', space=vmem, size = 0x400, scoped, tag = 'input window, operand 18, single buffered']
    #allocation26 [shape = 'u8[1024]{0}', space=vmem, size = 0x400, scoped, tag = 'output window, operand 0, single buffered']
    %24 = vsyncpa [#allocation3], 0
    %25 = vsyncpa [#allocation6], 0
    %26 = vsyncpa [#allocation9], 0
    %27 = vsyncpa [#allocation12], 0
    %28 = vsyncpa [#allocation15], 0
    %29 = vsyncpa [#allocation18], 0
    %30 = vsyncpa [#allocation21], 0
    %31 = vsyncpa [#allocation24], 0
    %32 = vsyncpa [#allocation4], 0
    // Predicated region
    $region2: #{enhanced_qnetwork_forward.1} parent=1 // pred_check
      _
    $region3: #{enhanced_qnetwork_forward.1} parent=1 // pred_check_branch
      %34 = sbr.rel (0) target = $region5
    $region4: #{enhanced_qnetwork_forward.1} parent=1 // pred_region
      %s36 = ssub.s32 32, 32
      %37 = vsyncadd [#allocation3], %s36
      %s39 = sshll.u32 [#allocation2], 4
      %s40 = int_to_ptr.vmem [resolvable:$true] %s39
      %42 = dma.hbm_to_vmem [thread:$0]  %s0, 32, %s40, [#allocation3]
    $region5: #{enhanced_qnetwork_forward.1} parent=1 // pred_fallthru
      _
    // Predicated region
    $region6: #{enhanced_qnetwork_forward.1} parent=1 // pred_check
      _
    $region7: #{enhanced_qnetwork_forward.1} parent=1 // pred_check_branch
      %44 = sbr.rel (0) target = $region9
    $region8: #{enhanced_qnetwork_forward.1} parent=1 // pred_region
      _
    $region9: #{enhanced_qnetwork_forward.1} parent=1 // pred_fallthru
      _
    // Predicated region
    $region10: #{enhanced_qnetwork_forward.1} parent=1 // pred_check
      _
    $region11: #{enhanced_qnetwork_forward.1} parent=1 // pred_check_branch
      %46 = sbr.rel (0) target = $region13
    $region12: #{enhanced_qnetwork_forward.1} parent=1 // pred_region
      %s48 = ssub.s32 131072, 131072
      %49 = vsyncadd [#allocation6], %s48
      %s50 = sshll.u32 [#allocation5], 4
      %s51 = int_to_ptr.vmem [resolvable:$true] %s50
      %56 = dma.hbm_to_vmem [thread:$0]  %s2, 131072, %s51, [#allocation6], 1024, 1024, 64
    $region13: #{enhanced_qnetwork_forward.1} parent=1 // pred_fallthru
      _
    // Predicated region
    $region14: #{enhanced_qnetwork_forward.1} parent=1 // pred_check
      _
    $region15: #{enhanced_qnetwork_forward.1} parent=1 // pred_check_branch
      %58 = sbr.rel (0) target = $region17
    $region16: #{enhanced_qnetwork_forward.1} parent=1 // pred_region
      %s60 = ssub.s32 128, 128
      %61 = vsyncadd [#allocation6], %s60
      %s63 = sshll.u32 [#allocation7], 4
      %s64 = int_to_ptr.vmem [resolvable:$true] %s63
      %66 = dma.hbm_to_vmem [thread:$0]  %s3, 128, %s64, [#allocation6]
    $region17: #{enhanced_qnetwork_forward.1} parent=1 // pred_fallthru
      _
    // Predicated region
    $region18: #{enhanced_qnetwork_forward.1} parent=1 // pred_check
      _
    $region19: #{enhanced_qnetwork_forward.1} parent=1 // pred_check_branch
      %68 = sbr.rel (0) target = $region21
    $region20: #{enhanced_qnetwork_forward.1} parent=1 // pred_region
      %s70 = ssub.s32 65536, 65536
      %71 = vsyncadd [#allocation9], %s70
      %s72 = sshll.u32 [#allocation8], 4
      %s73 = int_to_ptr.vmem [resolvable:$true] %s72
      %78 = dma.hbm_to_vmem [thread:$0]  %s4, 65536, %s73, [#allocation9], 512, 512, 32
    $region21: #{enhanced_qnetwork_forward.1} parent=1 // pred_fallthru
      _
    // Predicated region
    $region22: #{enhanced_qnetwork_forward.1} parent=1 // pred_check
      _
    $region23: #{enhanced_qnetwork_forward.1} parent=1 // pred_check_branch
      %80 = sbr.rel (0) target = $region25
    $region24: #{enhanced_qnetwork_forward.1} parent=1 // pred_region
      %s82 = ssub.s32 64, 64
      %83 = vsyncadd [#allocation9], %s82
      %s85 = sshll.u32 [#allocation10], 4
      %s86 = int_to_ptr.vmem [resolvable:$true] %s85
      %88 = dma.hbm_to_vmem [thread:$0]  %s5, 64, %s86, [#allocation9]
    $region25: #{enhanced_qnetwork_forward.1} parent=1 // pred_fallthru
      _
    // Predicated region
    $region26: #{enhanced_qnetwork_forward.1} parent=1 // pred_check
      _
    $region27: #{enhanced_qnetwork_forward.1} parent=1 // pred_check_branch
      %90 = sbr.rel (0) target = $region29
    $region28: #{enhanced_qnetwork_forward.1} parent=1 // pred_region
      %s92 = ssub.s32 8192, 8192
      %93 = vsyncadd [#allocation12], %s92
      %s94 = sshll.u32 [#allocation11], 4
      %s95 = int_to_ptr.vmem [resolvable:$true] %s94
      %100 = dma.hbm_to_vmem [thread:$0]  %s6, 8192, %s95, [#allocation12], 128, 128, 8
    $region29: #{enhanced_qnetwork_forward.1} parent=1 // pred_fallthru
      _
    // Predicated region
    $region30: #{enhanced_qnetwork_forward.1} parent=1 // pred_check
      _
    $region31: #{enhanced_qnetwork_forward.1} parent=1 // pred_check_branch
      %102 = sbr.rel (0) target = $region33
    $region32: #{enhanced_qnetwork_forward.1} parent=1 // pred_region
      %s104 = ssub.s32 16, 16
      %105 = vsyncadd [#allocation12], %s104
      %s107 = sshll.u32 [#allocation13], 4
      %s108 = int_to_ptr.vmem [resolvable:$true] %s107
      %110 = dma.hbm_to_vmem [thread:$0]  %s7, 16, %s108, [#allocation12]
    $region33: #{enhanced_qnetwork_forward.1} parent=1 // pred_fallthru
      _
    // Predicated region
    $region34: #{enhanced_qnetwork_forward.1} parent=1 // pred_check
      _
    $region35: #{enhanced_qnetwork_forward.1} parent=1 // pred_check_branch
      %112 = sbr.rel (0) target = $region37
    $region36: #{enhanced_qnetwork_forward.1} parent=1 // pred_region
      %s114 = ssub.s32 2048, 2048
      %115 = vsyncadd [#allocation15], %s114
      %s116 = sshll.u32 [#allocation14], 4
      %s117 = int_to_ptr.vmem [resolvable:$true] %s116
      %122 = dma.hbm_to_vmem [thread:$0]  %s8, 2048, %s117, [#allocation15], 128, 128, 8
    $region37: #{enhanced_qnetwork_forward.1} parent=1 // pred_fallthru
      _
    // Predicated region
    $region38: #{enhanced_qnetwork_forward.1} parent=1 // pred_check
      _
    $region39: #{enhanced_qnetwork_forward.1} parent=1 // pred_check_branch
      %124 = sbr.rel (0) target = $region41
    $region40: #{enhanced_qnetwork_forward.1} parent=1 // pred_region
      %s126 = ssub.s32 16, 16
      %127 = vsyncadd [#allocation15], %s126
      %s129 = sshll.u32 [#allocation16], 4
      %s130 = int_to_ptr.vmem [resolvable:$true] %s129
      %132 = dma.hbm_to_vmem [thread:$0]  %s9, 16, %s130, [#allocation15]
    $region41: #{enhanced_qnetwork_forward.1} parent=1 // pred_fallthru
      _
    // Predicated region
    $region42: #{enhanced_qnetwork_forward.1} parent=1 // pred_check
      _
    $region43: #{enhanced_qnetwork_forward.1} parent=1 // pred_check_branch
      %134 = sbr.rel (0) target = $region45
    $region44: #{enhanced_qnetwork_forward.1} parent=1 // pred_region
      _
    $region45: #{enhanced_qnetwork_forward.1} parent=1 // pred_fallthru
      _
    // Predicated region
    $region46: #{enhanced_qnetwork_forward.1} parent=1 // pred_check
      _
    $region47: #{enhanced_qnetwork_forward.1} parent=1 // pred_check_branch
      %136 = sbr.rel (0) target = $region49
    $region48: #{enhanced_qnetwork_forward.1} parent=1 // pred_region
      %s138 = ssub.s32 16, 16
      %139 = vsyncadd [#allocation18], %s138
      %s141 = sshll.u32 [#allocation17], 4
      %s142 = int_to_ptr.vmem [resolvable:$true] %s141
      %144 = dma.hbm_to_vmem [thread:$0]  %s11, 16, %s142, [#allocation18]
    $region49: #{enhanced_qnetwork_forward.1} parent=1 // pred_fallthru
      _
    // Predicated region
    $region50: #{enhanced_qnetwork_forward.1} parent=1 // pred_check
      _
    $region51: #{enhanced_qnetwork_forward.1} parent=1 // pred_check_branch
      %146 = sbr.rel (0) target = $region53
    $region52: #{enhanced_qnetwork_forward.1} parent=1 // pred_region
      %s148 = ssub.s32 256, 256
      %149 = vsyncadd [#allocation18], %s148
      %s150 = sshll.u32 [#allocation19], 4
      %s151 = int_to_ptr.vmem [resolvable:$true] %s150
      %156 = dma.hbm_to_vmem [thread:$0]  %s12, 256, %s151, [#allocation18], 128, 128, 8
    $region53: #{enhanced_qnetwork_forward.1} parent=1 // pred_fallthru
      _
    // Predicated region
    $region54: #{enhanced_qnetwork_forward.1} parent=1 // pred_check
      _
    $region55: #{enhanced_qnetwork_forward.1} parent=1 // pred_check_branch
      %158 = sbr.rel (0) target = $region57
    $region56: #{enhanced_qnetwork_forward.1} parent=1 // pred_region
      %s160 = ssub.s32 512, 512
      %161 = vsyncadd [#allocation21], %s160
      %s162 = sshll.u32 [#allocation20], 4
      %s163 = int_to_ptr.vmem [resolvable:$true] %s162
      %168 = dma.hbm_to_vmem [thread:$0]  %s13, 512, %s163, [#allocation21], 128, 128, 8
    $region57: #{enhanced_qnetwork_forward.1} parent=1 // pred_fallthru
      _
    // Predicated region
    $region58: #{enhanced_qnetwork_forward.1} parent=1 // pred_check
      _
    $region59: #{enhanced_qnetwork_forward.1} parent=1 // pred_check_branch
      %170 = sbr.rel (0) target = $region61
    $region60: #{enhanced_qnetwork_forward.1} parent=1 // pred_region
      %s172 = ssub.s32 16, 16
      %173 = vsyncadd [#allocation21], %s172
      %s175 = sshll.u32 [#allocation22], 4
      %s176 = int_to_ptr.vmem [resolvable:$true] %s175
      %178 = dma.hbm_to_vmem [thread:$0]  %s14, 16, %s176, [#allocation21]
    $region61: #{enhanced_qnetwork_forward.1} parent=1 // pred_fallthru
      _
    // Predicated region
    $region62: #{enhanced_qnetwork_forward.1} parent=1 // pred_check
      _
    $region63: #{enhanced_qnetwork_forward.1} parent=1 // pred_check_branch
      %180 = sbr.rel (0) target = $region65
    $region64: #{enhanced_qnetwork_forward.1} parent=1 // pred_region
      _
    $region65: #{enhanced_qnetwork_forward.1} parent=1 // pred_fallthru
      _
    // Predicated region
    $region66: #{enhanced_qnetwork_forward.1} parent=1 // pred_check
      _
    $region67: #{enhanced_qnetwork_forward.1} parent=1 // pred_check_branch
      %182 = sbr.rel (0) target = $region69
    $region68: #{enhanced_qnetwork_forward.1} parent=1 // pred_region
      %s184 = ssub.s32 16, 16
      %185 = vsyncadd [#allocation24], %s184
      %s187 = sshll.u32 [#allocation23], 4
      %s188 = int_to_ptr.vmem [resolvable:$true] %s187
      %190 = dma.hbm_to_vmem [thread:$0]  %s16, 16, %s188, [#allocation24]
    $region69: #{enhanced_qnetwork_forward.1} parent=1 // pred_fallthru
      _
    // Predicated region
    $region70: #{enhanced_qnetwork_forward.1} parent=1 // pred_check
      _
    $region71: #{enhanced_qnetwork_forward.1} parent=1 // pred_check_branch
      %192 = sbr.rel (0) target = $region73
    $region72: #{enhanced_qnetwork_forward.1} parent=1 // pred_region
      _
    $region73: #{enhanced_qnetwork_forward.1} parent=1 // pred_fallthru
      _
    // Predicated region
    $region74: #{enhanced_qnetwork_forward.1} parent=1 // pred_check
      _
    $region75: #{enhanced_qnetwork_forward.1} parent=1 // pred_check_branch
      %194 = sbr.rel (0) target = $region77
    $region76: #{enhanced_qnetwork_forward.1} parent=1 // pred_region
      %s196 = ssub.s32 16, 16
      %197 = vsyncadd [#allocation24], %s196
      %s199 = sshll.u32 [#allocation25], 4
      %s200 = int_to_ptr.vmem [resolvable:$true] %s199
      %202 = dma.hbm_to_vmem [thread:$0]  %s18, 16, %s200, [#allocation24]
    $region77: #{enhanced_qnetwork_forward.1} parent=1 // pred_fallthru
      _
    // Predicated region
    $region78: #{enhanced_qnetwork_forward.1} parent=1 // pred_check
      _
    $region79: #{enhanced_qnetwork_forward.1} parent=1 // pred_check_branch
      %204 = sbr.rel (0) target = $region81
    $region80: #{enhanced_qnetwork_forward.1} parent=1 // pred_region
      %205 = dma.done [#allocation3], 32
    $region81: #{enhanced_qnetwork_forward.1} parent=1 // pred_fallthru
      _
    // Predicated region
    $region82: #{enhanced_qnetwork_forward.1} parent=1 // pred_check
      _
    $region83: #{enhanced_qnetwork_forward.1} parent=1 // pred_check_branch
      %207 = sbr.rel (0) target = $region85
    $region84: #{enhanced_qnetwork_forward.1} parent=1 // pred_region
      %208 = dma.done [#allocation6], 131072
    $region85: #{enhanced_qnetwork_forward.1} parent=1 // pred_fallthru
      _
    // Predicated region
    $region86: #{enhanced_qnetwork_forward.1} parent=1 // pred_check
      _
    $region87: #{enhanced_qnetwork_forward.1} parent=1 // pred_check_branch
      %210 = sbr.rel (0) target = $region89
    $region88: #{enhanced_qnetwork_forward.1} parent=1 // pred_region
      %211 = dma.done [#allocation6], 128
    $region89: #{enhanced_qnetwork_forward.1} parent=1 // pred_fallthru
      _
    // Predicated region
    $region90: #{enhanced_qnetwork_forward.1} parent=1 // pred_check
      _
    $region91: #{enhanced_qnetwork_forward.1} parent=1 // pred_check_branch
      %213 = sbr.rel (0) target = $region93
    $region92: #{enhanced_qnetwork_forward.1} parent=1 // pred_region
      %214 = dma.done [#allocation9], 65536
    $region93: #{enhanced_qnetwork_forward.1} parent=1 // pred_fallthru
      _
    // Predicated region
    $region94: #{enhanced_qnetwork_forward.1} parent=1 // pred_check
      _
    $region95: #{enhanced_qnetwork_forward.1} parent=1 // pred_check_branch
      %216 = sbr.rel (0) target = $region97
    $region96: #{enhanced_qnetwork_forward.1} parent=1 // pred_region
      %217 = dma.done [#allocation9], 64
    $region97: #{enhanced_qnetwork_forward.1} parent=1 // pred_fallthru
      _
    // Predicated region
    $region98: #{enhanced_qnetwork_forward.1} parent=1 // pred_check
      _
    $region99: #{enhanced_qnetwork_forward.1} parent=1 // pred_check_branch
      %219 = sbr.rel (0) target = $region101
    $region100: #{enhanced_qnetwork_forward.1} parent=1 // pred_region
      %220 = dma.done [#allocation12], 8192
    $region101: #{enhanced_qnetwork_forward.1} parent=1 // pred_fallthru
      _
    // Predicated region
    $region102: #{enhanced_qnetwork_forward.1} parent=1 // pred_check
      _
    $region103: #{enhanced_qnetwork_forward.1} parent=1 // pred_check_branch
      %222 = sbr.rel (0) target = $region105
    $region104: #{enhanced_qnetwork_forward.1} parent=1 // pred_region
      %223 = dma.done [#allocation12], 16
    $region105: #{enhanced_qnetwork_forward.1} parent=1 // pred_fallthru
      _
    // Predicated region
    $region106: #{enhanced_qnetwork_forward.1} parent=1 // pred_check
      _
    $region107: #{enhanced_qnetwork_forward.1} parent=1 // pred_check_branch
      %225 = sbr.rel (0) target = $region109
    $region108: #{enhanced_qnetwork_forward.1} parent=1 // pred_region
      %226 = dma.done [#allocation15], 2048
    $region109: #{enhanced_qnetwork_forward.1} parent=1 // pred_fallthru
      _
    // Predicated region
    $region110: #{enhanced_qnetwork_forward.1} parent=1 // pred_check
      _
    $region111: #{enhanced_qnetwork_forward.1} parent=1 // pred_check_branch
      %228 = sbr.rel (0) target = $region113
    $region112: #{enhanced_qnetwork_forward.1} parent=1 // pred_region
      %229 = dma.done [#allocation15], 16
    $region113: #{enhanced_qnetwork_forward.1} parent=1 // pred_fallthru
      _
    // Predicated region
    $region114: #{enhanced_qnetwork_forward.1} parent=1 // pred_check
      _
    $region115: #{enhanced_qnetwork_forward.1} parent=1 // pred_check_branch
      %231 = sbr.rel (0) target = $region117
    $region116: #{enhanced_qnetwork_forward.1} parent=1 // pred_region
      %232 = dma.done [#allocation18], 16
    $region117: #{enhanced_qnetwork_forward.1} parent=1 // pred_fallthru
      _
    // Predicated region
    $region118: #{enhanced_qnetwork_forward.1} parent=1 // pred_check
      _
    $region119: #{enhanced_qnetwork_forward.1} parent=1 // pred_check_branch
      %234 = sbr.rel (0) target = $region121
    $region120: #{enhanced_qnetwork_forward.1} parent=1 // pred_region
      %235 = dma.done [#allocation18], 256
    $region121: #{enhanced_qnetwork_forward.1} parent=1 // pred_fallthru
      _
    // Predicated region
    $region122: #{enhanced_qnetwork_forward.1} parent=1 // pred_check
      _
    $region123: #{enhanced_qnetwork_forward.1} parent=1 // pred_check_branch
      %237 = sbr.rel (0) target = $region125
    $region124: #{enhanced_qnetwork_forward.1} parent=1 // pred_region
      %238 = dma.done [#allocation21], 512
    $region125: #{enhanced_qnetwork_forward.1} parent=1 // pred_fallthru
      _
    // Predicated region
    $region126: #{enhanced_qnetwork_forward.1} parent=1 // pred_check
      _
    $region127: #{enhanced_qnetwork_forward.1} parent=1 // pred_check_branch
      %240 = sbr.rel (0) target = $region129
    $region128: #{enhanced_qnetwork_forward.1} parent=1 // pred_region
      %241 = dma.done [#allocation21], 16
    $region129: #{enhanced_qnetwork_forward.1} parent=1 // pred_fallthru
      _
    // Predicated region
    $region130: #{enhanced_qnetwork_forward.1} parent=1 // pred_check
      _
    $region131: #{enhanced_qnetwork_forward.1} parent=1 // pred_check_branch
      %243 = sbr.rel (0) target = $region133
    $region132: #{enhanced_qnetwork_forward.1} parent=1 // pred_region
      %244 = dma.done [#allocation24], 16
    $region133: #{enhanced_qnetwork_forward.1} parent=1 // pred_fallthru
      _
    // Predicated region
    $region134: #{enhanced_qnetwork_forward.1} parent=1 // pred_check
      _
    $region135: #{enhanced_qnetwork_forward.1} parent=1 // pred_check_branch
      %246 = sbr.rel (0) target = $region137
    $region136: #{enhanced_qnetwork_forward.1} parent=1 // pred_region
      %247 = dma.done [#allocation24], 16
    $region137: #{enhanced_qnetwork_forward.1} parent=1 // pred_fallthru
      _
    %v248 = vld [vmem:[%s1] sm:$0xff]
    %v249 = vld [vmem:[%s1 + $0x8] sm:$0xff]
    %v250 = vld [vmem:[#allocation5] sm:$0xff]
    %v251 = vld [vmem:[#allocation5 + $0x8] sm:$0xff]
    %v252 = vld [vmem:[#allocation5 + $0x10] sm:$0xff]
    %v253 = vld [vmem:[#allocation5 + $0x18] sm:$0xff]
    %v254 = vld [vmem:[#allocation5 + $0x20] sm:$0xff]
    %v255 = vld [vmem:[#allocation5 + $0x28] sm:$0xff]
    %v256 = vld [vmem:[#allocation5 + $0x30] sm:$0xff]
    %v257 = vld [vmem:[#allocation5 + $0x38] sm:$0xff]
    %v258 = vld [vmem:[#allocation5 + $0x40] sm:$0xff]
    %v259 = vld [vmem:[#allocation5 + $0x48] sm:$0xff]
    %v260 = vld [vmem:[#allocation5 + $0x50] sm:$0xff]
    %v261 = vld [vmem:[#allocation5 + $0x58] sm:$0xff]
    %v262 = vld [vmem:[#allocation5 + $0x60] sm:$0xff]
    %v263 = vld [vmem:[#allocation5 + $0x68] sm:$0xff]
    %v264 = vld [vmem:[#allocation5 + $0x70] sm:$0xff]
    %v265 = vld [vmem:[#allocation5 + $0x78] sm:$0xff]
    %v266 = vld [vmem:[#allocation5 + $0x80] sm:$0xff]
    %v267 = vld [vmem:[#allocation5 + $0x88] sm:$0xff]
    %v268 = vld [vmem:[#allocation5 + $0x90] sm:$0xff]
    %v269 = vld [vmem:[#allocation5 + $0x98] sm:$0xff]
    %v270 = vld [vmem:[#allocation5 + $0xa0] sm:$0xff]
    %v271 = vld [vmem:[#allocation5 + $0xa8] sm:$0xff]
    %v272 = vld [vmem:[#allocation5 + $0xb0] sm:$0xff]
    %v273 = vld [vmem:[#allocation5 + $0xb8] sm:$0xff]
    %v274 = vld [vmem:[#allocation5 + $0xc0] sm:$0xff]
    %v275 = vld [vmem:[#allocation5 + $0xc8] sm:$0xff]
    %v276 = vld [vmem:[#allocation5 + $0xd0] sm:$0xff]
    %v277 = vld [vmem:[#allocation5 + $0xd8] sm:$0xff]
    %v278 = vld [vmem:[#allocation5 + $0xe0] sm:$0xff]
    %v279 = vld [vmem:[#allocation5 + $0xe8] sm:$0xff]
    %v280 = vld [vmem:[#allocation5 + $0xf0] sm:$0xff]
    %v281 = vld [vmem:[#allocation5 + $0xf8] sm:$0xff]
    %v282 = vld [vmem:[#allocation5 + $0x100] sm:$0xff]
    %v283 = vld [vmem:[#allocation5 + $0x108] sm:$0xff]
    %v284 = vld [vmem:[#allocation5 + $0x110] sm:$0xff]
    %v285 = vld [vmem:[#allocation5 + $0x118] sm:$0xff]
    %v286 = vld [vmem:[#allocation5 + $0x120] sm:$0xff]
    %v287 = vld [vmem:[#allocation5 + $0x128] sm:$0xff]
    %v288 = vld [vmem:[#allocation5 + $0x130] sm:$0xff]
    %v289 = vld [vmem:[#allocation5 + $0x138] sm:$0xff]
    %v290 = vld [vmem:[#allocation5 + $0x140] sm:$0xff]
    %v291 = vld [vmem:[#allocation5 + $0x148] sm:$0xff]
    %v292 = vld [vmem:[#allocation5 + $0x150] sm:$0xff]
    %v293 = vld [vmem:[#allocation5 + $0x158] sm:$0xff]
    %v294 = vld [vmem:[#allocation5 + $0x160] sm:$0xff]
    %v295 = vld [vmem:[#allocation5 + $0x168] sm:$0xff]
    %v296 = vld [vmem:[#allocation5 + $0x170] sm:$0xff]
    %v297 = vld [vmem:[#allocation5 + $0x178] sm:$0xff]
    %v298 = vld [vmem:[#allocation5 + $0x180] sm:$0xff]
    %v299 = vld [vmem:[#allocation5 + $0x188] sm:$0xff]
    %v300 = vld [vmem:[#allocation5 + $0x190] sm:$0xff]
    %v301 = vld [vmem:[#allocation5 + $0x198] sm:$0xff]
    %v302 = vld [vmem:[#allocation5 + $0x1a0] sm:$0xff]
    %v303 = vld [vmem:[#allocation5 + $0x1a8] sm:$0xff]
    %v304 = vld [vmem:[#allocation5 + $0x1b0] sm:$0xff]
    %v305 = vld [vmem:[#allocation5 + $0x1b8] sm:$0xff]
    %v306 = vld [vmem:[#allocation5 + $0x1c0] sm:$0xff]
    %v307 = vld [vmem:[#allocation5 + $0x1c8] sm:$0xff]
    %v308 = vld [vmem:[#allocation5 + $0x1d0] sm:$0xff]
    %v309 = vld [vmem:[#allocation5 + $0x1d8] sm:$0xff]
    %v310 = vld [vmem:[#allocation5 + $0x1e0] sm:$0xff]
    %v311 = vld [vmem:[#allocation5 + $0x1e8] sm:$0xff]
    %v312 = vld [vmem:[#allocation5 + $0x1f0] sm:$0xff]
    %v313 = vld [vmem:[#allocation5 + $0x1f8] sm:$0xff]
    %v314 = vld [vmem:[#allocation5 + $0x200] sm:$0xff]
    %v315 = vld [vmem:[#allocation5 + $0x208] sm:$0xff]
    %v316 = vld [vmem:[#allocation5 + $0x210] sm:$0xff]
    %v317 = vld [vmem:[#allocation5 + $0x218] sm:$0xff]
    %v318 = vld [vmem:[#allocation5 + $0x220] sm:$0xff]
    %v319 = vld [vmem:[#allocation5 + $0x228] sm:$0xff]
    %v320 = vld [vmem:[#allocation5 + $0x230] sm:$0xff]
    %v321 = vld [vmem:[#allocation5 + $0x238] sm:$0xff]
    %v322 = vld [vmem:[#allocation5 + $0x240] sm:$0xff]
    %v323 = vld [vmem:[#allocation5 + $0x248] sm:$0xff]
    %v324 = vld [vmem:[#allocation5 + $0x250] sm:$0xff]
    %v325 = vld [vmem:[#allocation5 + $0x258] sm:$0xff]
    %v326 = vld [vmem:[#allocation5 + $0x260] sm:$0xff]
    %v327 = vld [vmem:[#allocation5 + $0x268] sm:$0xff]
    %v328 = vld [vmem:[#allocation5 + $0x270] sm:$0xff]
    %v329 = vld [vmem:[#allocation5 + $0x278] sm:$0xff]
    %v330 = vld [vmem:[#allocation5 + $0x280] sm:$0xff]
    %v331 = vld [vmem:[#allocation5 + $0x288] sm:$0xff]
    %v332 = vld [vmem:[#allocation5 + $0x290] sm:$0xff]
    %v333 = vld [vmem:[#allocation5 + $0x298] sm:$0xff]
    %v334 = vld [vmem:[#allocation5 + $0x2a0] sm:$0xff]
    %v335 = vld [vmem:[#allocation5 + $0x2a8] sm:$0xff]
    %v336 = vld [vmem:[#allocation5 + $0x2b0] sm:$0xff]
    %v337 = vld [vmem:[#allocation5 + $0x2b8] sm:$0xff]
    %v338 = vld [vmem:[#allocation5 + $0x2c0] sm:$0xff]
    %v339 = vld [vmem:[#allocation5 + $0x2c8] sm:$0xff]
    %v340 = vld [vmem:[#allocation5 + $0x2d0] sm:$0xff]
    %v341 = vld [vmem:[#allocation5 + $0x2d8] sm:$0xff]
    %v342 = vld [vmem:[#allocation5 + $0x2e0] sm:$0xff]
    %v343 = vld [vmem:[#allocation5 + $0x2e8] sm:$0xff]
    %v344 = vld [vmem:[#allocation5 + $0x2f0] sm:$0xff]
    %v345 = vld [vmem:[#allocation5 + $0x2f8] sm:$0xff]
    %v346 = vld [vmem:[#allocation5 + $0x300] sm:$0xff]
    %v347 = vld [vmem:[#allocation5 + $0x308] sm:$0xff]
    %v348 = vld [vmem:[#allocation5 + $0x310] sm:$0xff]
    %v349 = vld [vmem:[#allocation5 + $0x318] sm:$0xff]
    %v350 = vld [vmem:[#allocation5 + $0x320] sm:$0xff]
    %v351 = vld [vmem:[#allocation5 + $0x328] sm:$0xff]
    %v352 = vld [vmem:[#allocation5 + $0x330] sm:$0xff]
    %v353 = vld [vmem:[#allocation5 + $0x338] sm:$0xff]
    %v354 = vld [vmem:[#allocation5 + $0x340] sm:$0xff]
    %v355 = vld [vmem:[#allocation5 + $0x348] sm:$0xff]
    %v356 = vld [vmem:[#allocation5 + $0x350] sm:$0xff]
    %v357 = vld [vmem:[#allocation5 + $0x358] sm:$0xff]
    %v358 = vld [vmem:[#allocation5 + $0x360] sm:$0xff]
    %v359 = vld [vmem:[#allocation5 + $0x368] sm:$0xff]
    %v360 = vld [vmem:[#allocation5 + $0x370] sm:$0xff]
    %v361 = vld [vmem:[#allocation5 + $0x378] sm:$0xff]
    %v362 = vld [vmem:[#allocation5 + $0x380] sm:$0xff]
    %v363 = vld [vmem:[#allocation5 + $0x388] sm:$0xff]
    %v364 = vld [vmem:[#allocation5 + $0x390] sm:$0xff]
    %v365 = vld [vmem:[#allocation5 + $0x398] sm:$0xff]
    %v366 = vld [vmem:[#allocation5 + $0x3a0] sm:$0xff]
    %v367 = vld [vmem:[#allocation5 + $0x3a8] sm:$0xff]
    %v368 = vld [vmem:[#allocation5 + $0x3b0] sm:$0xff]
    %v369 = vld [vmem:[#allocation5 + $0x3b8] sm:$0xff]
    %v370 = vld [vmem:[#allocation5 + $0x3c0] sm:$0xff]
    %v371 = vld [vmem:[#allocation5 + $0x3c8] sm:$0xff]
    %v372 = vld [vmem:[#allocation5 + $0x3d0] sm:$0xff]
    %v373 = vld [vmem:[#allocation5 + $0x3d8] sm:$0xff]
    %v374 = vld [vmem:[#allocation5 + $0x3e0] sm:$0xff]
    %v375 = vld [vmem:[#allocation5 + $0x3e8] sm:$0xff]
    %v376 = vld [vmem:[#allocation5 + $0x3f0] sm:$0xff]
    %v377 = vld [vmem:[#allocation5 + $0x3f8] sm:$0xff]
    %v378 = vld [vmem:[#allocation5 + $0x400] sm:$0xff]
    %v379 = vld [vmem:[#allocation5 + $0x408] sm:$0xff]
    %v380 = vld [vmem:[#allocation5 + $0x410] sm:$0xff]
    %v381 = vld [vmem:[#allocation5 + $0x418] sm:$0xff]
    %v382 = vld [vmem:[#allocation5 + $0x420] sm:$0xff]
    %v383 = vld [vmem:[#allocation5 + $0x428] sm:$0xff]
    %v384 = vld [vmem:[#allocation5 + $0x430] sm:$0xff]
    %v385 = vld [vmem:[#allocation5 + $0x438] sm:$0xff]
    %v386 = vld [vmem:[#allocation5 + $0x440] sm:$0xff]
    %v387 = vld [vmem:[#allocation5 + $0x448] sm:$0xff]
    %v388 = vld [vmem:[#allocation5 + $0x450] sm:$0xff]
    %v389 = vld [vmem:[#allocation5 + $0x458] sm:$0xff]
    %v390 = vld [vmem:[#allocation5 + $0x460] sm:$0xff]
    %v391 = vld [vmem:[#allocation5 + $0x468] sm:$0xff]
    %v392 = vld [vmem:[#allocation5 + $0x470] sm:$0xff]
    %v393 = vld [vmem:[#allocation5 + $0x478] sm:$0xff]
    %v394 = vld [vmem:[#allocation5 + $0x480] sm:$0xff]
    %v395 = vld [vmem:[#allocation5 + $0x488] sm:$0xff]
    %v396 = vld [vmem:[#allocation5 + $0x490] sm:$0xff]
    %v397 = vld [vmem:[#allocation5 + $0x498] sm:$0xff]
    %v398 = vld [vmem:[#allocation5 + $0x4a0] sm:$0xff]
    %v399 = vld [vmem:[#allocation5 + $0x4a8] sm:$0xff]
    %v400 = vld [vmem:[#allocation5 + $0x4b0] sm:$0xff]
    %v401 = vld [vmem:[#allocation5 + $0x4b8] sm:$0xff]
    %v402 = vld [vmem:[#allocation5 + $0x4c0] sm:$0xff]
    %v403 = vld [vmem:[#allocation5 + $0x4c8] sm:$0xff]
    %v404 = vld [vmem:[#allocation5 + $0x4d0] sm:$0xff]
    %v405 = vld [vmem:[#allocation5 + $0x4d8] sm:$0xff]
    %v406 = vld [vmem:[#allocation5 + $0x4e0] sm:$0xff]
    %v407 = vld [vmem:[#allocation5 + $0x4e8] sm:$0xff]
    %v408 = vld [vmem:[#allocation5 + $0x4f0] sm:$0xff]
    %v409 = vld [vmem:[#allocation5 + $0x4f8] sm:$0xff]
    %v410 = vld [vmem:[#allocation5 + $0x500] sm:$0xff]
    %v411 = vld [vmem:[#allocation5 + $0x508] sm:$0xff]
    %v412 = vld [vmem:[#allocation5 + $0x510] sm:$0xff]
    %v413 = vld [vmem:[#allocation5 + $0x518] sm:$0xff]
    %v414 = vld [vmem:[#allocation5 + $0x520] sm:$0xff]
    %v415 = vld [vmem:[#allocation5 + $0x528] sm:$0xff]
    %v416 = vld [vmem:[#allocation5 + $0x530] sm:$0xff]
    %v417 = vld [vmem:[#allocation5 + $0x538] sm:$0xff]
    %v418 = vld [vmem:[#allocation5 + $0x540] sm:$0xff]
    %v419 = vld [vmem:[#allocation5 + $0x548] sm:$0xff]
    %v420 = vld [vmem:[#allocation5 + $0x550] sm:$0xff]
    %v421 = vld [vmem:[#allocation5 + $0x558] sm:$0xff]
    %v422 = vld [vmem:[#allocation5 + $0x560] sm:$0xff]
    %v423 = vld [vmem:[#allocation5 + $0x568] sm:$0xff]
    %v424 = vld [vmem:[#allocation5 + $0x570] sm:$0xff]
    %v425 = vld [vmem:[#allocation5 + $0x578] sm:$0xff]
    %v426 = vld [vmem:[#allocation5 + $0x580] sm:$0xff]
    %v427 = vld [vmem:[#allocation5 + $0x588] sm:$0xff]
    %v428 = vld [vmem:[#allocation5 + $0x590] sm:$0xff]
    %v429 = vld [vmem:[#allocation5 + $0x598] sm:$0xff]
    %v430 = vld [vmem:[#allocation5 + $0x5a0] sm:$0xff]
    %v431 = vld [vmem:[#allocation5 + $0x5a8] sm:$0xff]
    %v432 = vld [vmem:[#allocation5 + $0x5b0] sm:$0xff]
    %v433 = vld [vmem:[#allocation5 + $0x5b8] sm:$0xff]
    %v434 = vld [vmem:[#allocation5 + $0x5c0] sm:$0xff]
    %v435 = vld [vmem:[#allocation5 + $0x5c8] sm:$0xff]
    %v436 = vld [vmem:[#allocation5 + $0x5d0] sm:$0xff]
    %v437 = vld [vmem:[#allocation5 + $0x5d8] sm:$0xff]
    %v438 = vld [vmem:[#allocation5 + $0x5e0] sm:$0xff]
    %v439 = vld [vmem:[#allocation5 + $0x5e8] sm:$0xff]
    %v440 = vld [vmem:[#allocation5 + $0x5f0] sm:$0xff]
    %v441 = vld [vmem:[#allocation5 + $0x5f8] sm:$0xff]
    %v442 = vld [vmem:[#allocation5 + $0x600] sm:$0xff]
    %v443 = vld [vmem:[#allocation5 + $0x608] sm:$0xff]
    %v444 = vld [vmem:[#allocation5 + $0x610] sm:$0xff]
    %v445 = vld [vmem:[#allocation5 + $0x618] sm:$0xff]
    %v446 = vld [vmem:[#allocation5 + $0x620] sm:$0xff]
    %v447 = vld [vmem:[#allocation5 + $0x628] sm:$0xff]
    %v448 = vld [vmem:[#allocation5 + $0x630] sm:$0xff]
    %v449 = vld [vmem:[#allocation5 + $0x638] sm:$0xff]
    %v450 = vld [vmem:[#allocation5 + $0x640] sm:$0xff]
    %v451 = vld [vmem:[#allocation5 + $0x648] sm:$0xff]
    %v452 = vld [vmem:[#allocation5 + $0x650] sm:$0xff]
    %v453 = vld [vmem:[#allocation5 + $0x658] sm:$0xff]
    %v454 = vld [vmem:[#allocation5 + $0x660] sm:$0xff]
    %v455 = vld [vmem:[#allocation5 + $0x668] sm:$0xff]
    %v456 = vld [vmem:[#allocation5 + $0x670] sm:$0xff]
    %v457 = vld [vmem:[#allocation5 + $0x678] sm:$0xff]
    %v458 = vld [vmem:[#allocation5 + $0x680] sm:$0xff]
    %v459 = vld [vmem:[#allocation5 + $0x688] sm:$0xff]
    %v460 = vld [vmem:[#allocation5 + $0x690] sm:$0xff]
    %v461 = vld [vmem:[#allocation5 + $0x698] sm:$0xff]
    %v462 = vld [vmem:[#allocation5 + $0x6a0] sm:$0xff]
    %v463 = vld [vmem:[#allocation5 + $0x6a8] sm:$0xff]
    %v464 = vld [vmem:[#allocation5 + $0x6b0] sm:$0xff]
    %v465 = vld [vmem:[#allocation5 + $0x6b8] sm:$0xff]
    %v466 = vld [vmem:[#allocation5 + $0x6c0] sm:$0xff]
    %v467 = vld [vmem:[#allocation5 + $0x6c8] sm:$0xff]
    %v468 = vld [vmem:[#allocation5 + $0x6d0] sm:$0xff]
    %v469 = vld [vmem:[#allocation5 + $0x6d8] sm:$0xff]
    %v470 = vld [vmem:[#allocation5 + $0x6e0] sm:$0xff]
    %v471 = vld [vmem:[#allocation5 + $0x6e8] sm:$0xff]
    %v472 = vld [vmem:[#allocation5 + $0x6f0] sm:$0xff]
    %v473 = vld [vmem:[#allocation5 + $0x6f8] sm:$0xff]
    %v474 = vld [vmem:[#allocation5 + $0x700] sm:$0xff]
    %v475 = vld [vmem:[#allocation5 + $0x708] sm:$0xff]
    %v476 = vld [vmem:[#allocation5 + $0x710] sm:$0xff]
    %v477 = vld [vmem:[#allocation5 + $0x718] sm:$0xff]
    %v478 = vld [vmem:[#allocation5 + $0x720] sm:$0xff]
    %v479 = vld [vmem:[#allocation5 + $0x728] sm:$0xff]
    %v480 = vld [vmem:[#allocation5 + $0x730] sm:$0xff]
    %v481 = vld [vmem:[#allocation5 + $0x738] sm:$0xff]
    %v482 = vld [vmem:[#allocation5 + $0x740] sm:$0xff]
    %v483 = vld [vmem:[#allocation5 + $0x748] sm:$0xff]
    %v484 = vld [vmem:[#allocation5 + $0x750] sm:$0xff]
    %v485 = vld [vmem:[#allocation5 + $0x758] sm:$0xff]
    %v486 = vld [vmem:[#allocation5 + $0x760] sm:$0xff]
    %v487 = vld [vmem:[#allocation5 + $0x768] sm:$0xff]
    %v488 = vld [vmem:[#allocation5 + $0x770] sm:$0xff]
    %v489 = vld [vmem:[#allocation5 + $0x778] sm:$0xff]
    %v490 = vld [vmem:[#allocation5 + $0x780] sm:$0xff]
    %v491 = vld [vmem:[#allocation5 + $0x788] sm:$0xff]
    %v492 = vld [vmem:[#allocation5 + $0x790] sm:$0xff]
    %v493 = vld [vmem:[#allocation5 + $0x798] sm:$0xff]
    %v494 = vld [vmem:[#allocation5 + $0x7a0] sm:$0xff]
    %v495 = vld [vmem:[#allocation5 + $0x7a8] sm:$0xff]
    %v496 = vld [vmem:[#allocation5 + $0x7b0] sm:$0xff]
    %v497 = vld [vmem:[#allocation5 + $0x7b8] sm:$0xff]
    %v498 = vld [vmem:[#allocation5 + $0x7c0] sm:$0xff]
    %v499 = vld [vmem:[#allocation5 + $0x7c8] sm:$0xff]
    %v500 = vld [vmem:[#allocation5 + $0x7d0] sm:$0xff]
    %v501 = vld [vmem:[#allocation5 + $0x7d8] sm:$0xff]
    %v502 = vld [vmem:[#allocation5 + $0x7e0] sm:$0xff]
    %v503 = vld [vmem:[#allocation5 + $0x7e8] sm:$0xff]
    %v504 = vld [vmem:[#allocation5 + $0x7f0] sm:$0xff]
    %v505 = vld [vmem:[#allocation5 + $0x7f8] sm:$0xff]
    %v506 = vld [vmem:[#allocation5 + $0x800] sm:$0xff]
    %v507 = vld [vmem:[#allocation5 + $0x808] sm:$0xff]
    %v508 = vld [vmem:[#allocation5 + $0x810] sm:$0xff]
    %v509 = vld [vmem:[#allocation5 + $0x818] sm:$0xff]
    %v510 = vld [vmem:[#allocation5 + $0x820] sm:$0xff]
    %v511 = vld [vmem:[#allocation5 + $0x828] sm:$0xff]
    %v512 = vld [vmem:[#allocation5 + $0x830] sm:$0xff]
    %v513 = vld [vmem:[#allocation5 + $0x838] sm:$0xff]
    %v514 = vld [vmem:[#allocation5 + $0x840] sm:$0xff]
    %v515 = vld [vmem:[#allocation5 + $0x848] sm:$0xff]
    %v516 = vld [vmem:[#allocation5 + $0x850] sm:$0xff]
    %v517 = vld [vmem:[#allocation5 + $0x858] sm:$0xff]
    %v518 = vld [vmem:[#allocation5 + $0x860] sm:$0xff]
    %v519 = vld [vmem:[#allocation5 + $0x868] sm:$0xff]
    %v520 = vld [vmem:[#allocation5 + $0x870] sm:$0xff]
    %v521 = vld [vmem:[#allocation5 + $0x878] sm:$0xff]
    %v522 = vld [vmem:[#allocation5 + $0x880] sm:$0xff]
    %v523 = vld [vmem:[#allocation5 + $0x888] sm:$0xff]
    %v524 = vld [vmem:[#allocation5 + $0x890] sm:$0xff]
    %v525 = vld [vmem:[#allocation5 + $0x898] sm:$0xff]
    %v526 = vld [vmem:[#allocation5 + $0x8a0] sm:$0xff]
    %v527 = vld [vmem:[#allocation5 + $0x8a8] sm:$0xff]
    %v528 = vld [vmem:[#allocation5 + $0x8b0] sm:$0xff]
    %v529 = vld [vmem:[#allocation5 + $0x8b8] sm:$0xff]
    %v530 = vld [vmem:[#allocation5 + $0x8c0] sm:$0xff]
    %v531 = vld [vmem:[#allocation5 + $0x8c8] sm:$0xff]
    %v532 = vld [vmem:[#allocation5 + $0x8d0] sm:$0xff]
    %v533 = vld [vmem:[#allocation5 + $0x8d8] sm:$0xff]
    %v534 = vld [vmem:[#allocation5 + $0x8e0] sm:$0xff]
    %v535 = vld [vmem:[#allocation5 + $0x8e8] sm:$0xff]
    %v536 = vld [vmem:[#allocation5 + $0x8f0] sm:$0xff]
    %v537 = vld [vmem:[#allocation5 + $0x8f8] sm:$0xff]
    %v538 = vld [vmem:[#allocation5 + $0x900] sm:$0xff]
    %v539 = vld [vmem:[#allocation5 + $0x908] sm:$0xff]
    %v540 = vld [vmem:[#allocation5 + $0x910] sm:$0xff]
    %v541 = vld [vmem:[#allocation5 + $0x918] sm:$0xff]
    %v542 = vld [vmem:[#allocation5 + $0x920] sm:$0xff]
    %v543 = vld [vmem:[#allocation5 + $0x928] sm:$0xff]
    %v544 = vld [vmem:[#allocation5 + $0x930] sm:$0xff]
    %v545 = vld [vmem:[#allocation5 + $0x938] sm:$0xff]
    %v546 = vld [vmem:[#allocation5 + $0x940] sm:$0xff]
    %v547 = vld [vmem:[#allocation5 + $0x948] sm:$0xff]
    %v548 = vld [vmem:[#allocation5 + $0x950] sm:$0xff]
    %v549 = vld [vmem:[#allocation5 + $0x958] sm:$0xff]
    %v550 = vld [vmem:[#allocation5 + $0x960] sm:$0xff]
    %v551 = vld [vmem:[#allocation5 + $0x968] sm:$0xff]
    %v552 = vld [vmem:[#allocation5 + $0x970] sm:$0xff]
    %v553 = vld [vmem:[#allocation5 + $0x978] sm:$0xff]
    %v554 = vld [vmem:[#allocation5 + $0x980] sm:$0xff]
    %v555 = vld [vmem:[#allocation5 + $0x988] sm:$0xff]
    %v556 = vld [vmem:[#allocation5 + $0x990] sm:$0xff]
    %v557 = vld [vmem:[#allocation5 + $0x998] sm:$0xff]
    %v558 = vld [vmem:[#allocation5 + $0x9a0] sm:$0xff]
    %v559 = vld [vmem:[#allocation5 + $0x9a8] sm:$0xff]
    %v560 = vld [vmem:[#allocation5 + $0x9b0] sm:$0xff]
    %v561 = vld [vmem:[#allocation5 + $0x9b8] sm:$0xff]
    %v562 = vld [vmem:[#allocation5 + $0x9c0] sm:$0xff]
    %v563 = vld [vmem:[#allocation5 + $0x9c8] sm:$0xff]
    %v564 = vld [vmem:[#allocation5 + $0x9d0] sm:$0xff]
    %v565 = vld [vmem:[#allocation5 + $0x9d8] sm:$0xff]
    %v566 = vld [vmem:[#allocation5 + $0x9e0] sm:$0xff]
    %v567 = vld [vmem:[#allocation5 + $0x9e8] sm:$0xff]
    %v568 = vld [vmem:[#allocation5 + $0x9f0] sm:$0xff]
    %v569 = vld [vmem:[#allocation5 + $0x9f8] sm:$0xff]
    %v570 = vld [vmem:[#allocation5 + $0xa00] sm:$0xff]
    %v571 = vld [vmem:[#allocation5 + $0xa08] sm:$0xff]
    %v572 = vld [vmem:[#allocation5 + $0xa10] sm:$0xff]
    %v573 = vld [vmem:[#allocation5 + $0xa18] sm:$0xff]
    %v574 = vld [vmem:[#allocation5 + $0xa20] sm:$0xff]
    %v575 = vld [vmem:[#allocation5 + $0xa28] sm:$0xff]
    %v576 = vld [vmem:[#allocation5 + $0xa30] sm:$0xff]
    %v577 = vld [vmem:[#allocation5 + $0xa38] sm:$0xff]
    %v578 = vld [vmem:[#allocation5 + $0xa40] sm:$0xff]
    %v579 = vld [vmem:[#allocation5 + $0xa48] sm:$0xff]
    %v580 = vld [vmem:[#allocation5 + $0xa50] sm:$0xff]
    %v581 = vld [vmem:[#allocation5 + $0xa58] sm:$0xff]
    %v582 = vld [vmem:[#allocation5 + $0xa60] sm:$0xff]
    %v583 = vld [vmem:[#allocation5 + $0xa68] sm:$0xff]
    %v584 = vld [vmem:[#allocation5 + $0xa70] sm:$0xff]
    %v585 = vld [vmem:[#allocation5 + $0xa78] sm:$0xff]
    %v586 = vld [vmem:[#allocation5 + $0xa80] sm:$0xff]
    %v587 = vld [vmem:[#allocation5 + $0xa88] sm:$0xff]
    %v588 = vld [vmem:[#allocation5 + $0xa90] sm:$0xff]
    %v589 = vld [vmem:[#allocation5 + $0xa98] sm:$0xff]
    %v590 = vld [vmem:[#allocation5 + $0xaa0] sm:$0xff]
    %v591 = vld [vmem:[#allocation5 + $0xaa8] sm:$0xff]
    %v592 = vld [vmem:[#allocation5 + $0xab0] sm:$0xff]
    %v593 = vld [vmem:[#allocation5 + $0xab8] sm:$0xff]
    %v594 = vld [vmem:[#allocation5 + $0xac0] sm:$0xff]
    %v595 = vld [vmem:[#allocation5 + $0xac8] sm:$0xff]
    %v596 = vld [vmem:[#allocation5 + $0xad0] sm:$0xff]
    %v597 = vld [vmem:[#allocation5 + $0xad8] sm:$0xff]
    %v598 = vld [vmem:[#allocation5 + $0xae0] sm:$0xff]
    %v599 = vld [vmem:[#allocation5 + $0xae8] sm:$0xff]
    %v600 = vld [vmem:[#allocation5 + $0xaf0] sm:$0xff]
    %v601 = vld [vmem:[#allocation5 + $0xaf8] sm:$0xff]
    %v602 = vld [vmem:[#allocation5 + $0xb00] sm:$0xff]
    %v603 = vld [vmem:[#allocation5 + $0xb08] sm:$0xff]
    %v604 = vld [vmem:[#allocation5 + $0xb10] sm:$0xff]
    %v605 = vld [vmem:[#allocation5 + $0xb18] sm:$0xff]
    %v606 = vld [vmem:[#allocation5 + $0xb20] sm:$0xff]
    %v607 = vld [vmem:[#allocation5 + $0xb28] sm:$0xff]
    %v608 = vld [vmem:[#allocation5 + $0xb30] sm:$0xff]
    %v609 = vld [vmem:[#allocation5 + $0xb38] sm:$0xff]
    %v610 = vld [vmem:[#allocation5 + $0xb40] sm:$0xff]
    %v611 = vld [vmem:[#allocation5 + $0xb48] sm:$0xff]
    %v612 = vld [vmem:[#allocation5 + $0xb50] sm:$0xff]
    %v613 = vld [vmem:[#allocation5 + $0xb58] sm:$0xff]
    %v614 = vld [vmem:[#allocation5 + $0xb60] sm:$0xff]
    %v615 = vld [vmem:[#allocation5 + $0xb68] sm:$0xff]
    %v616 = vld [vmem:[#allocation5 + $0xb70] sm:$0xff]
    %v617 = vld [vmem:[#allocation5 + $0xb78] sm:$0xff]
    %v618 = vld [vmem:[#allocation5 + $0xb80] sm:$0xff]
    %v619 = vld [vmem:[#allocation5 + $0xb88] sm:$0xff]
    %v620 = vld [vmem:[#allocation5 + $0xb90] sm:$0xff]
    %v621 = vld [vmem:[#allocation5 + $0xb98] sm:$0xff]
    %v622 = vld [vmem:[#allocation5 + $0xba0] sm:$0xff]
    %v623 = vld [vmem:[#allocation5 + $0xba8] sm:$0xff]
    %v624 = vld [vmem:[#allocation5 + $0xbb0] sm:$0xff]
    %v625 = vld [vmem:[#allocation5 + $0xbb8] sm:$0xff]
    %v626 = vld [vmem:[#allocation5 + $0xbc0] sm:$0xff]
    %v627 = vld [vmem:[#allocation5 + $0xbc8] sm:$0xff]
    %v628 = vld [vmem:[#allocation5 + $0xbd0] sm:$0xff]
    %v629 = vld [vmem:[#allocation5 + $0xbd8] sm:$0xff]
    %v630 = vld [vmem:[#allocation5 + $0xbe0] sm:$0xff]
    %v631 = vld [vmem:[#allocation5 + $0xbe8] sm:$0xff]
    %v632 = vld [vmem:[#allocation5 + $0xbf0] sm:$0xff]
    %v633 = vld [vmem:[#allocation5 + $0xbf8] sm:$0xff]
    %v634 = vld [vmem:[#allocation5 + $0xc00] sm:$0xff]
    %v635 = vld [vmem:[#allocation5 + $0xc08] sm:$0xff]
    %v636 = vld [vmem:[#allocation5 + $0xc10] sm:$0xff]
    %v637 = vld [vmem:[#allocation5 + $0xc18] sm:$0xff]
    %v638 = vld [vmem:[#allocation5 + $0xc20] sm:$0xff]
    %v639 = vld [vmem:[#allocation5 + $0xc28] sm:$0xff]
    %v640 = vld [vmem:[#allocation5 + $0xc30] sm:$0xff]
    %v641 = vld [vmem:[#allocation5 + $0xc38] sm:$0xff]
    %v642 = vld [vmem:[#allocation5 + $0xc40] sm:$0xff]
    %v643 = vld [vmem:[#allocation5 + $0xc48] sm:$0xff]
    %v644 = vld [vmem:[#allocation5 + $0xc50] sm:$0xff]
    %v645 = vld [vmem:[#allocation5 + $0xc58] sm:$0xff]
    %v646 = vld [vmem:[#allocation5 + $0xc60] sm:$0xff]
    %v647 = vld [vmem:[#allocation5 + $0xc68] sm:$0xff]
    %v648 = vld [vmem:[#allocation5 + $0xc70] sm:$0xff]
    %v649 = vld [vmem:[#allocation5 + $0xc78] sm:$0xff]
    %v650 = vld [vmem:[#allocation5 + $0xc80] sm:$0xff]
    %v651 = vld [vmem:[#allocation5 + $0xc88] sm:$0xff]
    %v652 = vld [vmem:[#allocation5 + $0xc90] sm:$0xff]
    %v653 = vld [vmem:[#allocation5 + $0xc98] sm:$0xff]
    %v654 = vld [vmem:[#allocation5 + $0xca0] sm:$0xff]
    %v655 = vld [vmem:[#allocation5 + $0xca8] sm:$0xff]
    %v656 = vld [vmem:[#allocation5 + $0xcb0] sm:$0xff]
    %v657 = vld [vmem:[#allocation5 + $0xcb8] sm:$0xff]
    %v658 = vld [vmem:[#allocation5 + $0xcc0] sm:$0xff]
    %v659 = vld [vmem:[#allocation5 + $0xcc8] sm:$0xff]
    %v660 = vld [vmem:[#allocation5 + $0xcd0] sm:$0xff]
    %v661 = vld [vmem:[#allocation5 + $0xcd8] sm:$0xff]
    %v662 = vld [vmem:[#allocation5 + $0xce0] sm:$0xff]
    %v663 = vld [vmem:[#allocation5 + $0xce8] sm:$0xff]
    %v664 = vld [vmem:[#allocation5 + $0xcf0] sm:$0xff]
    %v665 = vld [vmem:[#allocation5 + $0xcf8] sm:$0xff]
    %v666 = vld [vmem:[#allocation5 + $0xd00] sm:$0xff]
    %v667 = vld [vmem:[#allocation5 + $0xd08] sm:$0xff]
    %v668 = vld [vmem:[#allocation5 + $0xd10] sm:$0xff]
    %v669 = vld [vmem:[#allocation5 + $0xd18] sm:$0xff]
    %v670 = vld [vmem:[#allocation5 + $0xd20] sm:$0xff]
    %v671 = vld [vmem:[#allocation5 + $0xd28] sm:$0xff]
    %v672 = vld [vmem:[#allocation5 + $0xd30] sm:$0xff]
    %v673 = vld [vmem:[#allocation5 + $0xd38] sm:$0xff]
    %v674 = vld [vmem:[#allocation5 + $0xd40] sm:$0xff]
    %v675 = vld [vmem:[#allocation5 + $0xd48] sm:$0xff]
    %v676 = vld [vmem:[#allocation5 + $0xd50] sm:$0xff]
    %v677 = vld [vmem:[#allocation5 + $0xd58] sm:$0xff]
    %v678 = vld [vmem:[#allocation5 + $0xd60] sm:$0xff]
    %v679 = vld [vmem:[#allocation5 + $0xd68] sm:$0xff]
    %v680 = vld [vmem:[#allocation5 + $0xd70] sm:$0xff]
    %v681 = vld [vmem:[#allocation5 + $0xd78] sm:$0xff]
    %v682 = vld [vmem:[#allocation5 + $0xd80] sm:$0xff]
    %v683 = vld [vmem:[#allocation5 + $0xd88] sm:$0xff]
    %v684 = vld [vmem:[#allocation5 + $0xd90] sm:$0xff]
    %v685 = vld [vmem:[#allocation5 + $0xd98] sm:$0xff]
    %v686 = vld [vmem:[#allocation5 + $0xda0] sm:$0xff]
    %v687 = vld [vmem:[#allocation5 + $0xda8] sm:$0xff]
    %v688 = vld [vmem:[#allocation5 + $0xdb0] sm:$0xff]
    %v689 = vld [vmem:[#allocation5 + $0xdb8] sm:$0xff]
    %v690 = vld [vmem:[#allocation5 + $0xdc0] sm:$0xff]
    %v691 = vld [vmem:[#allocation5 + $0xdc8] sm:$0xff]
    %v692 = vld [vmem:[#allocation5 + $0xdd0] sm:$0xff]
    %v693 = vld [vmem:[#allocation5 + $0xdd8] sm:$0xff]
    %v694 = vld [vmem:[#allocation5 + $0xde0] sm:$0xff]
    %v695 = vld [vmem:[#allocation5 + $0xde8] sm:$0xff]
    %v696 = vld [vmem:[#allocation5 + $0xdf0] sm:$0xff]
    %v697 = vld [vmem:[#allocation5 + $0xdf8] sm:$0xff]
    %v698 = vld [vmem:[#allocation5 + $0xe00] sm:$0xff]
    %v699 = vld [vmem:[#allocation5 + $0xe08] sm:$0xff]
    %v700 = vld [vmem:[#allocation5 + $0xe10] sm:$0xff]
    %v701 = vld [vmem:[#allocation5 + $0xe18] sm:$0xff]
    %v702 = vld [vmem:[#allocation5 + $0xe20] sm:$0xff]
    %v703 = vld [vmem:[#allocation5 + $0xe28] sm:$0xff]
    %v704 = vld [vmem:[#allocation5 + $0xe30] sm:$0xff]
    %v705 = vld [vmem:[#allocation5 + $0xe38] sm:$0xff]
    %v706 = vld [vmem:[#allocation5 + $0xe40] sm:$0xff]
    %v707 = vld [vmem:[#allocation5 + $0xe48] sm:$0xff]
    %v708 = vld [vmem:[#allocation5 + $0xe50] sm:$0xff]
    %v709 = vld [vmem:[#allocation5 + $0xe58] sm:$0xff]
    %v710 = vld [vmem:[#allocation5 + $0xe60] sm:$0xff]
    %v711 = vld [vmem:[#allocation5 + $0xe68] sm:$0xff]
    %v712 = vld [vmem:[#allocation5 + $0xe70] sm:$0xff]
    %v713 = vld [vmem:[#allocation5 + $0xe78] sm:$0xff]
    %v714 = vld [vmem:[#allocation5 + $0xe80] sm:$0xff]
    %v715 = vld [vmem:[#allocation5 + $0xe88] sm:$0xff]
    %v716 = vld [vmem:[#allocation5 + $0xe90] sm:$0xff]
    %v717 = vld [vmem:[#allocation5 + $0xe98] sm:$0xff]
    %v718 = vld [vmem:[#allocation5 + $0xea0] sm:$0xff]
    %v719 = vld [vmem:[#allocation5 + $0xea8] sm:$0xff]
    %v720 = vld [vmem:[#allocation5 + $0xeb0] sm:$0xff]
    %v721 = vld [vmem:[#allocation5 + $0xeb8] sm:$0xff]
    %v722 = vld [vmem:[#allocation5 + $0xec0] sm:$0xff]
    %v723 = vld [vmem:[#allocation5 + $0xec8] sm:$0xff]
    %v724 = vld [vmem:[#allocation5 + $0xed0] sm:$0xff]
    %v725 = vld [vmem:[#allocation5 + $0xed8] sm:$0xff]
    %v726 = vld [vmem:[#allocation5 + $0xee0] sm:$0xff]
    %v727 = vld [vmem:[#allocation5 + $0xee8] sm:$0xff]
    %v728 = vld [vmem:[#allocation5 + $0xef0] sm:$0xff]
    %v729 = vld [vmem:[#allocation5 + $0xef8] sm:$0xff]
    %v730 = vld [vmem:[#allocation5 + $0xf00] sm:$0xff]
    %v731 = vld [vmem:[#allocation5 + $0xf08] sm:$0xff]
    %v732 = vld [vmem:[#allocation5 + $0xf10] sm:$0xff]
    %v733 = vld [vmem:[#allocation5 + $0xf18] sm:$0xff]
    %v734 = vld [vmem:[#allocation5 + $0xf20] sm:$0xff]
    %v735 = vld [vmem:[#allocation5 + $0xf28] sm:$0xff]
    %v736 = vld [vmem:[#allocation5 + $0xf30] sm:$0xff]
    %v737 = vld [vmem:[#allocation5 + $0xf38] sm:$0xff]
    %v738 = vld [vmem:[#allocation5 + $0xf40] sm:$0xff]
    %v739 = vld [vmem:[#allocation5 + $0xf48] sm:$0xff]
    %v740 = vld [vmem:[#allocation5 + $0xf50] sm:$0xff]
    %v741 = vld [vmem:[#allocation5 + $0xf58] sm:$0xff]
    %v742 = vld [vmem:[#allocation5 + $0xf60] sm:$0xff]
    %v743 = vld [vmem:[#allocation5 + $0xf68] sm:$0xff]
    %v744 = vld [vmem:[#allocation5 + $0xf70] sm:$0xff]
    %v745 = vld [vmem:[#allocation5 + $0xf78] sm:$0xff]
    %v746 = vld [vmem:[#allocation5 + $0xf80] sm:$0xff]
    %v747 = vld [vmem:[#allocation5 + $0xf88] sm:$0xff]
    %v748 = vld [vmem:[#allocation5 + $0xf90] sm:$0xff]
    %v749 = vld [vmem:[#allocation5 + $0xf98] sm:$0xff]
    %v750 = vld [vmem:[#allocation5 + $0xfa0] sm:$0xff]
    %v751 = vld [vmem:[#allocation5 + $0xfa8] sm:$0xff]
    %v752 = vld [vmem:[#allocation5 + $0xfb0] sm:$0xff]
    %v753 = vld [vmem:[#allocation5 + $0xfb8] sm:$0xff]
    %v754 = vld [vmem:[#allocation5 + $0xfc0] sm:$0xff]
    %v755 = vld [vmem:[#allocation5 + $0xfc8] sm:$0xff]
    %v756 = vld [vmem:[#allocation5 + $0xfd0] sm:$0xff]
    %v757 = vld [vmem:[#allocation5 + $0xfd8] sm:$0xff]
    %v758 = vld [vmem:[#allocation5 + $0xfe0] sm:$0xff]
    %v759 = vld [vmem:[#allocation5 + $0xfe8] sm:$0xff]
    %v760 = vld [vmem:[#allocation5 + $0xff0] sm:$0xff]
    %v761 = vld [vmem:[#allocation5 + $0xff8] sm:$0xff]
    %v762 = vld [vmem:[#allocation5 + $0x1000] sm:$0xff]
    %v763 = vld [vmem:[#allocation5 + $0x1008] sm:$0xff]
    %v764 = vld [vmem:[#allocation5 + $0x1010] sm:$0xff]
    %v765 = vld [vmem:[#allocation5 + $0x1018] sm:$0xff]
    %v766 = vld [vmem:[#allocation5 + $0x1020] sm:$0xff]
    %v767 = vld [vmem:[#allocation5 + $0x1028] sm:$0xff]
    %v768 = vld [vmem:[#allocation5 + $0x1030] sm:$0xff]
    %v769 = vld [vmem:[#allocation5 + $0x1038] sm:$0xff]
    %v770 = vld [vmem:[#allocation5 + $0x1040] sm:$0xff]
    %v771 = vld [vmem:[#allocation5 + $0x1048] sm:$0xff]
    %v772 = vld [vmem:[#allocation5 + $0x1050] sm:$0xff]
    %v773 = vld [vmem:[#allocation5 + $0x1058] sm:$0xff]
    %v774 = vld [vmem:[#allocation5 + $0x1060] sm:$0xff]
    %v775 = vld [vmem:[#allocation5 + $0x1068] sm:$0xff]
    %v776 = vld [vmem:[#allocation5 + $0x1070] sm:$0xff]
    %v777 = vld [vmem:[#allocation5 + $0x1078] sm:$0xff]
    %v778 = vld [vmem:[#allocation5 + $0x1080] sm:$0xff]
    %v779 = vld [vmem:[#allocation5 + $0x1088] sm:$0xff]
    %v780 = vld [vmem:[#allocation5 + $0x1090] sm:$0xff]
    %v781 = vld [vmem:[#allocation5 + $0x1098] sm:$0xff]
    %v782 = vld [vmem:[#allocation5 + $0x10a0] sm:$0xff]
    %v783 = vld [vmem:[#allocation5 + $0x10a8] sm:$0xff]
    %v784 = vld [vmem:[#allocation5 + $0x10b0] sm:$0xff]
    %v785 = vld [vmem:[#allocation5 + $0x10b8] sm:$0xff]
    %v786 = vld [vmem:[#allocation5 + $0x10c0] sm:$0xff]
    %v787 = vld [vmem:[#allocation5 + $0x10c8] sm:$0xff]
    %v788 = vld [vmem:[#allocation5 + $0x10d0] sm:$0xff]
    %v789 = vld [vmem:[#allocation5 + $0x10d8] sm:$0xff]
    %v790 = vld [vmem:[#allocation5 + $0x10e0] sm:$0xff]
    %v791 = vld [vmem:[#allocation5 + $0x10e8] sm:$0xff]
    %v792 = vld [vmem:[#allocation5 + $0x10f0] sm:$0xff]
    %v793 = vld [vmem:[#allocation5 + $0x10f8] sm:$0xff]
    %v794 = vld [vmem:[#allocation5 + $0x1100] sm:$0xff]
    %v795 = vld [vmem:[#allocation5 + $0x1108] sm:$0xff]
    %v796 = vld [vmem:[#allocation5 + $0x1110] sm:$0xff]
    %v797 = vld [vmem:[#allocation5 + $0x1118] sm:$0xff]
    %v798 = vld [vmem:[#allocation5 + $0x1120] sm:$0xff]
    %v799 = vld [vmem:[#allocation5 + $0x1128] sm:$0xff]
    %v800 = vld [vmem:[#allocation5 + $0x1130] sm:$0xff]
    %v801 = vld [vmem:[#allocation5 + $0x1138] sm:$0xff]
    %v802 = vld [vmem:[#allocation5 + $0x1140] sm:$0xff]
    %v803 = vld [vmem:[#allocation5 + $0x1148] sm:$0xff]
    %v804 = vld [vmem:[#allocation5 + $0x1150] sm:$0xff]
    %v805 = vld [vmem:[#allocation5 + $0x1158] sm:$0xff]
    %v806 = vld [vmem:[#allocation5 + $0x1160] sm:$0xff]
    %v807 = vld [vmem:[#allocation5 + $0x1168] sm:$0xff]
    %v808 = vld [vmem:[#allocation5 + $0x1170] sm:$0xff]
    %v809 = vld [vmem:[#allocation5 + $0x1178] sm:$0xff]
    %v810 = vld [vmem:[#allocation5 + $0x1180] sm:$0xff]
    %v811 = vld [vmem:[#allocation5 + $0x1188] sm:$0xff]
    %v812 = vld [vmem:[#allocation5 + $0x1190] sm:$0xff]
    %v813 = vld [vmem:[#allocation5 + $0x1198] sm:$0xff]
    %v814 = vld [vmem:[#allocation5 + $0x11a0] sm:$0xff]
    %v815 = vld [vmem:[#allocation5 + $0x11a8] sm:$0xff]
    %v816 = vld [vmem:[#allocation5 + $0x11b0] sm:$0xff]
    %v817 = vld [vmem:[#allocation5 + $0x11b8] sm:$0xff]
    %v818 = vld [vmem:[#allocation5 + $0x11c0] sm:$0xff]
    %v819 = vld [vmem:[#allocation5 + $0x11c8] sm:$0xff]
    %v820 = vld [vmem:[#allocation5 + $0x11d0] sm:$0xff]
    %v821 = vld [vmem:[#allocation5 + $0x11d8] sm:$0xff]
    %v822 = vld [vmem:[#allocation5 + $0x11e0] sm:$0xff]
    %v823 = vld [vmem:[#allocation5 + $0x11e8] sm:$0xff]
    %v824 = vld [vmem:[#allocation5 + $0x11f0] sm:$0xff]
    %v825 = vld [vmem:[#allocation5 + $0x11f8] sm:$0xff]
    %v826 = vld [vmem:[#allocation5 + $0x1200] sm:$0xff]
    %v827 = vld [vmem:[#allocation5 + $0x1208] sm:$0xff]
    %v828 = vld [vmem:[#allocation5 + $0x1210] sm:$0xff]
    %v829 = vld [vmem:[#allocation5 + $0x1218] sm:$0xff]
    %v830 = vld [vmem:[#allocation5 + $0x1220] sm:$0xff]
    %v831 = vld [vmem:[#allocation5 + $0x1228] sm:$0xff]
    %v832 = vld [vmem:[#allocation5 + $0x1230] sm:$0xff]
    %v833 = vld [vmem:[#allocation5 + $0x1238] sm:$0xff]
    %v834 = vld [vmem:[#allocation5 + $0x1240] sm:$0xff]
    %v835 = vld [vmem:[#allocation5 + $0x1248] sm:$0xff]
    %v836 = vld [vmem:[#allocation5 + $0x1250] sm:$0xff]
    %v837 = vld [vmem:[#allocation5 + $0x1258] sm:$0xff]
    %v838 = vld [vmem:[#allocation5 + $0x1260] sm:$0xff]
    %v839 = vld [vmem:[#allocation5 + $0x1268] sm:$0xff]
    %v840 = vld [vmem:[#allocation5 + $0x1270] sm:$0xff]
    %v841 = vld [vmem:[#allocation5 + $0x1278] sm:$0xff]
    %v842 = vld [vmem:[#allocation5 + $0x1280] sm:$0xff]
    %v843 = vld [vmem:[#allocation5 + $0x1288] sm:$0xff]
    %v844 = vld [vmem:[#allocation5 + $0x1290] sm:$0xff]
    %v845 = vld [vmem:[#allocation5 + $0x1298] sm:$0xff]
    %v846 = vld [vmem:[#allocation5 + $0x12a0] sm:$0xff]
    %v847 = vld [vmem:[#allocation5 + $0x12a8] sm:$0xff]
    %v848 = vld [vmem:[#allocation5 + $0x12b0] sm:$0xff]
    %v849 = vld [vmem:[#allocation5 + $0x12b8] sm:$0xff]
    %v850 = vld [vmem:[#allocation5 + $0x12c0] sm:$0xff]
    %v851 = vld [vmem:[#allocation5 + $0x12c8] sm:$0xff]
    %v852 = vld [vmem:[#allocation5 + $0x12d0] sm:$0xff]
    %v853 = vld [vmem:[#allocation5 + $0x12d8] sm:$0xff]
    %v854 = vld [vmem:[#allocation5 + $0x12e0] sm:$0xff]
    %v855 = vld [vmem:[#allocation5 + $0x12e8] sm:$0xff]
    %v856 = vld [vmem:[#allocation5 + $0x12f0] sm:$0xff]
    %v857 = vld [vmem:[#allocation5 + $0x12f8] sm:$0xff]
    %v858 = vld [vmem:[#allocation5 + $0x1300] sm:$0xff]
    %v859 = vld [vmem:[#allocation5 + $0x1308] sm:$0xff]
    %v860 = vld [vmem:[#allocation5 + $0x1310] sm:$0xff]
    %v861 = vld [vmem:[#allocation5 + $0x1318] sm:$0xff]
    %v862 = vld [vmem:[#allocation5 + $0x1320] sm:$0xff]
    %v863 = vld [vmem:[#allocation5 + $0x1328] sm:$0xff]
    %v864 = vld [vmem:[#allocation5 + $0x1330] sm:$0xff]
    %v865 = vld [vmem:[#allocation5 + $0x1338] sm:$0xff]
    %v866 = vld [vmem:[#allocation5 + $0x1340] sm:$0xff]
    %v867 = vld [vmem:[#allocation5 + $0x1348] sm:$0xff]
    %v868 = vld [vmem:[#allocation5 + $0x1350] sm:$0xff]
    %v869 = vld [vmem:[#allocation5 + $0x1358] sm:$0xff]
    %v870 = vld [vmem:[#allocation5 + $0x1360] sm:$0xff]
    %v871 = vld [vmem:[#allocation5 + $0x1368] sm:$0xff]
    %v872 = vld [vmem:[#allocation5 + $0x1370] sm:$0xff]
    %v873 = vld [vmem:[#allocation5 + $0x1378] sm:$0xff]
    %v874 = vld [vmem:[#allocation5 + $0x1380] sm:$0xff]
    %v875 = vld [vmem:[#allocation5 + $0x1388] sm:$0xff]
    %v876 = vld [vmem:[#allocation5 + $0x1390] sm:$0xff]
    %v877 = vld [vmem:[#allocation5 + $0x1398] sm:$0xff]
    %v878 = vld [vmem:[#allocation5 + $0x13a0] sm:$0xff]
    %v879 = vld [vmem:[#allocation5 + $0x13a8] sm:$0xff]
    %v880 = vld [vmem:[#allocation5 + $0x13b0] sm:$0xff]
    %v881 = vld [vmem:[#allocation5 + $0x13b8] sm:$0xff]
    %v882 = vld [vmem:[#allocation5 + $0x13c0] sm:$0xff]
    %v883 = vld [vmem:[#allocation5 + $0x13c8] sm:$0xff]
    %v884 = vld [vmem:[#allocation5 + $0x13d0] sm:$0xff]
    %v885 = vld [vmem:[#allocation5 + $0x13d8] sm:$0xff]
    %v886 = vld [vmem:[#allocation5 + $0x13e0] sm:$0xff]
    %v887 = vld [vmem:[#allocation5 + $0x13e8] sm:$0xff]
    %v888 = vld [vmem:[#allocation5 + $0x13f0] sm:$0xff]
    %v889 = vld [vmem:[#allocation5 + $0x13f8] sm:$0xff]
    %v890 = vld [vmem:[#allocation5 + $0x1400] sm:$0xff]
    %v891 = vld [vmem:[#allocation5 + $0x1408] sm:$0xff]
    %v892 = vld [vmem:[#allocation5 + $0x1410] sm:$0xff]
    %v893 = vld [vmem:[#allocation5 + $0x1418] sm:$0xff]
    %v894 = vld [vmem:[#allocation5 + $0x1420] sm:$0xff]
    %v895 = vld [vmem:[#allocation5 + $0x1428] sm:$0xff]
    %v896 = vld [vmem:[#allocation5 + $0x1430] sm:$0xff]
    %v897 = vld [vmem:[#allocation5 + $0x1438] sm:$0xff]
    %v898 = vld [vmem:[#allocation5 + $0x1440] sm:$0xff]
    %v899 = vld [vmem:[#allocation5 + $0x1448] sm:$0xff]
    %v900 = vld [vmem:[#allocation5 + $0x1450] sm:$0xff]
    %v901 = vld [vmem:[#allocation5 + $0x1458] sm:$0xff]
    %v902 = vld [vmem:[#allocation5 + $0x1460] sm:$0xff]
    %v903 = vld [vmem:[#allocation5 + $0x1468] sm:$0xff]
    %v904 = vld [vmem:[#allocation5 + $0x1470] sm:$0xff]
    %v905 = vld [vmem:[#allocation5 + $0x1478] sm:$0xff]
    %v906 = vld [vmem:[#allocation5 + $0x1480] sm:$0xff]
    %v907 = vld [vmem:[#allocation5 + $0x1488] sm:$0xff]
    %v908 = vld [vmem:[#allocation5 + $0x1490] sm:$0xff]
    %v909 = vld [vmem:[#allocation5 + $0x1498] sm:$0xff]
    %v910 = vld [vmem:[#allocation5 + $0x14a0] sm:$0xff]
    %v911 = vld [vmem:[#allocation5 + $0x14a8] sm:$0xff]
    %v912 = vld [vmem:[#allocation5 + $0x14b0] sm:$0xff]
    %v913 = vld [vmem:[#allocation5 + $0x14b8] sm:$0xff]
    %v914 = vld [vmem:[#allocation5 + $0x14c0] sm:$0xff]
    %v915 = vld [vmem:[#allocation5 + $0x14c8] sm:$0xff]
    %v916 = vld [vmem:[#allocation5 + $0x14d0] sm:$0xff]
    %v917 = vld [vmem:[#allocation5 + $0x14d8] sm:$0xff]
    %v918 = vld [vmem:[#allocation5 + $0x14e0] sm:$0xff]
    %v919 = vld [vmem:[#allocation5 + $0x14e8] sm:$0xff]
    %v920 = vld [vmem:[#allocation5 + $0x14f0] sm:$0xff]
    %v921 = vld [vmem:[#allocation5 + $0x14f8] sm:$0xff]
    %v922 = vld [vmem:[#allocation5 + $0x1500] sm:$0xff]
    %v923 = vld [vmem:[#allocation5 + $0x1508] sm:$0xff]
    %v924 = vld [vmem:[#allocation5 + $0x1510] sm:$0xff]
    %v925 = vld [vmem:[#allocation5 + $0x1518] sm:$0xff]
    %v926 = vld [vmem:[#allocation5 + $0x1520] sm:$0xff]
    %v927 = vld [vmem:[#allocation5 + $0x1528] sm:$0xff]
    %v928 = vld [vmem:[#allocation5 + $0x1530] sm:$0xff]
    %v929 = vld [vmem:[#allocation5 + $0x1538] sm:$0xff]
    %v930 = vld [vmem:[#allocation5 + $0x1540] sm:$0xff]
    %v931 = vld [vmem:[#allocation5 + $0x1548] sm:$0xff]
    %v932 = vld [vmem:[#allocation5 + $0x1550] sm:$0xff]
    %v933 = vld [vmem:[#allocation5 + $0x1558] sm:$0xff]
    %v934 = vld [vmem:[#allocation5 + $0x1560] sm:$0xff]
    %v935 = vld [vmem:[#allocation5 + $0x1568] sm:$0xff]
    %v936 = vld [vmem:[#allocation5 + $0x1570] sm:$0xff]
    %v937 = vld [vmem:[#allocation5 + $0x1578] sm:$0xff]
    %v938 = vld [vmem:[#allocation5 + $0x1580] sm:$0xff]
    %v939 = vld [vmem:[#allocation5 + $0x1588] sm:$0xff]
    %v940 = vld [vmem:[#allocation5 + $0x1590] sm:$0xff]
    %v941 = vld [vmem:[#allocation5 + $0x1598] sm:$0xff]
    %v942 = vld [vmem:[#allocation5 + $0x15a0] sm:$0xff]
    %v943 = vld [vmem:[#allocation5 + $0x15a8] sm:$0xff]
    %v944 = vld [vmem:[#allocation5 + $0x15b0] sm:$0xff]
    %v945 = vld [vmem:[#allocation5 + $0x15b8] sm:$0xff]
    %v946 = vld [vmem:[#allocation5 + $0x15c0] sm:$0xff]
    %v947 = vld [vmem:[#allocation5 + $0x15c8] sm:$0xff]
    %v948 = vld [vmem:[#allocation5 + $0x15d0] sm:$0xff]
    %v949 = vld [vmem:[#allocation5 + $0x15d8] sm:$0xff]
    %v950 = vld [vmem:[#allocation5 + $0x15e0] sm:$0xff]
    %v951 = vld [vmem:[#allocation5 + $0x15e8] sm:$0xff]
    %v952 = vld [vmem:[#allocation5 + $0x15f0] sm:$0xff]
    %v953 = vld [vmem:[#allocation5 + $0x15f8] sm:$0xff]
    %v954 = vld [vmem:[#allocation5 + $0x1600] sm:$0xff]
    %v955 = vld [vmem:[#allocation5 + $0x1608] sm:$0xff]
    %v956 = vld [vmem:[#allocation5 + $0x1610] sm:$0xff]
    %v957 = vld [vmem:[#allocation5 + $0x1618] sm:$0xff]
    %v958 = vld [vmem:[#allocation5 + $0x1620] sm:$0xff]
    %v959 = vld [vmem:[#allocation5 + $0x1628] sm:$0xff]
    %v960 = vld [vmem:[#allocation5 + $0x1630] sm:$0xff]
    %v961 = vld [vmem:[#allocation5 + $0x1638] sm:$0xff]
    %v962 = vld [vmem:[#allocation5 + $0x1640] sm:$0xff]
    %v963 = vld [vmem:[#allocation5 + $0x1648] sm:$0xff]
    %v964 = vld [vmem:[#allocation5 + $0x1650] sm:$0xff]
    %v965 = vld [vmem:[#allocation5 + $0x1658] sm:$0xff]
    %v966 = vld [vmem:[#allocation5 + $0x1660] sm:$0xff]
    %v967 = vld [vmem:[#allocation5 + $0x1668] sm:$0xff]
    %v968 = vld [vmem:[#allocation5 + $0x1670] sm:$0xff]
    %v969 = vld [vmem:[#allocation5 + $0x1678] sm:$0xff]
    %v970 = vld [vmem:[#allocation5 + $0x1680] sm:$0xff]
    %v971 = vld [vmem:[#allocation5 + $0x1688] sm:$0xff]
    %v972 = vld [vmem:[#allocation5 + $0x1690] sm:$0xff]
    %v973 = vld [vmem:[#allocation5 + $0x1698] sm:$0xff]
    %v974 = vld [vmem:[#allocation5 + $0x16a0] sm:$0xff]
    %v975 = vld [vmem:[#allocation5 + $0x16a8] sm:$0xff]
    %v976 = vld [vmem:[#allocation5 + $0x16b0] sm:$0xff]
    %v977 = vld [vmem:[#allocation5 + $0x16b8] sm:$0xff]
    %v978 = vld [vmem:[#allocation5 + $0x16c0] sm:$0xff]
    %v979 = vld [vmem:[#allocation5 + $0x16c8] sm:$0xff]
    %v980 = vld [vmem:[#allocation5 + $0x16d0] sm:$0xff]
    %v981 = vld [vmem:[#allocation5 + $0x16d8] sm:$0xff]
    %v982 = vld [vmem:[#allocation5 + $0x16e0] sm:$0xff]
    %v983 = vld [vmem:[#allocation5 + $0x16e8] sm:$0xff]
    %v984 = vld [vmem:[#allocation5 + $0x16f0] sm:$0xff]
    %v985 = vld [vmem:[#allocation5 + $0x16f8] sm:$0xff]
    %v986 = vld [vmem:[#allocation5 + $0x1700] sm:$0xff]
    %v987 = vld [vmem:[#allocation5 + $0x1708] sm:$0xff]
    %v988 = vld [vmem:[#allocation5 + $0x1710] sm:$0xff]
    %v989 = vld [vmem:[#allocation5 + $0x1718] sm:$0xff]
    %v990 = vld [vmem:[#allocation5 + $0x1720] sm:$0xff]
    %v991 = vld [vmem:[#allocation5 + $0x1728] sm:$0xff]
    %v992 = vld [vmem:[#allocation5 + $0x1730] sm:$0xff]
    %v993 = vld [vmem:[#allocation5 + $0x1738] sm:$0xff]
    %v994 = vld [vmem:[#allocation5 + $0x1740] sm:$0xff]
    %v995 = vld [vmem:[#allocation5 + $0x1748] sm:$0xff]
    %v996 = vld [vmem:[#allocation5 + $0x1750] sm:$0xff]
    %v997 = vld [vmem:[#allocation5 + $0x1758] sm:$0xff]
    %v998 = vld [vmem:[#allocation5 + $0x1760] sm:$0xff]
    %v999 = vld [vmem:[#allocation5 + $0x1768] sm:$0xff]
    %v1000 = vld [vmem:[#allocation5 + $0x1770] sm:$0xff]
    %v1001 = vld [vmem:[#allocation5 + $0x1778] sm:$0xff]
    %v1002 = vld [vmem:[#allocation5 + $0x1780] sm:$0xff]
    %v1003 = vld [vmem:[#allocation5 + $0x1788] sm:$0xff]
    %v1004 = vld [vmem:[#allocation5 + $0x1790] sm:$0xff]
    %v1005 = vld [vmem:[#allocation5 + $0x1798] sm:$0xff]
    %v1006 = vld [vmem:[#allocation5 + $0x17a0] sm:$0xff]
    %v1007 = vld [vmem:[#allocation5 + $0x17a8] sm:$0xff]
    %v1008 = vld [vmem:[#allocation5 + $0x17b0] sm:$0xff]
    %v1009 = vld [vmem:[#allocation5 + $0x17b8] sm:$0xff]
    %v1010 = vld [vmem:[#allocation5 + $0x17c0] sm:$0xff]
    %v1011 = vld [vmem:[#allocation5 + $0x17c8] sm:$0xff]
    %v1012 = vld [vmem:[#allocation5 + $0x17d0] sm:$0xff]
    %v1013 = vld [vmem:[#allocation5 + $0x17d8] sm:$0xff]
    %v1014 = vld [vmem:[#allocation5 + $0x17e0] sm:$0xff]
    %v1015 = vld [vmem:[#allocation5 + $0x17e8] sm:$0xff]
    %v1016 = vld [vmem:[#allocation5 + $0x17f0] sm:$0xff]
    %v1017 = vld [vmem:[#allocation5 + $0x17f8] sm:$0xff]
    %v1018 = vld [vmem:[#allocation5 + $0x1800] sm:$0xff]
    %v1019 = vld [vmem:[#allocation5 + $0x1808] sm:$0xff]
    %v1020 = vld [vmem:[#allocation5 + $0x1810] sm:$0xff]
    %v1021 = vld [vmem:[#allocation5 + $0x1818] sm:$0xff]
    %v1022 = vld [vmem:[#allocation5 + $0x1820] sm:$0xff]
    %v1023 = vld [vmem:[#allocation5 + $0x1828] sm:$0xff]
    %v1024 = vld [vmem:[#allocation5 + $0x1830] sm:$0xff]
    %v1025 = vld [vmem:[#allocation5 + $0x1838] sm:$0xff]
    %v1026 = vld [vmem:[#allocation5 + $0x1840] sm:$0xff]
    %v1027 = vld [vmem:[#allocation5 + $0x1848] sm:$0xff]
    %v1028 = vld [vmem:[#allocation5 + $0x1850] sm:$0xff]
    %v1029 = vld [vmem:[#allocation5 + $0x1858] sm:$0xff]
    %v1030 = vld [vmem:[#allocation5 + $0x1860] sm:$0xff]
    %v1031 = vld [vmem:[#allocation5 + $0x1868] sm:$0xff]
    %v1032 = vld [vmem:[#allocation5 + $0x1870] sm:$0xff]
    %v1033 = vld [vmem:[#allocation5 + $0x1878] sm:$0xff]
    %v1034 = vld [vmem:[#allocation5 + $0x1880] sm:$0xff]
    %v1035 = vld [vmem:[#allocation5 + $0x1888] sm:$0xff]
    %v1036 = vld [vmem:[#allocation5 + $0x1890] sm:$0xff]
    %v1037 = vld [vmem:[#allocation5 + $0x1898] sm:$0xff]
    %v1038 = vld [vmem:[#allocation5 + $0x18a0] sm:$0xff]
    %v1039 = vld [vmem:[#allocation5 + $0x18a8] sm:$0xff]
    %v1040 = vld [vmem:[#allocation5 + $0x18b0] sm:$0xff]
    %v1041 = vld [vmem:[#allocation5 + $0x18b8] sm:$0xff]
    %v1042 = vld [vmem:[#allocation5 + $0x18c0] sm:$0xff]
    %v1043 = vld [vmem:[#allocation5 + $0x18c8] sm:$0xff]
    %v1044 = vld [vmem:[#allocation5 + $0x18d0] sm:$0xff]
    %v1045 = vld [vmem:[#allocation5 + $0x18d8] sm:$0xff]
    %v1046 = vld [vmem:[#allocation5 + $0x18e0] sm:$0xff]
    %v1047 = vld [vmem:[#allocation5 + $0x18e8] sm:$0xff]
    %v1048 = vld [vmem:[#allocation5 + $0x18f0] sm:$0xff]
    %v1049 = vld [vmem:[#allocation5 + $0x18f8] sm:$0xff]
    %v1050 = vld [vmem:[#allocation5 + $0x1900] sm:$0xff]
    %v1051 = vld [vmem:[#allocation5 + $0x1908] sm:$0xff]
    %v1052 = vld [vmem:[#allocation5 + $0x1910] sm:$0xff]
    %v1053 = vld [vmem:[#allocation5 + $0x1918] sm:$0xff]
    %v1054 = vld [vmem:[#allocation5 + $0x1920] sm:$0xff]
    %v1055 = vld [vmem:[#allocation5 + $0x1928] sm:$0xff]
    %v1056 = vld [vmem:[#allocation5 + $0x1930] sm:$0xff]
    %v1057 = vld [vmem:[#allocation5 + $0x1938] sm:$0xff]
    %v1058 = vld [vmem:[#allocation5 + $0x1940] sm:$0xff]
    %v1059 = vld [vmem:[#allocation5 + $0x1948] sm:$0xff]
    %v1060 = vld [vmem:[#allocation5 + $0x1950] sm:$0xff]
    %v1061 = vld [vmem:[#allocation5 + $0x1958] sm:$0xff]
    %v1062 = vld [vmem:[#allocation5 + $0x1960] sm:$0xff]
    %v1063 = vld [vmem:[#allocation5 + $0x1968] sm:$0xff]
    %v1064 = vld [vmem:[#allocation5 + $0x1970] sm:$0xff]
    %v1065 = vld [vmem:[#allocation5 + $0x1978] sm:$0xff]
    %v1066 = vld [vmem:[#allocation5 + $0x1980] sm:$0xff]
    %v1067 = vld [vmem:[#allocation5 + $0x1988] sm:$0xff]
    %v1068 = vld [vmem:[#allocation5 + $0x1990] sm:$0xff]
    %v1069 = vld [vmem:[#allocation5 + $0x1998] sm:$0xff]
    %v1070 = vld [vmem:[#allocation5 + $0x19a0] sm:$0xff]
    %v1071 = vld [vmem:[#allocation5 + $0x19a8] sm:$0xff]
    %v1072 = vld [vmem:[#allocation5 + $0x19b0] sm:$0xff]
    %v1073 = vld [vmem:[#allocation5 + $0x19b8] sm:$0xff]
    %v1074 = vld [vmem:[#allocation5 + $0x19c0] sm:$0xff]
    %v1075 = vld [vmem:[#allocation5 + $0x19c8] sm:$0xff]
    %v1076 = vld [vmem:[#allocation5 + $0x19d0] sm:$0xff]
    %v1077 = vld [vmem:[#allocation5 + $0x19d8] sm:$0xff]
    %v1078 = vld [vmem:[#allocation5 + $0x19e0] sm:$0xff]
    %v1079 = vld [vmem:[#allocation5 + $0x19e8] sm:$0xff]
    %v1080 = vld [vmem:[#allocation5 + $0x19f0] sm:$0xff]
    %v1081 = vld [vmem:[#allocation5 + $0x19f8] sm:$0xff]
    %v1082 = vld [vmem:[#allocation5 + $0x1a00] sm:$0xff]
    %v1083 = vld [vmem:[#allocation5 + $0x1a08] sm:$0xff]
    %v1084 = vld [vmem:[#allocation5 + $0x1a10] sm:$0xff]
    %v1085 = vld [vmem:[#allocation5 + $0x1a18] sm:$0xff]
    %v1086 = vld [vmem:[#allocation5 + $0x1a20] sm:$0xff]
    %v1087 = vld [vmem:[#allocation5 + $0x1a28] sm:$0xff]
    %v1088 = vld [vmem:[#allocation5 + $0x1a30] sm:$0xff]
    %v1089 = vld [vmem:[#allocation5 + $0x1a38] sm:$0xff]
    %v1090 = vld [vmem:[#allocation5 + $0x1a40] sm:$0xff]
    %v1091 = vld [vmem:[#allocation5 + $0x1a48] sm:$0xff]
    %v1092 = vld [vmem:[#allocation5 + $0x1a50] sm:$0xff]
    %v1093 = vld [vmem:[#allocation5 + $0x1a58] sm:$0xff]
    %v1094 = vld [vmem:[#allocation5 + $0x1a60] sm:$0xff]
    %v1095 = vld [vmem:[#allocation5 + $0x1a68] sm:$0xff]
    %v1096 = vld [vmem:[#allocation5 + $0x1a70] sm:$0xff]
    %v1097 = vld [vmem:[#allocation5 + $0x1a78] sm:$0xff]
    %v1098 = vld [vmem:[#allocation5 + $0x1a80] sm:$0xff]
    %v1099 = vld [vmem:[#allocation5 + $0x1a88] sm:$0xff]
    %v1100 = vld [vmem:[#allocation5 + $0x1a90] sm:$0xff]
    %v1101 = vld [vmem:[#allocation5 + $0x1a98] sm:$0xff]
    %v1102 = vld [vmem:[#allocation5 + $0x1aa0] sm:$0xff]
    %v1103 = vld [vmem:[#allocation5 + $0x1aa8] sm:$0xff]
    %v1104 = vld [vmem:[#allocation5 + $0x1ab0] sm:$0xff]
    %v1105 = vld [vmem:[#allocation5 + $0x1ab8] sm:$0xff]
    %v1106 = vld [vmem:[#allocation5 + $0x1ac0] sm:$0xff]
    %v1107 = vld [vmem:[#allocation5 + $0x1ac8] sm:$0xff]
    %v1108 = vld [vmem:[#allocation5 + $0x1ad0] sm:$0xff]
    %v1109 = vld [vmem:[#allocation5 + $0x1ad8] sm:$0xff]
    %v1110 = vld [vmem:[#allocation5 + $0x1ae0] sm:$0xff]
    %v1111 = vld [vmem:[#allocation5 + $0x1ae8] sm:$0xff]
    %v1112 = vld [vmem:[#allocation5 + $0x1af0] sm:$0xff]
    %v1113 = vld [vmem:[#allocation5 + $0x1af8] sm:$0xff]
    %v1114 = vld [vmem:[#allocation5 + $0x1b00] sm:$0xff]
    %v1115 = vld [vmem:[#allocation5 + $0x1b08] sm:$0xff]
    %v1116 = vld [vmem:[#allocation5 + $0x1b10] sm:$0xff]
    %v1117 = vld [vmem:[#allocation5 + $0x1b18] sm:$0xff]
    %v1118 = vld [vmem:[#allocation5 + $0x1b20] sm:$0xff]
    %v1119 = vld [vmem:[#allocation5 + $0x1b28] sm:$0xff]
    %v1120 = vld [vmem:[#allocation5 + $0x1b30] sm:$0xff]
    %v1121 = vld [vmem:[#allocation5 + $0x1b38] sm:$0xff]
    %v1122 = vld [vmem:[#allocation5 + $0x1b40] sm:$0xff]
    %v1123 = vld [vmem:[#allocation5 + $0x1b48] sm:$0xff]
    %v1124 = vld [vmem:[#allocation5 + $0x1b50] sm:$0xff]
    %v1125 = vld [vmem:[#allocation5 + $0x1b58] sm:$0xff]
    %v1126 = vld [vmem:[#allocation5 + $0x1b60] sm:$0xff]
    %v1127 = vld [vmem:[#allocation5 + $0x1b68] sm:$0xff]
    %v1128 = vld [vmem:[#allocation5 + $0x1b70] sm:$0xff]
    %v1129 = vld [vmem:[#allocation5 + $0x1b78] sm:$0xff]
    %v1130 = vld [vmem:[#allocation5 + $0x1b80] sm:$0xff]
    %v1131 = vld [vmem:[#allocation5 + $0x1b88] sm:$0xff]
    %v1132 = vld [vmem:[#allocation5 + $0x1b90] sm:$0xff]
    %v1133 = vld [vmem:[#allocation5 + $0x1b98] sm:$0xff]
    %v1134 = vld [vmem:[#allocation5 + $0x1ba0] sm:$0xff]
    %v1135 = vld [vmem:[#allocation5 + $0x1ba8] sm:$0xff]
    %v1136 = vld [vmem:[#allocation5 + $0x1bb0] sm:$0xff]
    %v1137 = vld [vmem:[#allocation5 + $0x1bb8] sm:$0xff]
    %v1138 = vld [vmem:[#allocation5 + $0x1bc0] sm:$0xff]
    %v1139 = vld [vmem:[#allocation5 + $0x1bc8] sm:$0xff]
    %v1140 = vld [vmem:[#allocation5 + $0x1bd0] sm:$0xff]
    %v1141 = vld [vmem:[#allocation5 + $0x1bd8] sm:$0xff]
    %v1142 = vld [vmem:[#allocation5 + $0x1be0] sm:$0xff]
    %v1143 = vld [vmem:[#allocation5 + $0x1be8] sm:$0xff]
    %v1144 = vld [vmem:[#allocation5 + $0x1bf0] sm:$0xff]
    %v1145 = vld [vmem:[#allocation5 + $0x1bf8] sm:$0xff]
    %v1146 = vld [vmem:[#allocation5 + $0x1c00] sm:$0xff]
    %v1147 = vld [vmem:[#allocation5 + $0x1c08] sm:$0xff]
    %v1148 = vld [vmem:[#allocation5 + $0x1c10] sm:$0xff]
    %v1149 = vld [vmem:[#allocation5 + $0x1c18] sm:$0xff]
    %v1150 = vld [vmem:[#allocation5 + $0x1c20] sm:$0xff]
    %v1151 = vld [vmem:[#allocation5 + $0x1c28] sm:$0xff]
    %v1152 = vld [vmem:[#allocation5 + $0x1c30] sm:$0xff]
    %v1153 = vld [vmem:[#allocation5 + $0x1c38] sm:$0xff]
    %v1154 = vld [vmem:[#allocation5 + $0x1c40] sm:$0xff]
    %v1155 = vld [vmem:[#allocation5 + $0x1c48] sm:$0xff]
    %v1156 = vld [vmem:[#allocation5 + $0x1c50] sm:$0xff]
    %v1157 = vld [vmem:[#allocation5 + $0x1c58] sm:$0xff]
    %v1158 = vld [vmem:[#allocation5 + $0x1c60] sm:$0xff]
    %v1159 = vld [vmem:[#allocation5 + $0x1c68] sm:$0xff]
    %v1160 = vld [vmem:[#allocation5 + $0x1c70] sm:$0xff]
    %v1161 = vld [vmem:[#allocation5 + $0x1c78] sm:$0xff]
    %v1162 = vld [vmem:[#allocation5 + $0x1c80] sm:$0xff]
    %v1163 = vld [vmem:[#allocation5 + $0x1c88] sm:$0xff]
    %v1164 = vld [vmem:[#allocation5 + $0x1c90] sm:$0xff]
    %v1165 = vld [vmem:[#allocation5 + $0x1c98] sm:$0xff]
    %v1166 = vld [vmem:[#allocation5 + $0x1ca0] sm:$0xff]
    %v1167 = vld [vmem:[#allocation5 + $0x1ca8] sm:$0xff]
    %v1168 = vld [vmem:[#allocation5 + $0x1cb0] sm:$0xff]
    %v1169 = vld [vmem:[#allocation5 + $0x1cb8] sm:$0xff]
    %v1170 = vld [vmem:[#allocation5 + $0x1cc0] sm:$0xff]
    %v1171 = vld [vmem:[#allocation5 + $0x1cc8] sm:$0xff]
    %v1172 = vld [vmem:[#allocation5 + $0x1cd0] sm:$0xff]
    %v1173 = vld [vmem:[#allocation5 + $0x1cd8] sm:$0xff]
    %v1174 = vld [vmem:[#allocation5 + $0x1ce0] sm:$0xff]
    %v1175 = vld [vmem:[#allocation5 + $0x1ce8] sm:$0xff]
    %v1176 = vld [vmem:[#allocation5 + $0x1cf0] sm:$0xff]
    %v1177 = vld [vmem:[#allocation5 + $0x1cf8] sm:$0xff]
    %v1178 = vld [vmem:[#allocation5 + $0x1d00] sm:$0xff]
    %v1179 = vld [vmem:[#allocation5 + $0x1d08] sm:$0xff]
    %v1180 = vld [vmem:[#allocation5 + $0x1d10] sm:$0xff]
    %v1181 = vld [vmem:[#allocation5 + $0x1d18] sm:$0xff]
    %v1182 = vld [vmem:[#allocation5 + $0x1d20] sm:$0xff]
    %v1183 = vld [vmem:[#allocation5 + $0x1d28] sm:$0xff]
    %v1184 = vld [vmem:[#allocation5 + $0x1d30] sm:$0xff]
    %v1185 = vld [vmem:[#allocation5 + $0x1d38] sm:$0xff]
    %v1186 = vld [vmem:[#allocation5 + $0x1d40] sm:$0xff]
    %v1187 = vld [vmem:[#allocation5 + $0x1d48] sm:$0xff]
    %v1188 = vld [vmem:[#allocation5 + $0x1d50] sm:$0xff]
    %v1189 = vld [vmem:[#allocation5 + $0x1d58] sm:$0xff]
    %v1190 = vld [vmem:[#allocation5 + $0x1d60] sm:$0xff]
    %v1191 = vld [vmem:[#allocation5 + $0x1d68] sm:$0xff]
    %v1192 = vld [vmem:[#allocation5 + $0x1d70] sm:$0xff]
    %v1193 = vld [vmem:[#allocation5 + $0x1d78] sm:$0xff]
    %v1194 = vld [vmem:[#allocation5 + $0x1d80] sm:$0xff]
    %v1195 = vld [vmem:[#allocation5 + $0x1d88] sm:$0xff]
    %v1196 = vld [vmem:[#allocation5 + $0x1d90] sm:$0xff]
    %v1197 = vld [vmem:[#allocation5 + $0x1d98] sm:$0xff]
    %v1198 = vld [vmem:[#allocation5 + $0x1da0] sm:$0xff]
    %v1199 = vld [vmem:[#allocation5 + $0x1da8] sm:$0xff]
    %v1200 = vld [vmem:[#allocation5 + $0x1db0] sm:$0xff]
    %v1201 = vld [vmem:[#allocation5 + $0x1db8] sm:$0xff]
    %v1202 = vld [vmem:[#allocation5 + $0x1dc0] sm:$0xff]
    %v1203 = vld [vmem:[#allocation5 + $0x1dc8] sm:$0xff]
    %v1204 = vld [vmem:[#allocation5 + $0x1dd0] sm:$0xff]
    %v1205 = vld [vmem:[#allocation5 + $0x1dd8] sm:$0xff]
    %v1206 = vld [vmem:[#allocation5 + $0x1de0] sm:$0xff]
    %v1207 = vld [vmem:[#allocation5 + $0x1de8] sm:$0xff]
    %v1208 = vld [vmem:[#allocation5 + $0x1df0] sm:$0xff]
    %v1209 = vld [vmem:[#allocation5 + $0x1df8] sm:$0xff]
    %v1210 = vld [vmem:[#allocation5 + $0x1e00] sm:$0xff]
    %v1211 = vld [vmem:[#allocation5 + $0x1e08] sm:$0xff]
    %v1212 = vld [vmem:[#allocation5 + $0x1e10] sm:$0xff]
    %v1213 = vld [vmem:[#allocation5 + $0x1e18] sm:$0xff]
    %v1214 = vld [vmem:[#allocation5 + $0x1e20] sm:$0xff]
    %v1215 = vld [vmem:[#allocation5 + $0x1e28] sm:$0xff]
    %v1216 = vld [vmem:[#allocation5 + $0x1e30] sm:$0xff]
    %v1217 = vld [vmem:[#allocation5 + $0x1e38] sm:$0xff]
    %v1218 = vld [vmem:[#allocation5 + $0x1e40] sm:$0xff]
    %v1219 = vld [vmem:[#allocation5 + $0x1e48] sm:$0xff]
    %v1220 = vld [vmem:[#allocation5 + $0x1e50] sm:$0xff]
    %v1221 = vld [vmem:[#allocation5 + $0x1e58] sm:$0xff]
    %v1222 = vld [vmem:[#allocation5 + $0x1e60] sm:$0xff]
    %v1223 = vld [vmem:[#allocation5 + $0x1e68] sm:$0xff]
    %v1224 = vld [vmem:[#allocation5 + $0x1e70] sm:$0xff]
    %v1225 = vld [vmem:[#allocation5 + $0x1e78] sm:$0xff]
    %v1226 = vld [vmem:[#allocation5 + $0x1e80] sm:$0xff]
    %v1227 = vld [vmem:[#allocation5 + $0x1e88] sm:$0xff]
    %v1228 = vld [vmem:[#allocation5 + $0x1e90] sm:$0xff]
    %v1229 = vld [vmem:[#allocation5 + $0x1e98] sm:$0xff]
    %v1230 = vld [vmem:[#allocation5 + $0x1ea0] sm:$0xff]
    %v1231 = vld [vmem:[#allocation5 + $0x1ea8] sm:$0xff]
    %v1232 = vld [vmem:[#allocation5 + $0x1eb0] sm:$0xff]
    %v1233 = vld [vmem:[#allocation5 + $0x1eb8] sm:$0xff]
    %v1234 = vld [vmem:[#allocation5 + $0x1ec0] sm:$0xff]
    %v1235 = vld [vmem:[#allocation5 + $0x1ec8] sm:$0xff]
    %v1236 = vld [vmem:[#allocation5 + $0x1ed0] sm:$0xff]
    %v1237 = vld [vmem:[#allocation5 + $0x1ed8] sm:$0xff]
    %v1238 = vld [vmem:[#allocation5 + $0x1ee0] sm:$0xff]
    %v1239 = vld [vmem:[#allocation5 + $0x1ee8] sm:$0xff]
    %v1240 = vld [vmem:[#allocation5 + $0x1ef0] sm:$0xff]
    %v1241 = vld [vmem:[#allocation5 + $0x1ef8] sm:$0xff]
    %v1242 = vld [vmem:[#allocation5 + $0x1f00] sm:$0xff]
    %v1243 = vld [vmem:[#allocation5 + $0x1f08] sm:$0xff]
    %v1244 = vld [vmem:[#allocation5 + $0x1f10] sm:$0xff]
    %v1245 = vld [vmem:[#allocation5 + $0x1f18] sm:$0xff]
    %v1246 = vld [vmem:[#allocation5 + $0x1f20] sm:$0xff]
    %v1247 = vld [vmem:[#allocation5 + $0x1f28] sm:$0xff]
    %v1248 = vld [vmem:[#allocation5 + $0x1f30] sm:$0xff]
    %v1249 = vld [vmem:[#allocation5 + $0x1f38] sm:$0xff]
    %v1250 = vld [vmem:[#allocation5 + $0x1f40] sm:$0xff]
    %v1251 = vld [vmem:[#allocation5 + $0x1f48] sm:$0xff]
    %v1252 = vld [vmem:[#allocation5 + $0x1f50] sm:$0xff]
    %v1253 = vld [vmem:[#allocation5 + $0x1f58] sm:$0xff]
    %v1254 = vld [vmem:[#allocation5 + $0x1f60] sm:$0xff]
    %v1255 = vld [vmem:[#allocation5 + $0x1f68] sm:$0xff]
    %v1256 = vld [vmem:[#allocation5 + $0x1f70] sm:$0xff]
    %v1257 = vld [vmem:[#allocation5 + $0x1f78] sm:$0xff]
    %v1258 = vld [vmem:[#allocation5 + $0x1f80] sm:$0xff]
    %v1259 = vld [vmem:[#allocation5 + $0x1f88] sm:$0xff]
    %v1260 = vld [vmem:[#allocation5 + $0x1f90] sm:$0xff]
    %v1261 = vld [vmem:[#allocation5 + $0x1f98] sm:$0xff]
    %v1262 = vld [vmem:[#allocation5 + $0x1fa0] sm:$0xff]
    %v1263 = vld [vmem:[#allocation5 + $0x1fa8] sm:$0xff]
    %v1264 = vld [vmem:[#allocation5 + $0x1fb0] sm:$0xff]
    %v1265 = vld [vmem:[#allocation5 + $0x1fb8] sm:$0xff]
    %v1266 = vld [vmem:[#allocation5 + $0x1fc0] sm:$0xff]
    %v1267 = vld [vmem:[#allocation5 + $0x1fc8] sm:$0xff]
    %v1268 = vld [vmem:[#allocation5 + $0x1fd0] sm:$0xff]
    %v1269 = vld [vmem:[#allocation5 + $0x1fd8] sm:$0xff]
    %v1270 = vld [vmem:[#allocation5 + $0x1fe0] sm:$0xff]
    %v1271 = vld [vmem:[#allocation5 + $0x1fe8] sm:$0xff]
    %v1272 = vld [vmem:[#allocation5 + $0x1ff0] sm:$0xff]
    %v1273 = vld [vmem:[#allocation5 + $0x1ff8] sm:$0xff]
    %v1274 = vld [vmem:[#allocation7] sm:$0xff]
    %v1276 = vlaneseq
    %v1277 = vshrl.u32 %v1276, 7
    %v1278 = vsub.s32 0, %v1277
    %v1279 = vrot.slane %v1274, %v1278
    %v1280 = vlaneseq
    %v1281 = vshrl.u32 %v1280, 7
    %v1282 = vsub.s32 1, %v1281
    %v1283 = vrot.slane %v1274, %v1282
    %v1284 = vlaneseq
    %v1285 = vshrl.u32 %v1284, 7
    %v1286 = vsub.s32 2, %v1285
    %v1287 = vrot.slane %v1274, %v1286
    %v1288 = vlaneseq
    %v1289 = vshrl.u32 %v1288, 7
    %v1290 = vsub.s32 3, %v1289
    %v1291 = vrot.slane %v1274, %v1290
    %v1292 = vlaneseq
    %v1293 = vshrl.u32 %v1292, 7
    %v1294 = vsub.s32 4, %v1293
    %v1295 = vrot.slane %v1274, %v1294
    %v1296 = vlaneseq
    %v1297 = vshrl.u32 %v1296, 7
    %v1298 = vsub.s32 5, %v1297
    %v1299 = vrot.slane %v1274, %v1298
    %v1300 = vlaneseq
    %v1301 = vshrl.u32 %v1300, 7
    %v1302 = vsub.s32 6, %v1301
    %v1303 = vrot.slane %v1274, %v1302
    %v1304 = vlaneseq
    %v1305 = vshrl.u32 %v1304, 7
    %v1306 = vsub.s32 7, %v1305
    %v1307 = vrot.slane %v1274, %v1306
    %v1318 = vcombine.high %v248, %v248
    %v1320 = vunpack.c.l.s4 1983009808
    %v1321 = vunpack.c.0.s8 %v1320
    %v1322 = vlaneseq
    %v1323 = vshrl.u32 %v1322, 7
    %v1324 = vsub.s32 %v1321, %v1323
    %v1325 = vrot.slane %v248, %v1324
    %v1327 = vunpack.c.l.s4 1983009808
    %v1328 = vunpack.c.0.s8 %v1327
    %v1329 = vlaneseq
    %v1330 = vshrl.u32 %v1329, 7
    %v1331 = vsub.s32 %v1328, %v1330
    %v1332 = vrot.slane %v1318, %v1331
    %v1333 = vcombine.high %v1325, %v1325
    %v1334 = vcombine.high %v1332, %v1332
    %v1335 = vcombine.high %v249, %v249
    %v1337 = vunpack.c.l.s4 1983009808
    %v1338 = vunpack.c.0.s8 %v1337
    %v1339 = vlaneseq
    %v1340 = vshrl.u32 %v1339, 7
    %v1341 = vsub.s32 %v1338, %v1340
    %v1342 = vrot.slane %v249, %v1341
    %v1344 = vunpack.c.l.s4 1983009808
    %v1345 = vunpack.c.0.s8 %v1344
    %v1346 = vlaneseq
    %v1347 = vshrl.u32 %v1346, 7
    %v1348 = vsub.s32 %v1345, %v1347
    %v1349 = vrot.slane %v1335, %v1348
    %v1350 = vcombine.high %v1342, %v1342
    %v1351 = vcombine.high %v1349, %v1349
    %1360 = vmatprep.subr.mxu0 %v251
    %1361 = vmatpush1.msra.mxu0 %v250
    %1362 = vmatprep.subr.mxu0 %v259
    %1363 = vmatpush1.msra.mxu0 %v258
    %1364 = vmatprep.subr.mxu0 %v267
    %1365 = vmatpush1.msra.mxu0 %v266
    %1366 = vmatprep.subr.mxu0 %v275
    %1367 = vmatpush1.msra.mxu0 %v274
    %1368 = vmatprep.subr.mxu0 %v283
    %1369 = vmatpush1.msra.mxu0 %v282
    %1370 = vmatprep.subr.mxu0 %v291
    %1371 = vmatpush1.msra.mxu0 %v290
    %1372 = vmatprep.subr.mxu0 %v299
    %1373 = vmatpush1.msra.mxu0 %v298
    %1374 = vmatprep.subr.mxu0 %v307
    %1375 = vmatpush1.msra.mxu0 %v306
    %1376 = vmatprep.subr.mxu0 %v315
    %1377 = vmatpush1.msra.mxu0 %v314
    %1378 = vmatprep.subr.mxu0 %v323
    %1379 = vmatpush1.msra.mxu0 %v322
    %1380 = vmatprep.subr.mxu0 %v331
    %1381 = vmatpush1.msra.mxu0 %v330
    %1382 = vmatprep.subr.mxu0 %v339
    %1383 = vmatpush1.msra.mxu0 %v338
    %1384 = vmatprep.subr.mxu0 %v347
    %1385 = vmatpush1.msra.mxu0 %v346
    %1386 = vmatprep.subr.mxu0 %v355
    %1387 = vmatpush1.msra.mxu0 %v354
    %1388 = vmatprep.subr.mxu0 %v363
    %1389 = vmatpush1.msra.mxu0 %v362
    %1390 = vmatprep.subr.mxu0 %v371
    %1391 = vmatpush1.msra.mxu0 %v370
    %1392 = vmatprep.subr.mxu0 %v379
    %1393 = vmatpush1.msra.mxu0 %v378
    %1394 = vmatprep.subr.mxu0 %v387
    %1395 = vmatpush1.msra.mxu0 %v386
    %1396 = vmatprep.subr.mxu0 %v395
    %1397 = vmatpush1.msra.mxu0 %v394
    %1398 = vmatprep.subr.mxu0 %v403
    %1399 = vmatpush1.msra.mxu0 %v402
    %1400 = vmatprep.subr.mxu0 %v411
    %1401 = vmatpush1.msra.mxu0 %v410
    %1402 = vmatprep.subr.mxu0 %v419
    %1403 = vmatpush1.msra.mxu0 %v418
    %1404 = vmatprep.subr.mxu0 %v427
    %1405 = vmatpush1.msra.mxu0 %v426
    %1406 = vmatprep.subr.mxu0 %v435
    %1407 = vmatpush1.msra.mxu0 %v434
    %1408 = vmatprep.subr.mxu0 %v443
    %1409 = vmatpush1.msra.mxu0 %v442
    %1410 = vmatprep.subr.mxu0 %v451
    %1411 = vmatpush1.msra.mxu0 %v450
    %1412 = vmatprep.subr.mxu0 %v459
    %1413 = vmatpush1.msra.mxu0 %v458
    %1414 = vmatprep.subr.mxu0 %v467
    %1415 = vmatpush1.msra.mxu0 %v466
    %1416 = vmatprep.subr.mxu0 %v475
    %1417 = vmatpush1.msra.mxu0 %v474
    %1418 = vmatprep.subr.mxu0 %v483
    %1419 = vmatpush1.msra.mxu0 %v482
    %1420 = vmatprep.subr.mxu0 %v491
    %1421 = vmatpush1.msra.mxu0 %v490
    %1422 = vmatprep.subr.mxu0 %v499
    %1423 = vmatpush1.msra.mxu0 %v498
    %1424 = vmatprep.mubr.f32.mxu0 %v1333
    %1425 = vmatmul.mubr.f32.gmra.mrb[0].mxu0 %v1325
    %v1426 = vpop.f32.mrb[0].mxu0
    %v1427 = vadd.f32 %v1279, %v1426
    %v1428 = vpop.f32.mrb[0].mxu0
    %v1429 = vadd.f32 %v1283, %v1428
    %1430 = vdwg.mxu0
    %1431 = vmatprep.subr.mxu0 %v507
    %1432 = vmatpush1.msra.mxu0 %v506
    %1433 = vmatprep.subr.mxu0 %v515
    %1434 = vmatpush1.msra.mxu0 %v514
    %1435 = vmatprep.subr.mxu0 %v523
    %1436 = vmatpush1.msra.mxu0 %v522
    %1437 = vmatprep.subr.mxu0 %v531
    %1438 = vmatpush1.msra.mxu0 %v530
    %1439 = vmatprep.subr.mxu0 %v539
    %1440 = vmatpush1.msra.mxu0 %v538
    %1441 = vmatprep.subr.mxu0 %v547
    %1442 = vmatpush1.msra.mxu0 %v546
    %1443 = vmatprep.subr.mxu0 %v555
    %1444 = vmatpush1.msra.mxu0 %v554
    %1445 = vmatprep.subr.mxu0 %v563
    %1446 = vmatpush1.msra.mxu0 %v562
    %1447 = vmatprep.subr.mxu0 %v571
    %1448 = vmatpush1.msra.mxu0 %v570
    %1449 = vmatprep.subr.mxu0 %v579
    %1450 = vmatpush1.msra.mxu0 %v578
    %1451 = vmatprep.subr.mxu0 %v587
    %1452 = vmatpush1.msra.mxu0 %v586
    %1453 = vmatprep.subr.mxu0 %v595
    %1454 = vmatpush1.msra.mxu0 %v594
    %1455 = vmatprep.subr.mxu0 %v603
    %1456 = vmatpush1.msra.mxu0 %v602
    %1457 = vmatprep.subr.mxu0 %v611
    %1458 = vmatpush1.msra.mxu0 %v610
    %1459 = vmatprep.subr.mxu0 %v619
    %1460 = vmatpush1.msra.mxu0 %v618
    %1461 = vmatprep.subr.mxu0 %v627
    %1462 = vmatpush1.msra.mxu0 %v626
    %1463 = vmatprep.subr.mxu0 %v635
    %1464 = vmatpush1.msra.mxu0 %v634
    %1465 = vmatprep.subr.mxu0 %v643
    %1466 = vmatpush1.msra.mxu0 %v642
    %1467 = vmatprep.subr.mxu0 %v651
    %1468 = vmatpush1.msra.mxu0 %v650
    %1469 = vmatprep.subr.mxu0 %v659
    %1470 = vmatpush1.msra.mxu0 %v658
    %1471 = vmatprep.subr.mxu0 %v667
    %1472 = vmatpush1.msra.mxu0 %v666
    %1473 = vmatprep.subr.mxu0 %v675
    %1474 = vmatpush1.msra.mxu0 %v674
    %1475 = vmatprep.subr.mxu0 %v683
    %1476 = vmatpush1.msra.mxu0 %v682
    %1477 = vmatprep.subr.mxu0 %v691
    %1478 = vmatpush1.msra.mxu0 %v690
    %1479 = vmatprep.subr.mxu0 %v699
    %1480 = vmatpush1.msra.mxu0 %v698
    %1481 = vmatprep.subr.mxu0 %v707
    %1482 = vmatpush1.msra.mxu0 %v706
    %1483 = vmatprep.subr.mxu0 %v715
    %1484 = vmatpush1.msra.mxu0 %v714
    %1485 = vmatprep.subr.mxu0 %v723
    %1486 = vmatpush1.msra.mxu0 %v722
    %1487 = vmatprep.subr.mxu0 %v731
    %1488 = vmatpush1.msra.mxu0 %v730
    %1489 = vmatprep.subr.mxu0 %v739
    %1490 = vmatpush1.msra.mxu0 %v738
    %1491 = vmatprep.subr.mxu0 %v747
    %1492 = vmatpush1.msra.mxu0 %v746
    %1493 = vmatprep.subr.mxu0 %v755
    %1494 = vmatpush1.msra.mxu0 %v754
    %1495 = vmatprep.mubr.f32.mxu0 %v1334
    %1496 = vmatmul.mubr.f32.gmra.mrb[0].mxu0 %v1332
    %v1497 = vpop.f32.mrb[0].mxu0
    %v1498 = vadd.f32 %v1427, %v1497
    %v1499 = vpop.f32.mrb[0].mxu0
    %v1500 = vadd.f32 %v1429, %v1499
    %1501 = vdwg.mxu0
    %1502 = vmatprep.subr.mxu0 %v763
    %1503 = vmatpush1.msra.mxu0 %v762
    %1504 = vmatprep.subr.mxu0 %v771
    %1505 = vmatpush1.msra.mxu0 %v770
    %1506 = vmatprep.subr.mxu0 %v779
    %1507 = vmatpush1.msra.mxu0 %v778
    %1508 = vmatprep.subr.mxu0 %v787
    %1509 = vmatpush1.msra.mxu0 %v786
    %1510 = vmatprep.subr.mxu0 %v795
    %1511 = vmatpush1.msra.mxu0 %v794
    %1512 = vmatprep.subr.mxu0 %v803
    %1513 = vmatpush1.msra.mxu0 %v802
    %1514 = vmatprep.subr.mxu0 %v811
    %1515 = vmatpush1.msra.mxu0 %v810
    %1516 = vmatprep.subr.mxu0 %v819
    %1517 = vmatpush1.msra.mxu0 %v818
    %1518 = vmatprep.subr.mxu0 %v827
    %1519 = vmatpush1.msra.mxu0 %v826
    %1520 = vmatprep.subr.mxu0 %v835
    %1521 = vmatpush1.msra.mxu0 %v834
    %1522 = vmatprep.subr.mxu0 %v843
    %1523 = vmatpush1.msra.mxu0 %v842
    %1524 = vmatprep.subr.mxu0 %v851
    %1525 = vmatpush1.msra.mxu0 %v850
    %1526 = vmatprep.subr.mxu0 %v859
    %1527 = vmatpush1.msra.mxu0 %v858
    %1528 = vmatprep.subr.mxu0 %v867
    %1529 = vmatpush1.msra.mxu0 %v866
    %1530 = vmatprep.subr.mxu0 %v875
    %1531 = vmatpush1.msra.mxu0 %v874
    %1532 = vmatprep.subr.mxu0 %v883
    %1533 = vmatpush1.msra.mxu0 %v882
    %1534 = vmatprep.subr.mxu0 %v891
    %1535 = vmatpush1.msra.mxu0 %v890
    %1536 = vmatprep.subr.mxu0 %v899
    %1537 = vmatpush1.msra.mxu0 %v898
    %1538 = vmatprep.subr.mxu0 %v907
    %1539 = vmatpush1.msra.mxu0 %v906
    %1540 = vmatprep.subr.mxu0 %v915
    %1541 = vmatpush1.msra.mxu0 %v914
    %1542 = vmatprep.subr.mxu0 %v923
    %1543 = vmatpush1.msra.mxu0 %v922
    %1544 = vmatprep.subr.mxu0 %v931
    %1545 = vmatpush1.msra.mxu0 %v930
    %1546 = vmatprep.subr.mxu0 %v939
    %1547 = vmatpush1.msra.mxu0 %v938
    %1548 = vmatprep.subr.mxu0 %v947
    %1549 = vmatpush1.msra.mxu0 %v946
    %1550 = vmatprep.subr.mxu0 %v955
    %1551 = vmatpush1.msra.mxu0 %v954
    %1552 = vmatprep.subr.mxu0 %v963
    %1553 = vmatpush1.msra.mxu0 %v962
    %1554 = vmatprep.subr.mxu0 %v971
    %1555 = vmatpush1.msra.mxu0 %v970
    %1556 = vmatprep.subr.mxu0 %v979
    %1557 = vmatpush1.msra.mxu0 %v978
    %1558 = vmatprep.subr.mxu0 %v987
    %1559 = vmatpush1.msra.mxu0 %v986
    %1560 = vmatprep.subr.mxu0 %v995
    %1561 = vmatpush1.msra.mxu0 %v994
    %1562 = vmatprep.subr.mxu0 %v1003
    %1563 = vmatpush1.msra.mxu0 %v1002
    %1564 = vmatprep.subr.mxu0 %v1011
    %1565 = vmatpush1.msra.mxu0 %v1010
    %1566 = vmatprep.mubr.f32.mxu0 %v1350
    %1567 = vmatmul.mubr.f32.gmra.mrb[0].mxu0 %v1342
    %v1568 = vpop.f32.mrb[0].mxu0
    %v1569 = vadd.f32 %v1498, %v1568
    %v1570 = vpop.f32.mrb[0].mxu0
    %v1571 = vadd.f32 %v1500, %v1570
    %1572 = vdwg.mxu0
    %1573 = vmatprep.subr.mxu0 %v1019
    %1574 = vmatpush1.msra.mxu0 %v1018
    %1575 = vmatprep.subr.mxu0 %v1027
    %1576 = vmatpush1.msra.mxu0 %v1026
    %1577 = vmatprep.subr.mxu0 %v1035
    %1578 = vmatpush1.msra.mxu0 %v1034
    %1579 = vmatprep.subr.mxu0 %v1043
    %1580 = vmatpush1.msra.mxu0 %v1042
    %1581 = vmatprep.subr.mxu0 %v1051
    %1582 = vmatpush1.msra.mxu0 %v1050
    %1583 = vmatprep.subr.mxu0 %v1059
    %1584 = vmatpush1.msra.mxu0 %v1058
    %1585 = vmatprep.subr.mxu0 %v1067
    %1586 = vmatpush1.msra.mxu0 %v1066
    %1587 = vmatprep.subr.mxu0 %v1075
    %1588 = vmatpush1.msra.mxu0 %v1074
    %1589 = vmatprep.subr.mxu0 %v1083
    %1590 = vmatpush1.msra.mxu0 %v1082
    %1591 = vmatprep.subr.mxu0 %v1091
    %1592 = vmatpush1.msra.mxu0 %v1090
    %1593 = vmatprep.subr.mxu0 %v1099
    %1594 = vmatpush1.msra.mxu0 %v1098
    %1595 = vmatprep.subr.mxu0 %v1107
    %1596 = vmatpush1.msra.mxu0 %v1106
    %1597 = vmatprep.subr.mxu0 %v1115
    %1598 = vmatpush1.msra.mxu0 %v1114
    %1599 = vmatprep.subr.mxu0 %v1123
    %1600 = vmatpush1.msra.mxu0 %v1122
    %1601 = vmatprep.subr.mxu0 %v1131
    %1602 = vmatpush1.msra.mxu0 %v1130
    %1603 = vmatprep.subr.mxu0 %v1139
    %1604 = vmatpush1.msra.mxu0 %v1138
    %1605 = vmatprep.subr.mxu0 %v1147
    %1606 = vmatpush1.msra.mxu0 %v1146
    %1607 = vmatprep.subr.mxu0 %v1155
    %1608 = vmatpush1.msra.mxu0 %v1154
    %1609 = vmatprep.subr.mxu0 %v1163
    %1610 = vmatpush1.msra.mxu0 %v1162
    %1611 = vmatprep.subr.mxu0 %v1171
    %1612 = vmatpush1.msra.mxu0 %v1170
    %1613 = vmatprep.subr.mxu0 %v1179
    %1614 = vmatpush1.msra.mxu0 %v1178
    %1615 = vmatprep.subr.mxu0 %v1187
    %1616 = vmatpush1.msra.mxu0 %v1186
    %1617 = vmatprep.subr.mxu0 %v1195
    %1618 = vmatpush1.msra.mxu0 %v1194
    %1619 = vmatprep.subr.mxu0 %v1203
    %1620 = vmatpush1.msra.mxu0 %v1202
    %1621 = vmatprep.subr.mxu0 %v1211
    %1622 = vmatpush1.msra.mxu0 %v1210
    %1623 = vmatprep.subr.mxu0 %v1219
    %1624 = vmatpush1.msra.mxu0 %v1218
    %1625 = vmatprep.subr.mxu0 %v1227
    %1626 = vmatpush1.msra.mxu0 %v1226
    %1627 = vmatprep.subr.mxu0 %v1235
    %1628 = vmatpush1.msra.mxu0 %v1234
    %1629 = vmatprep.subr.mxu0 %v1243
    %1630 = vmatpush1.msra.mxu0 %v1242
    %1631 = vmatprep.subr.mxu0 %v1251
    %1632 = vmatpush1.msra.mxu0 %v1250
    %1633 = vmatprep.subr.mxu0 %v1259
    %1634 = vmatpush1.msra.mxu0 %v1258
    %1635 = vmatprep.subr.mxu0 %v1267
    %1636 = vmatpush1.msra.mxu0 %v1266
    %1637 = vmatprep.mubr.f32.mxu0 %v1351
    %1638 = vmatmul.mubr.f32.gmra.mrb[0].mxu0 %v1349
    %v1639 = vpop.f32.mrb[0].mxu0
    %v1640 = vadd.f32 %v1569, %v1639
    %v1641 = vpop.f32.mrb[0].mxu0
    %v1642 = vadd.f32 %v1571, %v1641
    %1643 = vdwg.mxu0
    %1644 = vmatprep.subr.mxu0 %v253
    %1645 = vmatpush1.msra.mxu0 %v252
    %1646 = vmatprep.subr.mxu0 %v261
    %1647 = vmatpush1.msra.mxu0 %v260
    %1648 = vmatprep.subr.mxu0 %v269
    %1649 = vmatpush1.msra.mxu0 %v268
    %1650 = vmatprep.subr.mxu0 %v277
    %1651 = vmatpush1.msra.mxu0 %v276
    %1652 = vmatprep.subr.mxu0 %v285
    %1653 = vmatpush1.msra.mxu0 %v284
    %1654 = vmatprep.subr.mxu0 %v293
    %1655 = vmatpush1.msra.mxu0 %v292
    %1656 = vmatprep.subr.mxu0 %v301
    %1657 = vmatpush1.msra.mxu0 %v300
    %1658 = vmatprep.subr.mxu0 %v309
    %1659 = vmatpush1.msra.mxu0 %v308
    %1660 = vmatprep.subr.mxu0 %v317
    %1661 = vmatpush1.msra.mxu0 %v316
    %1662 = vmatprep.subr.mxu0 %v325
    %1663 = vmatpush1.msra.mxu0 %v324
    %1664 = vmatprep.subr.mxu0 %v333
    %1665 = vmatpush1.msra.mxu0 %v332
    %1666 = vmatprep.subr.mxu0 %v341
    %1667 = vmatpush1.msra.mxu0 %v340
    %1668 = vmatprep.subr.mxu0 %v349
    %1669 = vmatpush1.msra.mxu0 %v348
    %1670 = vmatprep.subr.mxu0 %v357
    %1671 = vmatpush1.msra.mxu0 %v356
    %1672 = vmatprep.subr.mxu0 %v365
    %1673 = vmatpush1.msra.mxu0 %v364
    %1674 = vmatprep.subr.mxu0 %v373
    %1675 = vmatpush1.msra.mxu0 %v372
    %1676 = vmatprep.subr.mxu0 %v381
    %1677 = vmatpush1.msra.mxu0 %v380
    %1678 = vmatprep.subr.mxu0 %v389
    %1679 = vmatpush1.msra.mxu0 %v388
    %1680 = vmatprep.subr.mxu0 %v397
    %1681 = vmatpush1.msra.mxu0 %v396
    %1682 = vmatprep.subr.mxu0 %v405
    %1683 = vmatpush1.msra.mxu0 %v404
    %1684 = vmatprep.subr.mxu0 %v413
    %1685 = vmatpush1.msra.mxu0 %v412
    %1686 = vmatprep.subr.mxu0 %v421
    %1687 = vmatpush1.msra.mxu0 %v420
    %1688 = vmatprep.subr.mxu0 %v429
    %1689 = vmatpush1.msra.mxu0 %v428
    %1690 = vmatprep.subr.mxu0 %v437
    %1691 = vmatpush1.msra.mxu0 %v436
    %1692 = vmatprep.subr.mxu0 %v445
    %1693 = vmatpush1.msra.mxu0 %v444
    %1694 = vmatprep.subr.mxu0 %v453
    %1695 = vmatpush1.msra.mxu0 %v452
    %1696 = vmatprep.subr.mxu0 %v461
    %1697 = vmatpush1.msra.mxu0 %v460
    %1698 = vmatprep.subr.mxu0 %v469
    %1699 = vmatpush1.msra.mxu0 %v468
    %1700 = vmatprep.subr.mxu0 %v477
    %1701 = vmatpush1.msra.mxu0 %v476
    %1702 = vmatprep.subr.mxu0 %v485
    %1703 = vmatpush1.msra.mxu0 %v484
    %1704 = vmatprep.subr.mxu0 %v493
    %1705 = vmatpush1.msra.mxu0 %v492
    %1706 = vmatprep.subr.mxu0 %v501
    %1707 = vmatpush1.msra.mxu0 %v500
    %1708 = vmatprep.mubr.f32.mxu0 %v1333
    %1709 = vmatmul.mubr.f32.gmra.mrb[0].mxu0 %v1325
    %v1710 = vpop.f32.mrb[0].mxu0
    %v1711 = vadd.f32 %v1287, %v1710
    %v1712 = vpop.f32.mrb[0].mxu0
    %v1713 = vadd.f32 %v1291, %v1712
    %1714 = vdwg.mxu0
    %1715 = vmatprep.subr.mxu0 %v509
    %1716 = vmatpush1.msra.mxu0 %v508
    %1717 = vmatprep.subr.mxu0 %v517
    %1718 = vmatpush1.msra.mxu0 %v516
    %1719 = vmatprep.subr.mxu0 %v525
    %1720 = vmatpush1.msra.mxu0 %v524
    %1721 = vmatprep.subr.mxu0 %v533
    %1722 = vmatpush1.msra.mxu0 %v532
    %1723 = vmatprep.subr.mxu0 %v541
    %1724 = vmatpush1.msra.mxu0 %v540
    %1725 = vmatprep.subr.mxu0 %v549
    %1726 = vmatpush1.msra.mxu0 %v548
    %1727 = vmatprep.subr.mxu0 %v557
    %1728 = vmatpush1.msra.mxu0 %v556
    %1729 = vmatprep.subr.mxu0 %v565
    %1730 = vmatpush1.msra.mxu0 %v564
    %1731 = vmatprep.subr.mxu0 %v573
    %1732 = vmatpush1.msra.mxu0 %v572
    %1733 = vmatprep.subr.mxu0 %v581
    %1734 = vmatpush1.msra.mxu0 %v580
    %1735 = vmatprep.subr.mxu0 %v589
    %1736 = vmatpush1.msra.mxu0 %v588
    %1737 = vmatprep.subr.mxu0 %v597
    %1738 = vmatpush1.msra.mxu0 %v596
    %1739 = vmatprep.subr.mxu0 %v605
    %1740 = vmatpush1.msra.mxu0 %v604
    %1741 = vmatprep.subr.mxu0 %v613
    %1742 = vmatpush1.msra.mxu0 %v612
    %1743 = vmatprep.subr.mxu0 %v621
    %1744 = vmatpush1.msra.mxu0 %v620
    %1745 = vmatprep.subr.mxu0 %v629
    %1746 = vmatpush1.msra.mxu0 %v628
    %1747 = vmatprep.subr.mxu0 %v637
    %1748 = vmatpush1.msra.mxu0 %v636
    %1749 = vmatprep.subr.mxu0 %v645
    %1750 = vmatpush1.msra.mxu0 %v644
    %1751 = vmatprep.subr.mxu0 %v653
    %1752 = vmatpush1.msra.mxu0 %v652
    %1753 = vmatprep.subr.mxu0 %v661
    %1754 = vmatpush1.msra.mxu0 %v660
    %1755 = vmatprep.subr.mxu0 %v669
    %1756 = vmatpush1.msra.mxu0 %v668
    %1757 = vmatprep.subr.mxu0 %v677
    %1758 = vmatpush1.msra.mxu0 %v676
    %1759 = vmatprep.subr.mxu0 %v685
    %1760 = vmatpush1.msra.mxu0 %v684
    %1761 = vmatprep.subr.mxu0 %v693
    %1762 = vmatpush1.msra.mxu0 %v692
    %1763 = vmatprep.subr.mxu0 %v701
    %1764 = vmatpush1.msra.mxu0 %v700
    %1765 = vmatprep.subr.mxu0 %v709
    %1766 = vmatpush1.msra.mxu0 %v708
    %1767 = vmatprep.subr.mxu0 %v717
    %1768 = vmatpush1.msra.mxu0 %v716
    %1769 = vmatprep.subr.mxu0 %v725
    %1770 = vmatpush1.msra.mxu0 %v724
    %1771 = vmatprep.subr.mxu0 %v733
    %1772 = vmatpush1.msra.mxu0 %v732
    %1773 = vmatprep.subr.mxu0 %v741
    %1774 = vmatpush1.msra.mxu0 %v740
    %1775 = vmatprep.subr.mxu0 %v749
    %1776 = vmatpush1.msra.mxu0 %v748
    %1777 = vmatprep.subr.mxu0 %v757
    %1778 = vmatpush1.msra.mxu0 %v756
    %1779 = vmatprep.mubr.f32.mxu0 %v1334
    %1780 = vmatmul.mubr.f32.gmra.mrb[0].mxu0 %v1332
    %v1781 = vpop.f32.mrb[0].mxu0
    %v1782 = vadd.f32 %v1711, %v1781
    %v1783 = vpop.f32.mrb[0].mxu0
    %v1784 = vadd.f32 %v1713, %v1783
    %1785 = vdwg.mxu0
    %1786 = vmatprep.subr.mxu0 %v765
    %1787 = vmatpush1.msra.mxu0 %v764
    %1788 = vmatprep.subr.mxu0 %v773
    %1789 = vmatpush1.msra.mxu0 %v772
    %1790 = vmatprep.subr.mxu0 %v781
    %1791 = vmatpush1.msra.mxu0 %v780
    %1792 = vmatprep.subr.mxu0 %v789
    %1793 = vmatpush1.msra.mxu0 %v788
    %1794 = vmatprep.subr.mxu0 %v797
    %1795 = vmatpush1.msra.mxu0 %v796
    %1796 = vmatprep.subr.mxu0 %v805
    %1797 = vmatpush1.msra.mxu0 %v804
    %1798 = vmatprep.subr.mxu0 %v813
    %1799 = vmatpush1.msra.mxu0 %v812
    %1800 = vmatprep.subr.mxu0 %v821
    %1801 = vmatpush1.msra.mxu0 %v820
    %1802 = vmatprep.subr.mxu0 %v829
    %1803 = vmatpush1.msra.mxu0 %v828
    %1804 = vmatprep.subr.mxu0 %v837
    %1805 = vmatpush1.msra.mxu0 %v836
    %1806 = vmatprep.subr.mxu0 %v845
    %1807 = vmatpush1.msra.mxu0 %v844
    %1808 = vmatprep.subr.mxu0 %v853
    %1809 = vmatpush1.msra.mxu0 %v852
    %1810 = vmatprep.subr.mxu0 %v861
    %1811 = vmatpush1.msra.mxu0 %v860
    %1812 = vmatprep.subr.mxu0 %v869
    %1813 = vmatpush1.msra.mxu0 %v868
    %1814 = vmatprep.subr.mxu0 %v877
    %1815 = vmatpush1.msra.mxu0 %v876
    %1816 = vmatprep.subr.mxu0 %v885
    %1817 = vmatpush1.msra.mxu0 %v884
    %1818 = vmatprep.subr.mxu0 %v893
    %1819 = vmatpush1.msra.mxu0 %v892
    %1820 = vmatprep.subr.mxu0 %v901
    %1821 = vmatpush1.msra.mxu0 %v900
    %1822 = vmatprep.subr.mxu0 %v909
    %1823 = vmatpush1.msra.mxu0 %v908
    %1824 = vmatprep.subr.mxu0 %v917
    %1825 = vmatpush1.msra.mxu0 %v916
    %1826 = vmatprep.subr.mxu0 %v925
    %1827 = vmatpush1.msra.mxu0 %v924
    %1828 = vmatprep.subr.mxu0 %v933
    %1829 = vmatpush1.msra.mxu0 %v932
    %1830 = vmatprep.subr.mxu0 %v941
    %1831 = vmatpush1.msra.mxu0 %v940
    %1832 = vmatprep.subr.mxu0 %v949
    %1833 = vmatpush1.msra.mxu0 %v948
    %1834 = vmatprep.subr.mxu0 %v957
    %1835 = vmatpush1.msra.mxu0 %v956
    %1836 = vmatprep.subr.mxu0 %v965
    %1837 = vmatpush1.msra.mxu0 %v964
    %1838 = vmatprep.subr.mxu0 %v973
    %1839 = vmatpush1.msra.mxu0 %v972
    %1840 = vmatprep.subr.mxu0 %v981
    %1841 = vmatpush1.msra.mxu0 %v980
    %1842 = vmatprep.subr.mxu0 %v989
    %1843 = vmatpush1.msra.mxu0 %v988
    %1844 = vmatprep.subr.mxu0 %v997
    %1845 = vmatpush1.msra.mxu0 %v996
    %1846 = vmatprep.subr.mxu0 %v1005
    %1847 = vmatpush1.msra.mxu0 %v1004
    %1848 = vmatprep.subr.mxu0 %v1013
    %1849 = vmatpush1.msra.mxu0 %v1012
    %1850 = vmatprep.mubr.f32.mxu0 %v1350
    %1851 = vmatmul.mubr.f32.gmra.mrb[0].mxu0 %v1342
    %v1852 = vpop.f32.mrb[0].mxu0
    %v1853 = vadd.f32 %v1782, %v1852
    %v1854 = vpop.f32.mrb[0].mxu0
    %v1855 = vadd.f32 %v1784, %v1854
    %1856 = vdwg.mxu0
    %1857 = vmatprep.subr.mxu0 %v1021
    %1858 = vmatpush1.msra.mxu0 %v1020
    %1859 = vmatprep.subr.mxu0 %v1029
    %1860 = vmatpush1.msra.mxu0 %v1028
    %1861 = vmatprep.subr.mxu0 %v1037
    %1862 = vmatpush1.msra.mxu0 %v1036
    %1863 = vmatprep.subr.mxu0 %v1045
    %1864 = vmatpush1.msra.mxu0 %v1044
    %1865 = vmatprep.subr.mxu0 %v1053
    %1866 = vmatpush1.msra.mxu0 %v1052
    %1867 = vmatprep.subr.mxu0 %v1061
    %1868 = vmatpush1.msra.mxu0 %v1060
    %1869 = vmatprep.subr.mxu0 %v1069
    %1870 = vmatpush1.msra.mxu0 %v1068
    %1871 = vmatprep.subr.mxu0 %v1077
    %1872 = vmatpush1.msra.mxu0 %v1076
    %1873 = vmatprep.subr.mxu0 %v1085
    %1874 = vmatpush1.msra.mxu0 %v1084
    %1875 = vmatprep.subr.mxu0 %v1093
    %1876 = vmatpush1.msra.mxu0 %v1092
    %1877 = vmatprep.subr.mxu0 %v1101
    %1878 = vmatpush1.msra.mxu0 %v1100
    %1879 = vmatprep.subr.mxu0 %v1109
    %1880 = vmatpush1.msra.mxu0 %v1108
    %1881 = vmatprep.subr.mxu0 %v1117
    %1882 = vmatpush1.msra.mxu0 %v1116
    %1883 = vmatprep.subr.mxu0 %v1125
    %1884 = vmatpush1.msra.mxu0 %v1124
    %1885 = vmatprep.subr.mxu0 %v1133
    %1886 = vmatpush1.msra.mxu0 %v1132
    %1887 = vmatprep.subr.mxu0 %v1141
    %1888 = vmatpush1.msra.mxu0 %v1140
    %1889 = vmatprep.subr.mxu0 %v1149
    %1890 = vmatpush1.msra.mxu0 %v1148
    %1891 = vmatprep.subr.mxu0 %v1157
    %1892 = vmatpush1.msra.mxu0 %v1156
    %1893 = vmatprep.subr.mxu0 %v1165
    %1894 = vmatpush1.msra.mxu0 %v1164
    %1895 = vmatprep.subr.mxu0 %v1173
    %1896 = vmatpush1.msra.mxu0 %v1172
    %1897 = vmatprep.subr.mxu0 %v1181
    %1898 = vmatpush1.msra.mxu0 %v1180
    %1899 = vmatprep.subr.mxu0 %v1189
    %1900 = vmatpush1.msra.mxu0 %v1188
    %1901 = vmatprep.subr.mxu0 %v1197
    %1902 = vmatpush1.msra.mxu0 %v1196
    %1903 = vmatprep.subr.mxu0 %v1205
    %1904 = vmatpush1.msra.mxu0 %v1204
    %1905 = vmatprep.subr.mxu0 %v1213
    %1906 = vmatpush1.msra.mxu0 %v1212
    %1907 = vmatprep.subr.mxu0 %v1221
    %1908 = vmatpush1.msra.mxu0 %v1220
    %1909 = vmatprep.subr.mxu0 %v1229
    %1910 = vmatpush1.msra.mxu0 %v1228
    %1911 = vmatprep.subr.mxu0 %v1237
    %1912 = vmatpush1.msra.mxu0 %v1236
    %1913 = vmatprep.subr.mxu0 %v1245
    %1914 = vmatpush1.msra.mxu0 %v1244
    %1915 = vmatprep.subr.mxu0 %v1253
    %1916 = vmatpush1.msra.mxu0 %v1252
    %1917 = vmatprep.subr.mxu0 %v1261
    %1918 = vmatpush1.msra.mxu0 %v1260
    %1919 = vmatprep.subr.mxu0 %v1269
    %1920 = vmatpush1.msra.mxu0 %v1268
    %1921 = vmatprep.mubr.f32.mxu0 %v1351
    %1922 = vmatmul.mubr.f32.gmra.mrb[0].mxu0 %v1349
    %v1923 = vpop.f32.mrb[0].mxu0
    %v1924 = vadd.f32 %v1853, %v1923
    %v1925 = vpop.f32.mrb[0].mxu0
    %v1926 = vadd.f32 %v1855, %v1925
    %1927 = vdwg.mxu0
    %1928 = vmatprep.subr.mxu0 %v255
    %1929 = vmatpush1.msra.mxu0 %v254
    %1930 = vmatprep.subr.mxu0 %v263
    %1931 = vmatpush1.msra.mxu0 %v262
    %1932 = vmatprep.subr.mxu0 %v271
    %1933 = vmatpush1.msra.mxu0 %v270
    %1934 = vmatprep.subr.mxu0 %v279
    %1935 = vmatpush1.msra.mxu0 %v278
    %1936 = vmatprep.subr.mxu0 %v287
    %1937 = vmatpush1.msra.mxu0 %v286
    %1938 = vmatprep.subr.mxu0 %v295
    %1939 = vmatpush1.msra.mxu0 %v294
    %1940 = vmatprep.subr.mxu0 %v303
    %1941 = vmatpush1.msra.mxu0 %v302
    %1942 = vmatprep.subr.mxu0 %v311
    %1943 = vmatpush1.msra.mxu0 %v310
    %1944 = vmatprep.subr.mxu0 %v319
    %1945 = vmatpush1.msra.mxu0 %v318
    %1946 = vmatprep.subr.mxu0 %v327
    %1947 = vmatpush1.msra.mxu0 %v326
    %1948 = vmatprep.subr.mxu0 %v335
    %1949 = vmatpush1.msra.mxu0 %v334
    %1950 = vmatprep.subr.mxu0 %v343
    %1951 = vmatpush1.msra.mxu0 %v342
    %1952 = vmatprep.subr.mxu0 %v351
    %1953 = vmatpush1.msra.mxu0 %v350
    %1954 = vmatprep.subr.mxu0 %v359
    %1955 = vmatpush1.msra.mxu0 %v358
    %1956 = vmatprep.subr.mxu0 %v367
    %1957 = vmatpush1.msra.mxu0 %v366
    %1958 = vmatprep.subr.mxu0 %v375
    %1959 = vmatpush1.msra.mxu0 %v374
    %1960 = vmatprep.subr.mxu0 %v383
    %1961 = vmatpush1.msra.mxu0 %v382
    %1962 = vmatprep.subr.mxu0 %v391
    %1963 = vmatpush1.msra.mxu0 %v390
    %1964 = vmatprep.subr.mxu0 %v399
    %1965 = vmatpush1.msra.mxu0 %v398
    %1966 = vmatprep.subr.mxu0 %v407
    %1967 = vmatpush1.msra.mxu0 %v406
    %1968 = vmatprep.subr.mxu0 %v415
    %1969 = vmatpush1.msra.mxu0 %v414
    %1970 = vmatprep.subr.mxu0 %v423
    %1971 = vmatpush1.msra.mxu0 %v422
    %1972 = vmatprep.subr.mxu0 %v431
    %1973 = vmatpush1.msra.mxu0 %v430
    %1974 = vmatprep.subr.mxu0 %v439
    %1975 = vmatpush1.msra.mxu0 %v438
    %1976 = vmatprep.subr.mxu0 %v447
    %1977 = vmatpush1.msra.mxu0 %v446
    %1978 = vmatprep.subr.mxu0 %v455
    %1979 = vmatpush1.msra.mxu0 %v454
    %1980 = vmatprep.subr.mxu0 %v463
    %1981 = vmatpush1.msra.mxu0 %v462
    %1982 = vmatprep.subr.mxu0 %v471
    %1983 = vmatpush1.msra.mxu0 %v470
    %1984 = vmatprep.subr.mxu0 %v479
    %1985 = vmatpush1.msra.mxu0 %v478
    %1986 = vmatprep.subr.mxu0 %v487
    %1987 = vmatpush1.msra.mxu0 %v486
    %1988 = vmatprep.subr.mxu0 %v495
    %1989 = vmatpush1.msra.mxu0 %v494
    %1990 = vmatprep.subr.mxu0 %v503
    %1991 = vmatpush1.msra.mxu0 %v502
    %1992 = vmatprep.mubr.f32.mxu0 %v1333
    %1993 = vmatmul.mubr.f32.gmra.mrb[0].mxu0 %v1325
    %v1994 = vpop.f32.mrb[0].mxu0
    %v1995 = vadd.f32 %v1295, %v1994
    %v1996 = vpop.f32.mrb[0].mxu0
    %v1997 = vadd.f32 %v1299, %v1996
    %1998 = vdwg.mxu0
    %1999 = vmatprep.subr.mxu0 %v511
    %2000 = vmatpush1.msra.mxu0 %v510
    %2001 = vmatprep.subr.mxu0 %v519
    %2002 = vmatpush1.msra.mxu0 %v518
    %2003 = vmatprep.subr.mxu0 %v527
    %2004 = vmatpush1.msra.mxu0 %v526
    %2005 = vmatprep.subr.mxu0 %v535
    %2006 = vmatpush1.msra.mxu0 %v534
    %2007 = vmatprep.subr.mxu0 %v543
    %2008 = vmatpush1.msra.mxu0 %v542
    %2009 = vmatprep.subr.mxu0 %v551
    %2010 = vmatpush1.msra.mxu0 %v550
    %2011 = vmatprep.subr.mxu0 %v559
    %2012 = vmatpush1.msra.mxu0 %v558
    %2013 = vmatprep.subr.mxu0 %v567
    %2014 = vmatpush1.msra.mxu0 %v566
    %2015 = vmatprep.subr.mxu0 %v575
    %2016 = vmatpush1.msra.mxu0 %v574
    %2017 = vmatprep.subr.mxu0 %v583
    %2018 = vmatpush1.msra.mxu0 %v582
    %2019 = vmatprep.subr.mxu0 %v591
    %2020 = vmatpush1.msra.mxu0 %v590
    %2021 = vmatprep.subr.mxu0 %v599
    %2022 = vmatpush1.msra.mxu0 %v598
    %2023 = vmatprep.subr.mxu0 %v607
    %2024 = vmatpush1.msra.mxu0 %v606
    %2025 = vmatprep.subr.mxu0 %v615
    %2026 = vmatpush1.msra.mxu0 %v614
    %2027 = vmatprep.subr.mxu0 %v623
    %2028 = vmatpush1.msra.mxu0 %v622
    %2029 = vmatprep.subr.mxu0 %v631
    %2030 = vmatpush1.msra.mxu0 %v630
    %2031 = vmatprep.subr.mxu0 %v639
    %2032 = vmatpush1.msra.mxu0 %v638
    %2033 = vmatprep.subr.mxu0 %v647
    %2034 = vmatpush1.msra.mxu0 %v646
    %2035 = vmatprep.subr.mxu0 %v655
    %2036 = vmatpush1.msra.mxu0 %v654
    %2037 = vmatprep.subr.mxu0 %v663
    %2038 = vmatpush1.msra.mxu0 %v662
    %2039 = vmatprep.subr.mxu0 %v671
    %2040 = vmatpush1.msra.mxu0 %v670
    %2041 = vmatprep.subr.mxu0 %v679
    %2042 = vmatpush1.msra.mxu0 %v678
    %2043 = vmatprep.subr.mxu0 %v687
    %2044 = vmatpush1.msra.mxu0 %v686
    %2045 = vmatprep.subr.mxu0 %v695
    %2046 = vmatpush1.msra.mxu0 %v694
    %2047 = vmatprep.subr.mxu0 %v703
    %2048 = vmatpush1.msra.mxu0 %v702
    %2049 = vmatprep.subr.mxu0 %v711
    %2050 = vmatpush1.msra.mxu0 %v710
    %2051 = vmatprep.subr.mxu0 %v719
    %2052 = vmatpush1.msra.mxu0 %v718
    %2053 = vmatprep.subr.mxu0 %v727
    %2054 = vmatpush1.msra.mxu0 %v726
    %2055 = vmatprep.subr.mxu0 %v735
    %2056 = vmatpush1.msra.mxu0 %v734
    %2057 = vmatprep.subr.mxu0 %v743
    %2058 = vmatpush1.msra.mxu0 %v742
    %2059 = vmatprep.subr.mxu0 %v751
    %2060 = vmatpush1.msra.mxu0 %v750
    %2061 = vmatprep.subr.mxu0 %v759
    %2062 = vmatpush1.msra.mxu0 %v758
    %2063 = vmatprep.mubr.f32.mxu0 %v1334
    %2064 = vmatmul.mubr.f32.gmra.mrb[0].mxu0 %v1332
    %v2065 = vpop.f32.mrb[0].mxu0
    %v2066 = vadd.f32 %v1995, %v2065
    %v2067 = vpop.f32.mrb[0].mxu0
    %v2068 = vadd.f32 %v1997, %v2067
    %2069 = vdwg.mxu0
    %2070 = vmatprep.subr.mxu0 %v767
    %2071 = vmatpush1.msra.mxu0 %v766
    %2072 = vmatprep.subr.mxu0 %v775
    %2073 = vmatpush1.msra.mxu0 %v774
    %2074 = vmatprep.subr.mxu0 %v783
    %2075 = vmatpush1.msra.mxu0 %v782
    %2076 = vmatprep.subr.mxu0 %v791
    %2077 = vmatpush1.msra.mxu0 %v790
    %2078 = vmatprep.subr.mxu0 %v799
    %2079 = vmatpush1.msra.mxu0 %v798
    %2080 = vmatprep.subr.mxu0 %v807
    %2081 = vmatpush1.msra.mxu0 %v806
    %2082 = vmatprep.subr.mxu0 %v815
    %2083 = vmatpush1.msra.mxu0 %v814
    %2084 = vmatprep.subr.mxu0 %v823
    %2085 = vmatpush1.msra.mxu0 %v822
    %2086 = vmatprep.subr.mxu0 %v831
    %2087 = vmatpush1.msra.mxu0 %v830
    %2088 = vmatprep.subr.mxu0 %v839
    %2089 = vmatpush1.msra.mxu0 %v838
    %2090 = vmatprep.subr.mxu0 %v847
    %2091 = vmatpush1.msra.mxu0 %v846
    %2092 = vmatprep.subr.mxu0 %v855
    %2093 = vmatpush1.msra.mxu0 %v854
    %2094 = vmatprep.subr.mxu0 %v863
    %2095 = vmatpush1.msra.mxu0 %v862
    %2096 = vmatprep.subr.mxu0 %v871
    %2097 = vmatpush1.msra.mxu0 %v870
    %2098 = vmatprep.subr.mxu0 %v879
    %2099 = vmatpush1.msra.mxu0 %v878
    %2100 = vmatprep.subr.mxu0 %v887
    %2101 = vmatpush1.msra.mxu0 %v886
    %2102 = vmatprep.subr.mxu0 %v895
    %2103 = vmatpush1.msra.mxu0 %v894
    %2104 = vmatprep.subr.mxu0 %v903
    %2105 = vmatpush1.msra.mxu0 %v902
    %2106 = vmatprep.subr.mxu0 %v911
    %2107 = vmatpush1.msra.mxu0 %v910
    %2108 = vmatprep.subr.mxu0 %v919
    %2109 = vmatpush1.msra.mxu0 %v918
    %2110 = vmatprep.subr.mxu0 %v927
    %2111 = vmatpush1.msra.mxu0 %v926
    %2112 = vmatprep.subr.mxu0 %v935
    %2113 = vmatpush1.msra.mxu0 %v934
    %2114 = vmatprep.subr.mxu0 %v943
    %2115 = vmatpush1.msra.mxu0 %v942
    %2116 = vmatprep.subr.mxu0 %v951
    %2117 = vmatpush1.msra.mxu0 %v950
    %2118 = vmatprep.subr.mxu0 %v959
    %2119 = vmatpush1.msra.mxu0 %v958
    %2120 = vmatprep.subr.mxu0 %v967
    %2121 = vmatpush1.msra.mxu0 %v966
    %2122 = vmatprep.subr.mxu0 %v975
    %2123 = vmatpush1.msra.mxu0 %v974
    %2124 = vmatprep.subr.mxu0 %v983
    %2125 = vmatpush1.msra.mxu0 %v982
    %2126 = vmatprep.subr.mxu0 %v991
    %2127 = vmatpush1.msra.mxu0 %v990
    %2128 = vmatprep.subr.mxu0 %v999
    %2129 = vmatpush1.msra.mxu0 %v998
    %2130 = vmatprep.subr.mxu0 %v1007
    %2131 = vmatpush1.msra.mxu0 %v1006
    %2132 = vmatprep.subr.mxu0 %v1015
    %2133 = vmatpush1.msra.mxu0 %v1014
    %2134 = vmatprep.mubr.f32.mxu0 %v1350
    %2135 = vmatmul.mubr.f32.gmra.mrb[0].mxu0 %v1342
    %v2136 = vpop.f32.mrb[0].mxu0
    %v2137 = vadd.f32 %v2066, %v2136
    %v2138 = vpop.f32.mrb[0].mxu0
    %v2139 = vadd.f32 %v2068, %v2138
    %2140 = vdwg.mxu0
    %2141 = vmatprep.subr.mxu0 %v1023
    %2142 = vmatpush1.msra.mxu0 %v1022
    %2143 = vmatprep.subr.mxu0 %v1031
    %2144 = vmatpush1.msra.mxu0 %v1030
    %2145 = vmatprep.subr.mxu0 %v1039
    %2146 = vmatpush1.msra.mxu0 %v1038
    %2147 = vmatprep.subr.mxu0 %v1047
    %2148 = vmatpush1.msra.mxu0 %v1046
    %2149 = vmatprep.subr.mxu0 %v1055
    %2150 = vmatpush1.msra.mxu0 %v1054
    %2151 = vmatprep.subr.mxu0 %v1063
    %2152 = vmatpush1.msra.mxu0 %v1062
    %2153 = vmatprep.subr.mxu0 %v1071
    %2154 = vmatpush1.msra.mxu0 %v1070
    %2155 = vmatprep.subr.mxu0 %v1079
    %2156 = vmatpush1.msra.mxu0 %v1078
    %2157 = vmatprep.subr.mxu0 %v1087
    %2158 = vmatpush1.msra.mxu0 %v1086
    %2159 = vmatprep.subr.mxu0 %v1095
    %2160 = vmatpush1.msra.mxu0 %v1094
    %2161 = vmatprep.subr.mxu0 %v1103
    %2162 = vmatpush1.msra.mxu0 %v1102
    %2163 = vmatprep.subr.mxu0 %v1111
    %2164 = vmatpush1.msra.mxu0 %v1110
    %2165 = vmatprep.subr.mxu0 %v1119
    %2166 = vmatpush1.msra.mxu0 %v1118
    %2167 = vmatprep.subr.mxu0 %v1127
    %2168 = vmatpush1.msra.mxu0 %v1126
    %2169 = vmatprep.subr.mxu0 %v1135
    %2170 = vmatpush1.msra.mxu0 %v1134
    %2171 = vmatprep.subr.mxu0 %v1143
    %2172 = vmatpush1.msra.mxu0 %v1142
    %2173 = vmatprep.subr.mxu0 %v1151
    %2174 = vmatpush1.msra.mxu0 %v1150
    %2175 = vmatprep.subr.mxu0 %v1159
    %2176 = vmatpush1.msra.mxu0 %v1158
    %2177 = vmatprep.subr.mxu0 %v1167
    %2178 = vmatpush1.msra.mxu0 %v1166
    %2179 = vmatprep.subr.mxu0 %v1175
    %2180 = vmatpush1.msra.mxu0 %v1174
    %2181 = vmatprep.subr.mxu0 %v1183
    %2182 = vmatpush1.msra.mxu0 %v1182
    %2183 = vmatprep.subr.mxu0 %v1191
    %2184 = vmatpush1.msra.mxu0 %v1190
    %2185 = vmatprep.subr.mxu0 %v1199
    %2186 = vmatpush1.msra.mxu0 %v1198
    %2187 = vmatprep.subr.mxu0 %v1207
    %2188 = vmatpush1.msra.mxu0 %v1206
    %2189 = vmatprep.subr.mxu0 %v1215
    %2190 = vmatpush1.msra.mxu0 %v1214
    %2191 = vmatprep.subr.mxu0 %v1223
    %2192 = vmatpush1.msra.mxu0 %v1222
    %2193 = vmatprep.subr.mxu0 %v1231
    %2194 = vmatpush1.msra.mxu0 %v1230
    %2195 = vmatprep.subr.mxu0 %v1239
    %2196 = vmatpush1.msra.mxu0 %v1238
    %2197 = vmatprep.subr.mxu0 %v1247
    %2198 = vmatpush1.msra.mxu0 %v1246
    %2199 = vmatprep.subr.mxu0 %v1255
    %2200 = vmatpush1.msra.mxu0 %v1254
    %2201 = vmatprep.subr.mxu0 %v1263
    %2202 = vmatpush1.msra.mxu0 %v1262
    %2203 = vmatprep.subr.mxu0 %v1271
    %2204 = vmatpush1.msra.mxu0 %v1270
    %2205 = vmatprep.mubr.f32.mxu0 %v1351
    %2206 = vmatmul.mubr.f32.gmra.mrb[0].mxu0 %v1349
    %v2207 = vpop.f32.mrb[0].mxu0
    %v2208 = vadd.f32 %v2137, %v2207
    %v2209 = vpop.f32.mrb[0].mxu0
    %v2210 = vadd.f32 %v2139, %v2209
    %2211 = vdwg.mxu0
    %2212 = vmatprep.subr.mxu0 %v257
    %2213 = vmatpush1.msra.mxu0 %v256
    %2214 = vmatprep.subr.mxu0 %v265
    %2215 = vmatpush1.msra.mxu0 %v264
    %2216 = vmatprep.subr.mxu0 %v273
    %2217 = vmatpush1.msra.mxu0 %v272
    %2218 = vmatprep.subr.mxu0 %v281
    %2219 = vmatpush1.msra.mxu0 %v280
    %2220 = vmatprep.subr.mxu0 %v289
    %2221 = vmatpush1.msra.mxu0 %v288
    %2222 = vmatprep.subr.mxu0 %v297
    %2223 = vmatpush1.msra.mxu0 %v296
    %2224 = vmatprep.subr.mxu0 %v305
    %2225 = vmatpush1.msra.mxu0 %v304
    %2226 = vmatprep.subr.mxu0 %v313
    %2227 = vmatpush1.msra.mxu0 %v312
    %2228 = vmatprep.subr.mxu0 %v321
    %2229 = vmatpush1.msra.mxu0 %v320
    %2230 = vmatprep.subr.mxu0 %v329
    %2231 = vmatpush1.msra.mxu0 %v328
    %2232 = vmatprep.subr.mxu0 %v337
    %2233 = vmatpush1.msra.mxu0 %v336
    %2234 = vmatprep.subr.mxu0 %v345
    %2235 = vmatpush1.msra.mxu0 %v344
    %2236 = vmatprep.subr.mxu0 %v353
    %2237 = vmatpush1.msra.mxu0 %v352
    %2238 = vmatprep.subr.mxu0 %v361
    %2239 = vmatpush1.msra.mxu0 %v360
    %2240 = vmatprep.subr.mxu0 %v369
    %2241 = vmatpush1.msra.mxu0 %v368
    %2242 = vmatprep.subr.mxu0 %v377
    %2243 = vmatpush1.msra.mxu0 %v376
    %2244 = vmatprep.subr.mxu0 %v385
    %2245 = vmatpush1.msra.mxu0 %v384
    %2246 = vmatprep.subr.mxu0 %v393
    %2247 = vmatpush1.msra.mxu0 %v392
    %2248 = vmatprep.subr.mxu0 %v401
    %2249 = vmatpush1.msra.mxu0 %v400
    %2250 = vmatprep.subr.mxu0 %v409
    %2251 = vmatpush1.msra.mxu0 %v408
    %2252 = vmatprep.subr.mxu0 %v417
    %2253 = vmatpush1.msra.mxu0 %v416
    %2254 = vmatprep.subr.mxu0 %v425
    %2255 = vmatpush1.msra.mxu0 %v424
    %2256 = vmatprep.subr.mxu0 %v433
    %2257 = vmatpush1.msra.mxu0 %v432
    %2258 = vmatprep.subr.mxu0 %v441
    %2259 = vmatpush1.msra.mxu0 %v440
    %2260 = vmatprep.subr.mxu0 %v449
    %2261 = vmatpush1.msra.mxu0 %v448
    %2262 = vmatprep.subr.mxu0 %v457
    %2263 = vmatpush1.msra.mxu0 %v456
    %2264 = vmatprep.subr.mxu0 %v465
    %2265 = vmatpush1.msra.mxu0 %v464
    %2266 = vmatprep.subr.mxu0 %v473
    %2267 = vmatpush1.msra.mxu0 %v472
    %2268 = vmatprep.subr.mxu0 %v481
    %2269 = vmatpush1.msra.mxu0 %v480
    %2270 = vmatprep.subr.mxu0 %v489
    %2271 = vmatpush1.msra.mxu0 %v488
    %2272 = vmatprep.subr.mxu0 %v497
    %2273 = vmatpush1.msra.mxu0 %v496
    %2274 = vmatprep.subr.mxu0 %v505
    %2275 = vmatpush1.msra.mxu0 %v504
    %2276 = vmatprep.mubr.f32.mxu0 %v1333
    %2277 = vmatmul.mubr.f32.gmra.mrb[0].mxu0 %v1325
    %v2278 = vpop.f32.mrb[0].mxu0
    %v2279 = vadd.f32 %v1303, %v2278
    %v2280 = vpop.f32.mrb[0].mxu0
    %v2281 = vadd.f32 %v1307, %v2280
    %2282 = vdwg.mxu0
    %2283 = vmatprep.subr.mxu0 %v513
    %2284 = vmatpush1.msra.mxu0 %v512
    %2285 = vmatprep.subr.mxu0 %v521
    %2286 = vmatpush1.msra.mxu0 %v520
    %2287 = vmatprep.subr.mxu0 %v529
    %2288 = vmatpush1.msra.mxu0 %v528
    %2289 = vmatprep.subr.mxu0 %v537
    %2290 = vmatpush1.msra.mxu0 %v536
    %2291 = vmatprep.subr.mxu0 %v545
    %2292 = vmatpush1.msra.mxu0 %v544
    %2293 = vmatprep.subr.mxu0 %v553
    %2294 = vmatpush1.msra.mxu0 %v552
    %2295 = vmatprep.subr.mxu0 %v561
    %2296 = vmatpush1.msra.mxu0 %v560
    %2297 = vmatprep.subr.mxu0 %v569
    %2298 = vmatpush1.msra.mxu0 %v568
    %2299 = vmatprep.subr.mxu0 %v577
    %2300 = vmatpush1.msra.mxu0 %v576
    %2301 = vmatprep.subr.mxu0 %v585
    %2302 = vmatpush1.msra.mxu0 %v584
    %2303 = vmatprep.subr.mxu0 %v593
    %2304 = vmatpush1.msra.mxu0 %v592
    %2305 = vmatprep.subr.mxu0 %v601
    %2306 = vmatpush1.msra.mxu0 %v600
    %2307 = vmatprep.subr.mxu0 %v609
    %2308 = vmatpush1.msra.mxu0 %v608
    %2309 = vmatprep.subr.mxu0 %v617
    %2310 = vmatpush1.msra.mxu0 %v616
    %2311 = vmatprep.subr.mxu0 %v625
    %2312 = vmatpush1.msra.mxu0 %v624
    %2313 = vmatprep.subr.mxu0 %v633
    %2314 = vmatpush1.msra.mxu0 %v632
    %2315 = vmatprep.subr.mxu0 %v641
    %2316 = vmatpush1.msra.mxu0 %v640
    %2317 = vmatprep.subr.mxu0 %v649
    %2318 = vmatpush1.msra.mxu0 %v648
    %2319 = vmatprep.subr.mxu0 %v657
    %2320 = vmatpush1.msra.mxu0 %v656
    %2321 = vmatprep.subr.mxu0 %v665
    %2322 = vmatpush1.msra.mxu0 %v664
    %2323 = vmatprep.subr.mxu0 %v673
    %2324 = vmatpush1.msra.mxu0 %v672
    %2325 = vmatprep.subr.mxu0 %v681
    %2326 = vmatpush1.msra.mxu0 %v680
    %2327 = vmatprep.subr.mxu0 %v689
    %2328 = vmatpush1.msra.mxu0 %v688
    %2329 = vmatprep.subr.mxu0 %v697
    %2330 = vmatpush1.msra.mxu0 %v696
    %2331 = vmatprep.subr.mxu0 %v705
    %2332 = vmatpush1.msra.mxu0 %v704
    %2333 = vmatprep.subr.mxu0 %v713
    %2334 = vmatpush1.msra.mxu0 %v712
    %2335 = vmatprep.subr.mxu0 %v721
    %2336 = vmatpush1.msra.mxu0 %v720
    %2337 = vmatprep.subr.mxu0 %v729
    %2338 = vmatpush1.msra.mxu0 %v728
    %2339 = vmatprep.subr.mxu0 %v737
    %2340 = vmatpush1.msra.mxu0 %v736
    %2341 = vmatprep.subr.mxu0 %v745
    %2342 = vmatpush1.msra.mxu0 %v744
    %2343 = vmatprep.subr.mxu0 %v753
    %2344 = vmatpush1.msra.mxu0 %v752
    %2345 = vmatprep.subr.mxu0 %v761
    %2346 = vmatpush1.msra.mxu0 %v760
    %2347 = vmatprep.mubr.f32.mxu0 %v1334
    %2348 = vmatmul.mubr.f32.gmra.mrb[0].mxu0 %v1332
    %v2349 = vpop.f32.mrb[0].mxu0
    %v2350 = vadd.f32 %v2279, %v2349
    %v2351 = vpop.f32.mrb[0].mxu0
    %v2352 = vadd.f32 %v2281, %v2351
    %2353 = vdwg.mxu0
    %2354 = vmatprep.subr.mxu0 %v769
    %2355 = vmatpush1.msra.mxu0 %v768
    %2356 = vmatprep.subr.mxu0 %v777
    %2357 = vmatpush1.msra.mxu0 %v776
    %2358 = vmatprep.subr.mxu0 %v785
    %2359 = vmatpush1.msra.mxu0 %v784
    %2360 = vmatprep.subr.mxu0 %v793
    %2361 = vmatpush1.msra.mxu0 %v792
    %2362 = vmatprep.subr.mxu0 %v801
    %2363 = vmatpush1.msra.mxu0 %v800
    %2364 = vmatprep.subr.mxu0 %v809
    %2365 = vmatpush1.msra.mxu0 %v808
    %2366 = vmatprep.subr.mxu0 %v817
    %2367 = vmatpush1.msra.mxu0 %v816
    %2368 = vmatprep.subr.mxu0 %v825
    %2369 = vmatpush1.msra.mxu0 %v824
    %2370 = vmatprep.subr.mxu0 %v833
    %2371 = vmatpush1.msra.mxu0 %v832
    %2372 = vmatprep.subr.mxu0 %v841
    %2373 = vmatpush1.msra.mxu0 %v840
    %2374 = vmatprep.subr.mxu0 %v849
    %2375 = vmatpush1.msra.mxu0 %v848
    %2376 = vmatprep.subr.mxu0 %v857
    %2377 = vmatpush1.msra.mxu0 %v856
    %2378 = vmatprep.subr.mxu0 %v865
    %2379 = vmatpush1.msra.mxu0 %v864
    %2380 = vmatprep.subr.mxu0 %v873
    %2381 = vmatpush1.msra.mxu0 %v872
    %2382 = vmatprep.subr.mxu0 %v881
    %2383 = vmatpush1.msra.mxu0 %v880
    %2384 = vmatprep.subr.mxu0 %v889
    %2385 = vmatpush1.msra.mxu0 %v888
    %2386 = vmatprep.subr.mxu0 %v897
    %2387 = vmatpush1.msra.mxu0 %v896
    %2388 = vmatprep.subr.mxu0 %v905
    %2389 = vmatpush1.msra.mxu0 %v904
    %2390 = vmatprep.subr.mxu0 %v913
    %2391 = vmatpush1.msra.mxu0 %v912
    %2392 = vmatprep.subr.mxu0 %v921
    %2393 = vmatpush1.msra.mxu0 %v920
    %2394 = vmatprep.subr.mxu0 %v929
    %2395 = vmatpush1.msra.mxu0 %v928
    %2396 = vmatprep.subr.mxu0 %v937
    %2397 = vmatpush1.msra.mxu0 %v936
    %2398 = vmatprep.subr.mxu0 %v945
    %2399 = vmatpush1.msra.mxu0 %v944
    %2400 = vmatprep.subr.mxu0 %v953
    %2401 = vmatpush1.msra.mxu0 %v952
    %2402 = vmatprep.subr.mxu0 %v961
    %2403 = vmatpush1.msra.mxu0 %v960
    %2404 = vmatprep.subr.mxu0 %v969
    %2405 = vmatpush1.msra.mxu0 %v968
    %2406 = vmatprep.subr.mxu0 %v977
    %2407 = vmatpush1.msra.mxu0 %v976
    %2408 = vmatprep.subr.mxu0 %v985
    %2409 = vmatpush1.msra.mxu0 %v984
    %2410 = vmatprep.subr.mxu0 %v993
    %2411 = vmatpush1.msra.mxu0 %v992
    %2412 = vmatprep.subr.mxu0 %v1001
    %2413 = vmatpush1.msra.mxu0 %v1000
    %2414 = vmatprep.subr.mxu0 %v1009
    %2415 = vmatpush1.msra.mxu0 %v1008
    %2416 = vmatprep.subr.mxu0 %v1017
    %2417 = vmatpush1.msra.mxu0 %v1016
    %2418 = vmatprep.mubr.f32.mxu0 %v1350
    %2419 = vmatmul.mubr.f32.gmra.mrb[0].mxu0 %v1342
    %v2420 = vpop.f32.mrb[0].mxu0
    %v2421 = vadd.f32 %v2350, %v2420
    %v2422 = vpop.f32.mrb[0].mxu0
    %v2423 = vadd.f32 %v2352, %v2422
    %2424 = vdwg.mxu0
    %2425 = vmatprep.subr.mxu0 %v1025
    %2426 = vmatpush1.msra.mxu0 %v1024
    %2427 = vmatprep.subr.mxu0 %v1033
    %2428 = vmatpush1.msra.mxu0 %v1032
    %2429 = vmatprep.subr.mxu0 %v1041
    %2430 = vmatpush1.msra.mxu0 %v1040
    %2431 = vmatprep.subr.mxu0 %v1049
    %2432 = vmatpush1.msra.mxu0 %v1048
    %2433 = vmatprep.subr.mxu0 %v1057
    %2434 = vmatpush1.msra.mxu0 %v1056
    %2435 = vmatprep.subr.mxu0 %v1065
    %2436 = vmatpush1.msra.mxu0 %v1064
    %2437 = vmatprep.subr.mxu0 %v1073
    %2438 = vmatpush1.msra.mxu0 %v1072
    %2439 = vmatprep.subr.mxu0 %v1081
    %2440 = vmatpush1.msra.mxu0 %v1080
    %2441 = vmatprep.subr.mxu0 %v1089
    %2442 = vmatpush1.msra.mxu0 %v1088
    %2443 = vmatprep.subr.mxu0 %v1097
    %2444 = vmatpush1.msra.mxu0 %v1096
    %2445 = vmatprep.subr.mxu0 %v1105
    %2446 = vmatpush1.msra.mxu0 %v1104
    %2447 = vmatprep.subr.mxu0 %v1113
    %2448 = vmatpush1.msra.mxu0 %v1112
    %2449 = vmatprep.subr.mxu0 %v1121
    %2450 = vmatpush1.msra.mxu0 %v1120
    %2451 = vmatprep.subr.mxu0 %v1129
    %2452 = vmatpush1.msra.mxu0 %v1128
    %2453 = vmatprep.subr.mxu0 %v1137
    %2454 = vmatpush1.msra.mxu0 %v1136
    %2455 = vmatprep.subr.mxu0 %v1145
    %2456 = vmatpush1.msra.mxu0 %v1144
    %2457 = vmatprep.subr.mxu0 %v1153
    %2458 = vmatpush1.msra.mxu0 %v1152
    %2459 = vmatprep.subr.mxu0 %v1161
    %2460 = vmatpush1.msra.mxu0 %v1160
    %2461 = vmatprep.subr.mxu0 %v1169
    %2462 = vmatpush1.msra.mxu0 %v1168
    %2463 = vmatprep.subr.mxu0 %v1177
    %2464 = vmatpush1.msra.mxu0 %v1176
    %2465 = vmatprep.subr.mxu0 %v1185
    %2466 = vmatpush1.msra.mxu0 %v1184
    %2467 = vmatprep.subr.mxu0 %v1193
    %2468 = vmatpush1.msra.mxu0 %v1192
    %2469 = vmatprep.subr.mxu0 %v1201
    %2470 = vmatpush1.msra.mxu0 %v1200
    %2471 = vmatprep.subr.mxu0 %v1209
    %2472 = vmatpush1.msra.mxu0 %v1208
    %2473 = vmatprep.subr.mxu0 %v1217
    %2474 = vmatpush1.msra.mxu0 %v1216
    %2475 = vmatprep.subr.mxu0 %v1225
    %2476 = vmatpush1.msra.mxu0 %v1224
    %2477 = vmatprep.subr.mxu0 %v1233
    %2478 = vmatpush1.msra.mxu0 %v1232
    %2479 = vmatprep.subr.mxu0 %v1241
    %2480 = vmatpush1.msra.mxu0 %v1240
    %2481 = vmatprep.subr.mxu0 %v1249
    %2482 = vmatpush1.msra.mxu0 %v1248
    %2483 = vmatprep.subr.mxu0 %v1257
    %2484 = vmatpush1.msra.mxu0 %v1256
    %2485 = vmatprep.subr.mxu0 %v1265
    %2486 = vmatpush1.msra.mxu0 %v1264
    %2487 = vmatprep.subr.mxu0 %v1273
    %2488 = vmatpush1.msra.mxu0 %v1272
    %2489 = vmatprep.mubr.f32.mxu0 %v1351
    %2490 = vmatmul.mubr.f32.gmra.mrb[0].mxu0 %v1349
    %v2491 = vpop.f32.mrb[0].mxu0
    %v2492 = vadd.f32 %v2421, %v2491
    %v2493 = vpop.f32.mrb[0].mxu0
    %v2494 = vadd.f32 %v2423, %v2493
    %2495 = vdwg.mxu0
    %v2496 = vmax.f32 %v1640, 0.0
    %v2497 = vmax.f32 %v1642, 0.0
    %v2498 = vmax.f32 %v1924, 0.0
    %v2499 = vmax.f32 %v1926, 0.0
    %v2500 = vmax.f32 %v2208, 0.0
    %v2501 = vmax.f32 %v2210, 0.0
    %v2502 = vmax.f32 %v2492, 0.0
    %v2503 = vmax.f32 %v2494, 0.0
    %v2504 = vld [vmem:[#allocation8] sm:$0xff]
    %v2505 = vld [vmem:[#allocation8 + $0x8] sm:$0xff]
    %v2506 = vld [vmem:[#allocation8 + $0x10] sm:$0xff]
    %v2507 = vld [vmem:[#allocation8 + $0x18] sm:$0xff]
    %v2508 = vld [vmem:[#allocation8 + $0x20] sm:$0xff]
    %v2509 = vld [vmem:[#allocation8 + $0x28] sm:$0xff]
    %v2510 = vld [vmem:[#allocation8 + $0x30] sm:$0xff]
    %v2511 = vld [vmem:[#allocation8 + $0x38] sm:$0xff]
    %v2512 = vld [vmem:[#allocation8 + $0x40] sm:$0xff]
    %v2513 = vld [vmem:[#allocation8 + $0x48] sm:$0xff]
    %v2514 = vld [vmem:[#allocation8 + $0x50] sm:$0xff]
    %v2515 = vld [vmem:[#allocation8 + $0x58] sm:$0xff]
    %v2516 = vld [vmem:[#allocation8 + $0x60] sm:$0xff]
    %v2517 = vld [vmem:[#allocation8 + $0x68] sm:$0xff]
    %v2518 = vld [vmem:[#allocation8 + $0x70] sm:$0xff]
    %v2519 = vld [vmem:[#allocation8 + $0x78] sm:$0xff]
    %v2520 = vld [vmem:[#allocation8 + $0x80] sm:$0xff]
    %v2521 = vld [vmem:[#allocation8 + $0x88] sm:$0xff]
    %v2522 = vld [vmem:[#allocation8 + $0x90] sm:$0xff]
    %v2523 = vld [vmem:[#allocation8 + $0x98] sm:$0xff]
    %v2524 = vld [vmem:[#allocation8 + $0xa0] sm:$0xff]
    %v2525 = vld [vmem:[#allocation8 + $0xa8] sm:$0xff]
    %v2526 = vld [vmem:[#allocation8 + $0xb0] sm:$0xff]
    %v2527 = vld [vmem:[#allocation8 + $0xb8] sm:$0xff]
    %v2528 = vld [vmem:[#allocation8 + $0xc0] sm:$0xff]
    %v2529 = vld [vmem:[#allocation8 + $0xc8] sm:$0xff]
    %v2530 = vld [vmem:[#allocation8 + $0xd0] sm:$0xff]
    %v2531 = vld [vmem:[#allocation8 + $0xd8] sm:$0xff]
    %v2532 = vld [vmem:[#allocation8 + $0xe0] sm:$0xff]
    %v2533 = vld [vmem:[#allocation8 + $0xe8] sm:$0xff]
    %v2534 = vld [vmem:[#allocation8 + $0xf0] sm:$0xff]
    %v2535 = vld [vmem:[#allocation8 + $0xf8] sm:$0xff]
    %v2536 = vld [vmem:[#allocation8 + $0x100] sm:$0xff]
    %v2537 = vld [vmem:[#allocation8 + $0x108] sm:$0xff]
    %v2538 = vld [vmem:[#allocation8 + $0x110] sm:$0xff]
    %v2539 = vld [vmem:[#allocation8 + $0x118] sm:$0xff]
    %v2540 = vld [vmem:[#allocation8 + $0x120] sm:$0xff]
    %v2541 = vld [vmem:[#allocation8 + $0x128] sm:$0xff]
    %v2542 = vld [vmem:[#allocation8 + $0x130] sm:$0xff]
    %v2543 = vld [vmem:[#allocation8 + $0x138] sm:$0xff]
    %v2544 = vld [vmem:[#allocation8 + $0x140] sm:$0xff]
    %v2545 = vld [vmem:[#allocation8 + $0x148] sm:$0xff]
    %v2546 = vld [vmem:[#allocation8 + $0x150] sm:$0xff]
    %v2547 = vld [vmem:[#allocation8 + $0x158] sm:$0xff]
    %v2548 = vld [vmem:[#allocation8 + $0x160] sm:$0xff]
    %v2549 = vld [vmem:[#allocation8 + $0x168] sm:$0xff]
    %v2550 = vld [vmem:[#allocation8 + $0x170] sm:$0xff]
    %v2551 = vld [vmem:[#allocation8 + $0x178] sm:$0xff]
    %v2552 = vld [vmem:[#allocation8 + $0x180] sm:$0xff]
    %v2553 = vld [vmem:[#allocation8 + $0x188] sm:$0xff]
    %v2554 = vld [vmem:[#allocation8 + $0x190] sm:$0xff]
    %v2555 = vld [vmem:[#allocation8 + $0x198] sm:$0xff]
    %v2556 = vld [vmem:[#allocation8 + $0x1a0] sm:$0xff]
    %v2557 = vld [vmem:[#allocation8 + $0x1a8] sm:$0xff]
    %v2558 = vld [vmem:[#allocation8 + $0x1b0] sm:$0xff]
    %v2559 = vld [vmem:[#allocation8 + $0x1b8] sm:$0xff]
    %v2560 = vld [vmem:[#allocation8 + $0x1c0] sm:$0xff]
    %v2561 = vld [vmem:[#allocation8 + $0x1c8] sm:$0xff]
    %v2562 = vld [vmem:[#allocation8 + $0x1d0] sm:$0xff]
    %v2563 = vld [vmem:[#allocation8 + $0x1d8] sm:$0xff]
    %v2564 = vld [vmem:[#allocation8 + $0x1e0] sm:$0xff]
    %v2565 = vld [vmem:[#allocation8 + $0x1e8] sm:$0xff]
    %v2566 = vld [vmem:[#allocation8 + $0x1f0] sm:$0xff]
    %v2567 = vld [vmem:[#allocation8 + $0x1f8] sm:$0xff]
    %v2568 = vld [vmem:[#allocation8 + $0x200] sm:$0xff]
    %v2569 = vld [vmem:[#allocation8 + $0x208] sm:$0xff]
    %v2570 = vld [vmem:[#allocation8 + $0x210] sm:$0xff]
    %v2571 = vld [vmem:[#allocation8 + $0x218] sm:$0xff]
    %v2572 = vld [vmem:[#allocation8 + $0x220] sm:$0xff]
    %v2573 = vld [vmem:[#allocation8 + $0x228] sm:$0xff]
    %v2574 = vld [vmem:[#allocation8 + $0x230] sm:$0xff]
    %v2575 = vld [vmem:[#allocation8 + $0x238] sm:$0xff]
    %v2576 = vld [vmem:[#allocation8 + $0x240] sm:$0xff]
    %v2577 = vld [vmem:[#allocation8 + $0x248] sm:$0xff]
    %v2578 = vld [vmem:[#allocation8 + $0x250] sm:$0xff]
    %v2579 = vld [vmem:[#allocation8 + $0x258] sm:$0xff]
    %v2580 = vld [vmem:[#allocation8 + $0x260] sm:$0xff]
    %v2581 = vld [vmem:[#allocation8 + $0x268] sm:$0xff]
    %v2582 = vld [vmem:[#allocation8 + $0x270] sm:$0xff]
    %v2583 = vld [vmem:[#allocation8 + $0x278] sm:$0xff]
    %v2584 = vld [vmem:[#allocation8 + $0x280] sm:$0xff]
    %v2585 = vld [vmem:[#allocation8 + $0x288] sm:$0xff]
    %v2586 = vld [vmem:[#allocation8 + $0x290] sm:$0xff]
    %v2587 = vld [vmem:[#allocation8 + $0x298] sm:$0xff]
    %v2588 = vld [vmem:[#allocation8 + $0x2a0] sm:$0xff]
    %v2589 = vld [vmem:[#allocation8 + $0x2a8] sm:$0xff]
    %v2590 = vld [vmem:[#allocation8 + $0x2b0] sm:$0xff]
    %v2591 = vld [vmem:[#allocation8 + $0x2b8] sm:$0xff]
    %v2592 = vld [vmem:[#allocation8 + $0x2c0] sm:$0xff]
    %v2593 = vld [vmem:[#allocation8 + $0x2c8] sm:$0xff]
    %v2594 = vld [vmem:[#allocation8 + $0x2d0] sm:$0xff]
    %v2595 = vld [vmem:[#allocation8 + $0x2d8] sm:$0xff]
    %v2596 = vld [vmem:[#allocation8 + $0x2e0] sm:$0xff]
    %v2597 = vld [vmem:[#allocation8 + $0x2e8] sm:$0xff]
    %v2598 = vld [vmem:[#allocation8 + $0x2f0] sm:$0xff]
    %v2599 = vld [vmem:[#allocation8 + $0x2f8] sm:$0xff]
    %v2600 = vld [vmem:[#allocation8 + $0x300] sm:$0xff]
    %v2601 = vld [vmem:[#allocation8 + $0x308] sm:$0xff]
    %v2602 = vld [vmem:[#allocation8 + $0x310] sm:$0xff]
    %v2603 = vld [vmem:[#allocation8 + $0x318] sm:$0xff]
    %v2604 = vld [vmem:[#allocation8 + $0x320] sm:$0xff]
    %v2605 = vld [vmem:[#allocation8 + $0x328] sm:$0xff]
    %v2606 = vld [vmem:[#allocation8 + $0x330] sm:$0xff]
    %v2607 = vld [vmem:[#allocation8 + $0x338] sm:$0xff]
    %v2608 = vld [vmem:[#allocation8 + $0x340] sm:$0xff]
    %v2609 = vld [vmem:[#allocation8 + $0x348] sm:$0xff]
    %v2610 = vld [vmem:[#allocation8 + $0x350] sm:$0xff]
    %v2611 = vld [vmem:[#allocation8 + $0x358] sm:$0xff]
    %v2612 = vld [vmem:[#allocation8 + $0x360] sm:$0xff]
    %v2613 = vld [vmem:[#allocation8 + $0x368] sm:$0xff]
    %v2614 = vld [vmem:[#allocation8 + $0x370] sm:$0xff]
    %v2615 = vld [vmem:[#allocation8 + $0x378] sm:$0xff]
    %v2616 = vld [vmem:[#allocation8 + $0x380] sm:$0xff]
    %v2617 = vld [vmem:[#allocation8 + $0x388] sm:$0xff]
    %v2618 = vld [vmem:[#allocation8 + $0x390] sm:$0xff]
    %v2619 = vld [vmem:[#allocation8 + $0x398] sm:$0xff]
    %v2620 = vld [vmem:[#allocation8 + $0x3a0] sm:$0xff]
    %v2621 = vld [vmem:[#allocation8 + $0x3a8] sm:$0xff]
    %v2622 = vld [vmem:[#allocation8 + $0x3b0] sm:$0xff]
    %v2623 = vld [vmem:[#allocation8 + $0x3b8] sm:$0xff]
    %v2624 = vld [vmem:[#allocation8 + $0x3c0] sm:$0xff]
    %v2625 = vld [vmem:[#allocation8 + $0x3c8] sm:$0xff]
    %v2626 = vld [vmem:[#allocation8 + $0x3d0] sm:$0xff]
    %v2627 = vld [vmem:[#allocation8 + $0x3d8] sm:$0xff]
    %v2628 = vld [vmem:[#allocation8 + $0x3e0] sm:$0xff]
    %v2629 = vld [vmem:[#allocation8 + $0x3e8] sm:$0xff]
    %v2630 = vld [vmem:[#allocation8 + $0x3f0] sm:$0xff]
    %v2631 = vld [vmem:[#allocation8 + $0x3f8] sm:$0xff]
    %v2632 = vld [vmem:[#allocation8 + $0x400] sm:$0xff]
    %v2633 = vld [vmem:[#allocation8 + $0x408] sm:$0xff]
    %v2634 = vld [vmem:[#allocation8 + $0x410] sm:$0xff]
    %v2635 = vld [vmem:[#allocation8 + $0x418] sm:$0xff]
    %v2636 = vld [vmem:[#allocation8 + $0x420] sm:$0xff]
    %v2637 = vld [vmem:[#allocation8 + $0x428] sm:$0xff]
    %v2638 = vld [vmem:[#allocation8 + $0x430] sm:$0xff]
    %v2639 = vld [vmem:[#allocation8 + $0x438] sm:$0xff]
    %v2640 = vld [vmem:[#allocation8 + $0x440] sm:$0xff]
    %v2641 = vld [vmem:[#allocation8 + $0x448] sm:$0xff]
    %v2642 = vld [vmem:[#allocation8 + $0x450] sm:$0xff]
    %v2643 = vld [vmem:[#allocation8 + $0x458] sm:$0xff]
    %v2644 = vld [vmem:[#allocation8 + $0x460] sm:$0xff]
    %v2645 = vld [vmem:[#allocation8 + $0x468] sm:$0xff]
    %v2646 = vld [vmem:[#allocation8 + $0x470] sm:$0xff]
    %v2647 = vld [vmem:[#allocation8 + $0x478] sm:$0xff]
    %v2648 = vld [vmem:[#allocation8 + $0x480] sm:$0xff]
    %v2649 = vld [vmem:[#allocation8 + $0x488] sm:$0xff]
    %v2650 = vld [vmem:[#allocation8 + $0x490] sm:$0xff]
    %v2651 = vld [vmem:[#allocation8 + $0x498] sm:$0xff]
    %v2652 = vld [vmem:[#allocation8 + $0x4a0] sm:$0xff]
    %v2653 = vld [vmem:[#allocation8 + $0x4a8] sm:$0xff]
    %v2654 = vld [vmem:[#allocation8 + $0x4b0] sm:$0xff]
    %v2655 = vld [vmem:[#allocation8 + $0x4b8] sm:$0xff]
    %v2656 = vld [vmem:[#allocation8 + $0x4c0] sm:$0xff]
    %v2657 = vld [vmem:[#allocation8 + $0x4c8] sm:$0xff]
    %v2658 = vld [vmem:[#allocation8 + $0x4d0] sm:$0xff]
    %v2659 = vld [vmem:[#allocation8 + $0x4d8] sm:$0xff]
    %v2660 = vld [vmem:[#allocation8 + $0x4e0] sm:$0xff]
    %v2661 = vld [vmem:[#allocation8 + $0x4e8] sm:$0xff]
    %v2662 = vld [vmem:[#allocation8 + $0x4f0] sm:$0xff]
    %v2663 = vld [vmem:[#allocation8 + $0x4f8] sm:$0xff]
    %v2664 = vld [vmem:[#allocation8 + $0x500] sm:$0xff]
    %v2665 = vld [vmem:[#allocation8 + $0x508] sm:$0xff]
    %v2666 = vld [vmem:[#allocation8 + $0x510] sm:$0xff]
    %v2667 = vld [vmem:[#allocation8 + $0x518] sm:$0xff]
    %v2668 = vld [vmem:[#allocation8 + $0x520] sm:$0xff]
    %v2669 = vld [vmem:[#allocation8 + $0x528] sm:$0xff]
    %v2670 = vld [vmem:[#allocation8 + $0x530] sm:$0xff]
    %v2671 = vld [vmem:[#allocation8 + $0x538] sm:$0xff]
    %v2672 = vld [vmem:[#allocation8 + $0x540] sm:$0xff]
    %v2673 = vld [vmem:[#allocation8 + $0x548] sm:$0xff]
    %v2674 = vld [vmem:[#allocation8 + $0x550] sm:$0xff]
    %v2675 = vld [vmem:[#allocation8 + $0x558] sm:$0xff]
    %v2676 = vld [vmem:[#allocation8 + $0x560] sm:$0xff]
    %v2677 = vld [vmem:[#allocation8 + $0x568] sm:$0xff]
    %v2678 = vld [vmem:[#allocation8 + $0x570] sm:$0xff]
    %v2679 = vld [vmem:[#allocation8 + $0x578] sm:$0xff]
    %v2680 = vld [vmem:[#allocation8 + $0x580] sm:$0xff]
    %v2681 = vld [vmem:[#allocation8 + $0x588] sm:$0xff]
    %v2682 = vld [vmem:[#allocation8 + $0x590] sm:$0xff]
    %v2683 = vld [vmem:[#allocation8 + $0x598] sm:$0xff]
    %v2684 = vld [vmem:[#allocation8 + $0x5a0] sm:$0xff]
    %v2685 = vld [vmem:[#allocation8 + $0x5a8] sm:$0xff]
    %v2686 = vld [vmem:[#allocation8 + $0x5b0] sm:$0xff]
    %v2687 = vld [vmem:[#allocation8 + $0x5b8] sm:$0xff]
    %v2688 = vld [vmem:[#allocation8 + $0x5c0] sm:$0xff]
    %v2689 = vld [vmem:[#allocation8 + $0x5c8] sm:$0xff]
    %v2690 = vld [vmem:[#allocation8 + $0x5d0] sm:$0xff]
    %v2691 = vld [vmem:[#allocation8 + $0x5d8] sm:$0xff]
    %v2692 = vld [vmem:[#allocation8 + $0x5e0] sm:$0xff]
    %v2693 = vld [vmem:[#allocation8 + $0x5e8] sm:$0xff]
    %v2694 = vld [vmem:[#allocation8 + $0x5f0] sm:$0xff]
    %v2695 = vld [vmem:[#allocation8 + $0x5f8] sm:$0xff]
    %v2696 = vld [vmem:[#allocation8 + $0x600] sm:$0xff]
    %v2697 = vld [vmem:[#allocation8 + $0x608] sm:$0xff]
    %v2698 = vld [vmem:[#allocation8 + $0x610] sm:$0xff]
    %v2699 = vld [vmem:[#allocation8 + $0x618] sm:$0xff]
    %v2700 = vld [vmem:[#allocation8 + $0x620] sm:$0xff]
    %v2701 = vld [vmem:[#allocation8 + $0x628] sm:$0xff]
    %v2702 = vld [vmem:[#allocation8 + $0x630] sm:$0xff]
    %v2703 = vld [vmem:[#allocation8 + $0x638] sm:$0xff]
    %v2704 = vld [vmem:[#allocation8 + $0x640] sm:$0xff]
    %v2705 = vld [vmem:[#allocation8 + $0x648] sm:$0xff]
    %v2706 = vld [vmem:[#allocation8 + $0x650] sm:$0xff]
    %v2707 = vld [vmem:[#allocation8 + $0x658] sm:$0xff]
    %v2708 = vld [vmem:[#allocation8 + $0x660] sm:$0xff]
    %v2709 = vld [vmem:[#allocation8 + $0x668] sm:$0xff]
    %v2710 = vld [vmem:[#allocation8 + $0x670] sm:$0xff]
    %v2711 = vld [vmem:[#allocation8 + $0x678] sm:$0xff]
    %v2712 = vld [vmem:[#allocation8 + $0x680] sm:$0xff]
    %v2713 = vld [vmem:[#allocation8 + $0x688] sm:$0xff]
    %v2714 = vld [vmem:[#allocation8 + $0x690] sm:$0xff]
    %v2715 = vld [vmem:[#allocation8 + $0x698] sm:$0xff]
    %v2716 = vld [vmem:[#allocation8 + $0x6a0] sm:$0xff]
    %v2717 = vld [vmem:[#allocation8 + $0x6a8] sm:$0xff]
    %v2718 = vld [vmem:[#allocation8 + $0x6b0] sm:$0xff]
    %v2719 = vld [vmem:[#allocation8 + $0x6b8] sm:$0xff]
    %v2720 = vld [vmem:[#allocation8 + $0x6c0] sm:$0xff]
    %v2721 = vld [vmem:[#allocation8 + $0x6c8] sm:$0xff]
    %v2722 = vld [vmem:[#allocation8 + $0x6d0] sm:$0xff]
    %v2723 = vld [vmem:[#allocation8 + $0x6d8] sm:$0xff]
    %v2724 = vld [vmem:[#allocation8 + $0x6e0] sm:$0xff]
    %v2725 = vld [vmem:[#allocation8 + $0x6e8] sm:$0xff]
    %v2726 = vld [vmem:[#allocation8 + $0x6f0] sm:$0xff]
    %v2727 = vld [vmem:[#allocation8 + $0x6f8] sm:$0xff]
    %v2728 = vld [vmem:[#allocation8 + $0x700] sm:$0xff]
    %v2729 = vld [vmem:[#allocation8 + $0x708] sm:$0xff]
    %v2730 = vld [vmem:[#allocation8 + $0x710] sm:$0xff]
    %v2731 = vld [vmem:[#allocation8 + $0x718] sm:$0xff]
    %v2732 = vld [vmem:[#allocation8 + $0x720] sm:$0xff]
    %v2733 = vld [vmem:[#allocation8 + $0x728] sm:$0xff]
    %v2734 = vld [vmem:[#allocation8 + $0x730] sm:$0xff]
    %v2735 = vld [vmem:[#allocation8 + $0x738] sm:$0xff]
    %v2736 = vld [vmem:[#allocation8 + $0x740] sm:$0xff]
    %v2737 = vld [vmem:[#allocation8 + $0x748] sm:$0xff]
    %v2738 = vld [vmem:[#allocation8 + $0x750] sm:$0xff]
    %v2739 = vld [vmem:[#allocation8 + $0x758] sm:$0xff]
    %v2740 = vld [vmem:[#allocation8 + $0x760] sm:$0xff]
    %v2741 = vld [vmem:[#allocation8 + $0x768] sm:$0xff]
    %v2742 = vld [vmem:[#allocation8 + $0x770] sm:$0xff]
    %v2743 = vld [vmem:[#allocation8 + $0x778] sm:$0xff]
    %v2744 = vld [vmem:[#allocation8 + $0x780] sm:$0xff]
    %v2745 = vld [vmem:[#allocation8 + $0x788] sm:$0xff]
    %v2746 = vld [vmem:[#allocation8 + $0x790] sm:$0xff]
    %v2747 = vld [vmem:[#allocation8 + $0x798] sm:$0xff]
    %v2748 = vld [vmem:[#allocation8 + $0x7a0] sm:$0xff]
    %v2749 = vld [vmem:[#allocation8 + $0x7a8] sm:$0xff]
    %v2750 = vld [vmem:[#allocation8 + $0x7b0] sm:$0xff]
    %v2751 = vld [vmem:[#allocation8 + $0x7b8] sm:$0xff]
    %v2752 = vld [vmem:[#allocation8 + $0x7c0] sm:$0xff]
    %v2753 = vld [vmem:[#allocation8 + $0x7c8] sm:$0xff]
    %v2754 = vld [vmem:[#allocation8 + $0x7d0] sm:$0xff]
    %v2755 = vld [vmem:[#allocation8 + $0x7d8] sm:$0xff]
    %v2756 = vld [vmem:[#allocation8 + $0x7e0] sm:$0xff]
    %v2757 = vld [vmem:[#allocation8 + $0x7e8] sm:$0xff]
    %v2758 = vld [vmem:[#allocation8 + $0x7f0] sm:$0xff]
    %v2759 = vld [vmem:[#allocation8 + $0x7f8] sm:$0xff]
    %v2760 = vld [vmem:[#allocation8 + $0x800] sm:$0xff]
    %v2761 = vld [vmem:[#allocation8 + $0x808] sm:$0xff]
    %v2762 = vld [vmem:[#allocation8 + $0x810] sm:$0xff]
    %v2763 = vld [vmem:[#allocation8 + $0x818] sm:$0xff]
    %v2764 = vld [vmem:[#allocation8 + $0x820] sm:$0xff]
    %v2765 = vld [vmem:[#allocation8 + $0x828] sm:$0xff]
    %v2766 = vld [vmem:[#allocation8 + $0x830] sm:$0xff]
    %v2767 = vld [vmem:[#allocation8 + $0x838] sm:$0xff]
    %v2768 = vld [vmem:[#allocation8 + $0x840] sm:$0xff]
    %v2769 = vld [vmem:[#allocation8 + $0x848] sm:$0xff]
    %v2770 = vld [vmem:[#allocation8 + $0x850] sm:$0xff]
    %v2771 = vld [vmem:[#allocation8 + $0x858] sm:$0xff]
    %v2772 = vld [vmem:[#allocation8 + $0x860] sm:$0xff]
    %v2773 = vld [vmem:[#allocation8 + $0x868] sm:$0xff]
    %v2774 = vld [vmem:[#allocation8 + $0x870] sm:$0xff]
    %v2775 = vld [vmem:[#allocation8 + $0x878] sm:$0xff]
    %v2776 = vld [vmem:[#allocation8 + $0x880] sm:$0xff]
    %v2777 = vld [vmem:[#allocation8 + $0x888] sm:$0xff]
    %v2778 = vld [vmem:[#allocation8 + $0x890] sm:$0xff]
    %v2779 = vld [vmem:[#allocation8 + $0x898] sm:$0xff]
    %v2780 = vld [vmem:[#allocation8 + $0x8a0] sm:$0xff]
    %v2781 = vld [vmem:[#allocation8 + $0x8a8] sm:$0xff]
    %v2782 = vld [vmem:[#allocation8 + $0x8b0] sm:$0xff]
    %v2783 = vld [vmem:[#allocation8 + $0x8b8] sm:$0xff]
    %v2784 = vld [vmem:[#allocation8 + $0x8c0] sm:$0xff]
    %v2785 = vld [vmem:[#allocation8 + $0x8c8] sm:$0xff]
    %v2786 = vld [vmem:[#allocation8 + $0x8d0] sm:$0xff]
    %v2787 = vld [vmem:[#allocation8 + $0x8d8] sm:$0xff]
    %v2788 = vld [vmem:[#allocation8 + $0x8e0] sm:$0xff]
    %v2789 = vld [vmem:[#allocation8 + $0x8e8] sm:$0xff]
    %v2790 = vld [vmem:[#allocation8 + $0x8f0] sm:$0xff]
    %v2791 = vld [vmem:[#allocation8 + $0x8f8] sm:$0xff]
    %v2792 = vld [vmem:[#allocation8 + $0x900] sm:$0xff]
    %v2793 = vld [vmem:[#allocation8 + $0x908] sm:$0xff]
    %v2794 = vld [vmem:[#allocation8 + $0x910] sm:$0xff]
    %v2795 = vld [vmem:[#allocation8 + $0x918] sm:$0xff]
    %v2796 = vld [vmem:[#allocation8 + $0x920] sm:$0xff]
    %v2797 = vld [vmem:[#allocation8 + $0x928] sm:$0xff]
    %v2798 = vld [vmem:[#allocation8 + $0x930] sm:$0xff]
    %v2799 = vld [vmem:[#allocation8 + $0x938] sm:$0xff]
    %v2800 = vld [vmem:[#allocation8 + $0x940] sm:$0xff]
    %v2801 = vld [vmem:[#allocation8 + $0x948] sm:$0xff]
    %v2802 = vld [vmem:[#allocation8 + $0x950] sm:$0xff]
    %v2803 = vld [vmem:[#allocation8 + $0x958] sm:$0xff]
    %v2804 = vld [vmem:[#allocation8 + $0x960] sm:$0xff]
    %v2805 = vld [vmem:[#allocation8 + $0x968] sm:$0xff]
    %v2806 = vld [vmem:[#allocation8 + $0x970] sm:$0xff]
    %v2807 = vld [vmem:[#allocation8 + $0x978] sm:$0xff]
    %v2808 = vld [vmem:[#allocation8 + $0x980] sm:$0xff]
    %v2809 = vld [vmem:[#allocation8 + $0x988] sm:$0xff]
    %v2810 = vld [vmem:[#allocation8 + $0x990] sm:$0xff]
    %v2811 = vld [vmem:[#allocation8 + $0x998] sm:$0xff]
    %v2812 = vld [vmem:[#allocation8 + $0x9a0] sm:$0xff]
    %v2813 = vld [vmem:[#allocation8 + $0x9a8] sm:$0xff]
    %v2814 = vld [vmem:[#allocation8 + $0x9b0] sm:$0xff]
    %v2815 = vld [vmem:[#allocation8 + $0x9b8] sm:$0xff]
    %v2816 = vld [vmem:[#allocation8 + $0x9c0] sm:$0xff]
    %v2817 = vld [vmem:[#allocation8 + $0x9c8] sm:$0xff]
    %v2818 = vld [vmem:[#allocation8 + $0x9d0] sm:$0xff]
    %v2819 = vld [vmem:[#allocation8 + $0x9d8] sm:$0xff]
    %v2820 = vld [vmem:[#allocation8 + $0x9e0] sm:$0xff]
    %v2821 = vld [vmem:[#allocation8 + $0x9e8] sm:$0xff]
    %v2822 = vld [vmem:[#allocation8 + $0x9f0] sm:$0xff]
    %v2823 = vld [vmem:[#allocation8 + $0x9f8] sm:$0xff]
    %v2824 = vld [vmem:[#allocation8 + $0xa00] sm:$0xff]
    %v2825 = vld [vmem:[#allocation8 + $0xa08] sm:$0xff]
    %v2826 = vld [vmem:[#allocation8 + $0xa10] sm:$0xff]
    %v2827 = vld [vmem:[#allocation8 + $0xa18] sm:$0xff]
    %v2828 = vld [vmem:[#allocation8 + $0xa20] sm:$0xff]
    %v2829 = vld [vmem:[#allocation8 + $0xa28] sm:$0xff]
    %v2830 = vld [vmem:[#allocation8 + $0xa30] sm:$0xff]
    %v2831 = vld [vmem:[#allocation8 + $0xa38] sm:$0xff]
    %v2832 = vld [vmem:[#allocation8 + $0xa40] sm:$0xff]
    %v2833 = vld [vmem:[#allocation8 + $0xa48] sm:$0xff]
    %v2834 = vld [vmem:[#allocation8 + $0xa50] sm:$0xff]
    %v2835 = vld [vmem:[#allocation8 + $0xa58] sm:$0xff]
    %v2836 = vld [vmem:[#allocation8 + $0xa60] sm:$0xff]
    %v2837 = vld [vmem:[#allocation8 + $0xa68] sm:$0xff]
    %v2838 = vld [vmem:[#allocation8 + $0xa70] sm:$0xff]
    %v2839 = vld [vmem:[#allocation8 + $0xa78] sm:$0xff]
    %v2840 = vld [vmem:[#allocation8 + $0xa80] sm:$0xff]
    %v2841 = vld [vmem:[#allocation8 + $0xa88] sm:$0xff]
    %v2842 = vld [vmem:[#allocation8 + $0xa90] sm:$0xff]
    %v2843 = vld [vmem:[#allocation8 + $0xa98] sm:$0xff]
    %v2844 = vld [vmem:[#allocation8 + $0xaa0] sm:$0xff]
    %v2845 = vld [vmem:[#allocation8 + $0xaa8] sm:$0xff]
    %v2846 = vld [vmem:[#allocation8 + $0xab0] sm:$0xff]
    %v2847 = vld [vmem:[#allocation8 + $0xab8] sm:$0xff]
    %v2848 = vld [vmem:[#allocation8 + $0xac0] sm:$0xff]
    %v2849 = vld [vmem:[#allocation8 + $0xac8] sm:$0xff]
    %v2850 = vld [vmem:[#allocation8 + $0xad0] sm:$0xff]
    %v2851 = vld [vmem:[#allocation8 + $0xad8] sm:$0xff]
    %v2852 = vld [vmem:[#allocation8 + $0xae0] sm:$0xff]
    %v2853 = vld [vmem:[#allocation8 + $0xae8] sm:$0xff]
    %v2854 = vld [vmem:[#allocation8 + $0xaf0] sm:$0xff]
    %v2855 = vld [vmem:[#allocation8 + $0xaf8] sm:$0xff]
    %v2856 = vld [vmem:[#allocation8 + $0xb00] sm:$0xff]
    %v2857 = vld [vmem:[#allocation8 + $0xb08] sm:$0xff]
    %v2858 = vld [vmem:[#allocation8 + $0xb10] sm:$0xff]
    %v2859 = vld [vmem:[#allocation8 + $0xb18] sm:$0xff]
    %v2860 = vld [vmem:[#allocation8 + $0xb20] sm:$0xff]
    %v2861 = vld [vmem:[#allocation8 + $0xb28] sm:$0xff]
    %v2862 = vld [vmem:[#allocation8 + $0xb30] sm:$0xff]
    %v2863 = vld [vmem:[#allocation8 + $0xb38] sm:$0xff]
    %v2864 = vld [vmem:[#allocation8 + $0xb40] sm:$0xff]
    %v2865 = vld [vmem:[#allocation8 + $0xb48] sm:$0xff]
    %v2866 = vld [vmem:[#allocation8 + $0xb50] sm:$0xff]
    %v2867 = vld [vmem:[#allocation8 + $0xb58] sm:$0xff]
    %v2868 = vld [vmem:[#allocation8 + $0xb60] sm:$0xff]
    %v2869 = vld [vmem:[#allocation8 + $0xb68] sm:$0xff]
    %v2870 = vld [vmem:[#allocation8 + $0xb70] sm:$0xff]
    %v2871 = vld [vmem:[#allocation8 + $0xb78] sm:$0xff]
    %v2872 = vld [vmem:[#allocation8 + $0xb80] sm:$0xff]
    %v2873 = vld [vmem:[#allocation8 + $0xb88] sm:$0xff]
    %v2874 = vld [vmem:[#allocation8 + $0xb90] sm:$0xff]
    %v2875 = vld [vmem:[#allocation8 + $0xb98] sm:$0xff]
    %v2876 = vld [vmem:[#allocation8 + $0xba0] sm:$0xff]
    %v2877 = vld [vmem:[#allocation8 + $0xba8] sm:$0xff]
    %v2878 = vld [vmem:[#allocation8 + $0xbb0] sm:$0xff]
    %v2879 = vld [vmem:[#allocation8 + $0xbb8] sm:$0xff]
    %v2880 = vld [vmem:[#allocation8 + $0xbc0] sm:$0xff]
    %v2881 = vld [vmem:[#allocation8 + $0xbc8] sm:$0xff]
    %v2882 = vld [vmem:[#allocation8 + $0xbd0] sm:$0xff]
    %v2883 = vld [vmem:[#allocation8 + $0xbd8] sm:$0xff]
    %v2884 = vld [vmem:[#allocation8 + $0xbe0] sm:$0xff]
    %v2885 = vld [vmem:[#allocation8 + $0xbe8] sm:$0xff]
    %v2886 = vld [vmem:[#allocation8 + $0xbf0] sm:$0xff]
    %v2887 = vld [vmem:[#allocation8 + $0xbf8] sm:$0xff]
    %v2888 = vld [vmem:[#allocation8 + $0xc00] sm:$0xff]
    %v2889 = vld [vmem:[#allocation8 + $0xc08] sm:$0xff]
    %v2890 = vld [vmem:[#allocation8 + $0xc10] sm:$0xff]
    %v2891 = vld [vmem:[#allocation8 + $0xc18] sm:$0xff]
    %v2892 = vld [vmem:[#allocation8 + $0xc20] sm:$0xff]
    %v2893 = vld [vmem:[#allocation8 + $0xc28] sm:$0xff]
    %v2894 = vld [vmem:[#allocation8 + $0xc30] sm:$0xff]
    %v2895 = vld [vmem:[#allocation8 + $0xc38] sm:$0xff]
    %v2896 = vld [vmem:[#allocation8 + $0xc40] sm:$0xff]
    %v2897 = vld [vmem:[#allocation8 + $0xc48] sm:$0xff]
    %v2898 = vld [vmem:[#allocation8 + $0xc50] sm:$0xff]
    %v2899 = vld [vmem:[#allocation8 + $0xc58] sm:$0xff]
    %v2900 = vld [vmem:[#allocation8 + $0xc60] sm:$0xff]
    %v2901 = vld [vmem:[#allocation8 + $0xc68] sm:$0xff]
    %v2902 = vld [vmem:[#allocation8 + $0xc70] sm:$0xff]
    %v2903 = vld [vmem:[#allocation8 + $0xc78] sm:$0xff]
    %v2904 = vld [vmem:[#allocation8 + $0xc80] sm:$0xff]
    %v2905 = vld [vmem:[#allocation8 + $0xc88] sm:$0xff]
    %v2906 = vld [vmem:[#allocation8 + $0xc90] sm:$0xff]
    %v2907 = vld [vmem:[#allocation8 + $0xc98] sm:$0xff]
    %v2908 = vld [vmem:[#allocation8 + $0xca0] sm:$0xff]
    %v2909 = vld [vmem:[#allocation8 + $0xca8] sm:$0xff]
    %v2910 = vld [vmem:[#allocation8 + $0xcb0] sm:$0xff]
    %v2911 = vld [vmem:[#allocation8 + $0xcb8] sm:$0xff]
    %v2912 = vld [vmem:[#allocation8 + $0xcc0] sm:$0xff]
    %v2913 = vld [vmem:[#allocation8 + $0xcc8] sm:$0xff]
    %v2914 = vld [vmem:[#allocation8 + $0xcd0] sm:$0xff]
    %v2915 = vld [vmem:[#allocation8 + $0xcd8] sm:$0xff]
    %v2916 = vld [vmem:[#allocation8 + $0xce0] sm:$0xff]
    %v2917 = vld [vmem:[#allocation8 + $0xce8] sm:$0xff]
    %v2918 = vld [vmem:[#allocation8 + $0xcf0] sm:$0xff]
    %v2919 = vld [vmem:[#allocation8 + $0xcf8] sm:$0xff]
    %v2920 = vld [vmem:[#allocation8 + $0xd00] sm:$0xff]
    %v2921 = vld [vmem:[#allocation8 + $0xd08] sm:$0xff]
    %v2922 = vld [vmem:[#allocation8 + $0xd10] sm:$0xff]
    %v2923 = vld [vmem:[#allocation8 + $0xd18] sm:$0xff]
    %v2924 = vld [vmem:[#allocation8 + $0xd20] sm:$0xff]
    %v2925 = vld [vmem:[#allocation8 + $0xd28] sm:$0xff]
    %v2926 = vld [vmem:[#allocation8 + $0xd30] sm:$0xff]
    %v2927 = vld [vmem:[#allocation8 + $0xd38] sm:$0xff]
    %v2928 = vld [vmem:[#allocation8 + $0xd40] sm:$0xff]
    %v2929 = vld [vmem:[#allocation8 + $0xd48] sm:$0xff]
    %v2930 = vld [vmem:[#allocation8 + $0xd50] sm:$0xff]
    %v2931 = vld [vmem:[#allocation8 + $0xd58] sm:$0xff]
    %v2932 = vld [vmem:[#allocation8 + $0xd60] sm:$0xff]
    %v2933 = vld [vmem:[#allocation8 + $0xd68] sm:$0xff]
    %v2934 = vld [vmem:[#allocation8 + $0xd70] sm:$0xff]
    %v2935 = vld [vmem:[#allocation8 + $0xd78] sm:$0xff]
    %v2936 = vld [vmem:[#allocation8 + $0xd80] sm:$0xff]
    %v2937 = vld [vmem:[#allocation8 + $0xd88] sm:$0xff]
    %v2938 = vld [vmem:[#allocation8 + $0xd90] sm:$0xff]
    %v2939 = vld [vmem:[#allocation8 + $0xd98] sm:$0xff]
    %v2940 = vld [vmem:[#allocation8 + $0xda0] sm:$0xff]
    %v2941 = vld [vmem:[#allocation8 + $0xda8] sm:$0xff]
    %v2942 = vld [vmem:[#allocation8 + $0xdb0] sm:$0xff]
    %v2943 = vld [vmem:[#allocation8 + $0xdb8] sm:$0xff]
    %v2944 = vld [vmem:[#allocation8 + $0xdc0] sm:$0xff]
    %v2945 = vld [vmem:[#allocation8 + $0xdc8] sm:$0xff]
    %v2946 = vld [vmem:[#allocation8 + $0xdd0] sm:$0xff]
    %v2947 = vld [vmem:[#allocation8 + $0xdd8] sm:$0xff]
    %v2948 = vld [vmem:[#allocation8 + $0xde0] sm:$0xff]
    %v2949 = vld [vmem:[#allocation8 + $0xde8] sm:$0xff]
    %v2950 = vld [vmem:[#allocation8 + $0xdf0] sm:$0xff]
    %v2951 = vld [vmem:[#allocation8 + $0xdf8] sm:$0xff]
    %v2952 = vld [vmem:[#allocation8 + $0xe00] sm:$0xff]
    %v2953 = vld [vmem:[#allocation8 + $0xe08] sm:$0xff]
    %v2954 = vld [vmem:[#allocation8 + $0xe10] sm:$0xff]
    %v2955 = vld [vmem:[#allocation8 + $0xe18] sm:$0xff]
    %v2956 = vld [vmem:[#allocation8 + $0xe20] sm:$0xff]
    %v2957 = vld [vmem:[#allocation8 + $0xe28] sm:$0xff]
    %v2958 = vld [vmem:[#allocation8 + $0xe30] sm:$0xff]
    %v2959 = vld [vmem:[#allocation8 + $0xe38] sm:$0xff]
    %v2960 = vld [vmem:[#allocation8 + $0xe40] sm:$0xff]
    %v2961 = vld [vmem:[#allocation8 + $0xe48] sm:$0xff]
    %v2962 = vld [vmem:[#allocation8 + $0xe50] sm:$0xff]
    %v2963 = vld [vmem:[#allocation8 + $0xe58] sm:$0xff]
    %v2964 = vld [vmem:[#allocation8 + $0xe60] sm:$0xff]
    %v2965 = vld [vmem:[#allocation8 + $0xe68] sm:$0xff]
    %v2966 = vld [vmem:[#allocation8 + $0xe70] sm:$0xff]
    %v2967 = vld [vmem:[#allocation8 + $0xe78] sm:$0xff]
    %v2968 = vld [vmem:[#allocation8 + $0xe80] sm:$0xff]
    %v2969 = vld [vmem:[#allocation8 + $0xe88] sm:$0xff]
    %v2970 = vld [vmem:[#allocation8 + $0xe90] sm:$0xff]
    %v2971 = vld [vmem:[#allocation8 + $0xe98] sm:$0xff]
    %v2972 = vld [vmem:[#allocation8 + $0xea0] sm:$0xff]
    %v2973 = vld [vmem:[#allocation8 + $0xea8] sm:$0xff]
    %v2974 = vld [vmem:[#allocation8 + $0xeb0] sm:$0xff]
    %v2975 = vld [vmem:[#allocation8 + $0xeb8] sm:$0xff]
    %v2976 = vld [vmem:[#allocation8 + $0xec0] sm:$0xff]
    %v2977 = vld [vmem:[#allocation8 + $0xec8] sm:$0xff]
    %v2978 = vld [vmem:[#allocation8 + $0xed0] sm:$0xff]
    %v2979 = vld [vmem:[#allocation8 + $0xed8] sm:$0xff]
    %v2980 = vld [vmem:[#allocation8 + $0xee0] sm:$0xff]
    %v2981 = vld [vmem:[#allocation8 + $0xee8] sm:$0xff]
    %v2982 = vld [vmem:[#allocation8 + $0xef0] sm:$0xff]
    %v2983 = vld [vmem:[#allocation8 + $0xef8] sm:$0xff]
    %v2984 = vld [vmem:[#allocation8 + $0xf00] sm:$0xff]
    %v2985 = vld [vmem:[#allocation8 + $0xf08] sm:$0xff]
    %v2986 = vld [vmem:[#allocation8 + $0xf10] sm:$0xff]
    %v2987 = vld [vmem:[#allocation8 + $0xf18] sm:$0xff]
    %v2988 = vld [vmem:[#allocation8 + $0xf20] sm:$0xff]
    %v2989 = vld [vmem:[#allocation8 + $0xf28] sm:$0xff]
    %v2990 = vld [vmem:[#allocation8 + $0xf30] sm:$0xff]
    %v2991 = vld [vmem:[#allocation8 + $0xf38] sm:$0xff]
    %v2992 = vld [vmem:[#allocation8 + $0xf40] sm:$0xff]
    %v2993 = vld [vmem:[#allocation8 + $0xf48] sm:$0xff]
    %v2994 = vld [vmem:[#allocation8 + $0xf50] sm:$0xff]
    %v2995 = vld [vmem:[#allocation8 + $0xf58] sm:$0xff]
    %v2996 = vld [vmem:[#allocation8 + $0xf60] sm:$0xff]
    %v2997 = vld [vmem:[#allocation8 + $0xf68] sm:$0xff]
    %v2998 = vld [vmem:[#allocation8 + $0xf70] sm:$0xff]
    %v2999 = vld [vmem:[#allocation8 + $0xf78] sm:$0xff]
    %v3000 = vld [vmem:[#allocation8 + $0xf80] sm:$0xff]
    %v3001 = vld [vmem:[#allocation8 + $0xf88] sm:$0xff]
    %v3002 = vld [vmem:[#allocation8 + $0xf90] sm:$0xff]
    %v3003 = vld [vmem:[#allocation8 + $0xf98] sm:$0xff]
    %v3004 = vld [vmem:[#allocation8 + $0xfa0] sm:$0xff]
    %v3005 = vld [vmem:[#allocation8 + $0xfa8] sm:$0xff]
    %v3006 = vld [vmem:[#allocation8 + $0xfb0] sm:$0xff]
    %v3007 = vld [vmem:[#allocation8 + $0xfb8] sm:$0xff]
    %v3008 = vld [vmem:[#allocation8 + $0xfc0] sm:$0xff]
    %v3009 = vld [vmem:[#allocation8 + $0xfc8] sm:$0xff]
    %v3010 = vld [vmem:[#allocation8 + $0xfd0] sm:$0xff]
    %v3011 = vld [vmem:[#allocation8 + $0xfd8] sm:$0xff]
    %v3012 = vld [vmem:[#allocation8 + $0xfe0] sm:$0xff]
    %v3013 = vld [vmem:[#allocation8 + $0xfe8] sm:$0xff]
    %v3014 = vld [vmem:[#allocation8 + $0xff0] sm:$0xff]
    %v3015 = vld [vmem:[#allocation8 + $0xff8] sm:$0xff]
    %v3016 = vld [vmem:[#allocation10] sm:$0xf]
    %v3018 = vlaneseq
    %v3019 = vshrl.u32 %v3018, 7
    %v3020 = vsub.s32 0, %v3019
    %v3021 = vrot.slane %v3016, %v3020
    %v3022 = vlaneseq
    %v3023 = vshrl.u32 %v3022, 7
    %v3024 = vsub.s32 1, %v3023
    %v3025 = vrot.slane %v3016, %v3024
    %v3026 = vlaneseq
    %v3027 = vshrl.u32 %v3026, 7
    %v3028 = vsub.s32 2, %v3027
    %v3029 = vrot.slane %v3016, %v3028
    %v3030 = vlaneseq
    %v3031 = vshrl.u32 %v3030, 7
    %v3032 = vsub.s32 3, %v3031
    %v3033 = vrot.slane %v3016, %v3032
    %3038 = vmatprep.subr.mxu0 %v2505
    %3039 = vmatpush1.msra.mxu0 %v2504
    %3040 = vmatprep.subr.mxu0 %v2509
    %3041 = vmatpush1.msra.mxu0 %v2508
    %3042 = vmatprep.subr.mxu0 %v2513
    %3043 = vmatpush1.msra.mxu0 %v2512
    %3044 = vmatprep.subr.mxu0 %v2517
    %3045 = vmatpush1.msra.mxu0 %v2516
    %3046 = vmatprep.subr.mxu0 %v2521
    %3047 = vmatpush1.msra.mxu0 %v2520
    %3048 = vmatprep.subr.mxu0 %v2525
    %3049 = vmatpush1.msra.mxu0 %v2524
    %3050 = vmatprep.subr.mxu0 %v2529
    %3051 = vmatpush1.msra.mxu0 %v2528
    %3052 = vmatprep.subr.mxu0 %v2533
    %3053 = vmatpush1.msra.mxu0 %v2532
    %3054 = vmatprep.subr.mxu0 %v2537
    %3055 = vmatpush1.msra.mxu0 %v2536
    %3056 = vmatprep.subr.mxu0 %v2541
    %3057 = vmatpush1.msra.mxu0 %v2540
    %3058 = vmatprep.subr.mxu0 %v2545
    %3059 = vmatpush1.msra.mxu0 %v2544
    %3060 = vmatprep.subr.mxu0 %v2549
    %3061 = vmatpush1.msra.mxu0 %v2548
    %3062 = vmatprep.subr.mxu0 %v2553
    %3063 = vmatpush1.msra.mxu0 %v2552
    %3064 = vmatprep.subr.mxu0 %v2557
    %3065 = vmatpush1.msra.mxu0 %v2556
    %3066 = vmatprep.subr.mxu0 %v2561
    %3067 = vmatpush1.msra.mxu0 %v2560
    %3068 = vmatprep.subr.mxu0 %v2565
    %3069 = vmatpush1.msra.mxu0 %v2564
    %3070 = vmatprep.subr.mxu0 %v2569
    %3071 = vmatpush1.msra.mxu0 %v2568
    %3072 = vmatprep.subr.mxu0 %v2573
    %3073 = vmatpush1.msra.mxu0 %v2572
    %3074 = vmatprep.subr.mxu0 %v2577
    %3075 = vmatpush1.msra.mxu0 %v2576
    %3076 = vmatprep.subr.mxu0 %v2581
    %3077 = vmatpush1.msra.mxu0 %v2580
    %3078 = vmatprep.subr.mxu0 %v2585
    %3079 = vmatpush1.msra.mxu0 %v2584
    %3080 = vmatprep.subr.mxu0 %v2589
    %3081 = vmatpush1.msra.mxu0 %v2588
    %3082 = vmatprep.subr.mxu0 %v2593
    %3083 = vmatpush1.msra.mxu0 %v2592
    %3084 = vmatprep.subr.mxu0 %v2597
    %3085 = vmatpush1.msra.mxu0 %v2596
    %3086 = vmatprep.subr.mxu0 %v2601
    %3087 = vmatpush1.msra.mxu0 %v2600
    %3088 = vmatprep.subr.mxu0 %v2605
    %3089 = vmatpush1.msra.mxu0 %v2604
    %3090 = vmatprep.subr.mxu0 %v2609
    %3091 = vmatpush1.msra.mxu0 %v2608
    %3092 = vmatprep.subr.mxu0 %v2613
    %3093 = vmatpush1.msra.mxu0 %v2612
    %3094 = vmatprep.subr.mxu0 %v2617
    %3095 = vmatpush1.msra.mxu0 %v2616
    %3096 = vmatprep.subr.mxu0 %v2621
    %3097 = vmatpush1.msra.mxu0 %v2620
    %3098 = vmatprep.subr.mxu0 %v2625
    %3099 = vmatpush1.msra.mxu0 %v2624
    %3100 = vmatprep.subr.mxu0 %v2629
    %3101 = vmatpush1.msra.mxu0 %v2628
    %3102 = vmatprep.mubr.f32.mxu0 %v2497
    %3103 = vmatmul.mubr.f32.gmra.mrb[0].mxu0 %v2496
    %v3104 = vpop.f32.mrb[0].mxu0
    %v3105 = vadd.f32 %v3021, %v3104
    %v3106 = vpop.f32.mrb[0].mxu0
    %v3107 = vadd.f32 %v3025, %v3106
    %3108 = vdwg.mxu0
    %3109 = vmatprep.subr.mxu0 %v2633
    %3110 = vmatpush1.msra.mxu0 %v2632
    %3111 = vmatprep.subr.mxu0 %v2637
    %3112 = vmatpush1.msra.mxu0 %v2636
    %3113 = vmatprep.subr.mxu0 %v2641
    %3114 = vmatpush1.msra.mxu0 %v2640
    %3115 = vmatprep.subr.mxu0 %v2645
    %3116 = vmatpush1.msra.mxu0 %v2644
    %3117 = vmatprep.subr.mxu0 %v2649
    %3118 = vmatpush1.msra.mxu0 %v2648
    %3119 = vmatprep.subr.mxu0 %v2653
    %3120 = vmatpush1.msra.mxu0 %v2652
    %3121 = vmatprep.subr.mxu0 %v2657
    %3122 = vmatpush1.msra.mxu0 %v2656
    %3123 = vmatprep.subr.mxu0 %v2661
    %3124 = vmatpush1.msra.mxu0 %v2660
    %3125 = vmatprep.subr.mxu0 %v2665
    %3126 = vmatpush1.msra.mxu0 %v2664
    %3127 = vmatprep.subr.mxu0 %v2669
    %3128 = vmatpush1.msra.mxu0 %v2668
    %3129 = vmatprep.subr.mxu0 %v2673
    %3130 = vmatpush1.msra.mxu0 %v2672
    %3131 = vmatprep.subr.mxu0 %v2677
    %3132 = vmatpush1.msra.mxu0 %v2676
    %3133 = vmatprep.subr.mxu0 %v2681
    %3134 = vmatpush1.msra.mxu0 %v2680
    %3135 = vmatprep.subr.mxu0 %v2685
    %3136 = vmatpush1.msra.mxu0 %v2684
    %3137 = vmatprep.subr.mxu0 %v2689
    %3138 = vmatpush1.msra.mxu0 %v2688
    %3139 = vmatprep.subr.mxu0 %v2693
    %3140 = vmatpush1.msra.mxu0 %v2692
    %3141 = vmatprep.subr.mxu0 %v2697
    %3142 = vmatpush1.msra.mxu0 %v2696
    %3143 = vmatprep.subr.mxu0 %v2701
    %3144 = vmatpush1.msra.mxu0 %v2700
    %3145 = vmatprep.subr.mxu0 %v2705
    %3146 = vmatpush1.msra.mxu0 %v2704
    %3147 = vmatprep.subr.mxu0 %v2709
    %3148 = vmatpush1.msra.mxu0 %v2708
    %3149 = vmatprep.subr.mxu0 %v2713
    %3150 = vmatpush1.msra.mxu0 %v2712
    %3151 = vmatprep.subr.mxu0 %v2717
    %3152 = vmatpush1.msra.mxu0 %v2716
    %3153 = vmatprep.subr.mxu0 %v2721
    %3154 = vmatpush1.msra.mxu0 %v2720
    %3155 = vmatprep.subr.mxu0 %v2725
    %3156 = vmatpush1.msra.mxu0 %v2724
    %3157 = vmatprep.subr.mxu0 %v2729
    %3158 = vmatpush1.msra.mxu0 %v2728
    %3159 = vmatprep.subr.mxu0 %v2733
    %3160 = vmatpush1.msra.mxu0 %v2732
    %3161 = vmatprep.subr.mxu0 %v2737
    %3162 = vmatpush1.msra.mxu0 %v2736
    %3163 = vmatprep.subr.mxu0 %v2741
    %3164 = vmatpush1.msra.mxu0 %v2740
    %3165 = vmatprep.subr.mxu0 %v2745
    %3166 = vmatpush1.msra.mxu0 %v2744
    %3167 = vmatprep.subr.mxu0 %v2749
    %3168 = vmatpush1.msra.mxu0 %v2748
    %3169 = vmatprep.subr.mxu0 %v2753
    %3170 = vmatpush1.msra.mxu0 %v2752
    %3171 = vmatprep.subr.mxu0 %v2757
    %3172 = vmatpush1.msra.mxu0 %v2756
    %3173 = vmatprep.mubr.f32.mxu0 %v2499
    %3174 = vmatmul.mubr.f32.gmra.mrb[0].mxu0 %v2498
    %v3175 = vpop.f32.mrb[0].mxu0
    %v3176 = vadd.f32 %v3105, %v3175
    %v3177 = vpop.f32.mrb[0].mxu0
    %v3178 = vadd.f32 %v3107, %v3177
    %3179 = vdwg.mxu0
    %3180 = vmatprep.subr.mxu0 %v2761
    %3181 = vmatpush1.msra.mxu0 %v2760
    %3182 = vmatprep.subr.mxu0 %v2765
    %3183 = vmatpush1.msra.mxu0 %v2764
    %3184 = vmatprep.subr.mxu0 %v2769
    %3185 = vmatpush1.msra.mxu0 %v2768
    %3186 = vmatprep.subr.mxu0 %v2773
    %3187 = vmatpush1.msra.mxu0 %v2772
    %3188 = vmatprep.subr.mxu0 %v2777
    %3189 = vmatpush1.msra.mxu0 %v2776
    %3190 = vmatprep.subr.mxu0 %v2781
    %3191 = vmatpush1.msra.mxu0 %v2780
    %3192 = vmatprep.subr.mxu0 %v2785
    %3193 = vmatpush1.msra.mxu0 %v2784
    %3194 = vmatprep.subr.mxu0 %v2789
    %3195 = vmatpush1.msra.mxu0 %v2788
    %3196 = vmatprep.subr.mxu0 %v2793
    %3197 = vmatpush1.msra.mxu0 %v2792
    %3198 = vmatprep.subr.mxu0 %v2797
    %3199 = vmatpush1.msra.mxu0 %v2796
    %3200 = vmatprep.subr.mxu0 %v2801
    %3201 = vmatpush1.msra.mxu0 %v2800
    %3202 = vmatprep.subr.mxu0 %v2805
    %3203 = vmatpush1.msra.mxu0 %v2804
    %3204 = vmatprep.subr.mxu0 %v2809
    %3205 = vmatpush1.msra.mxu0 %v2808
    %3206 = vmatprep.subr.mxu0 %v2813
    %3207 = vmatpush1.msra.mxu0 %v2812
    %3208 = vmatprep.subr.mxu0 %v2817
    %3209 = vmatpush1.msra.mxu0 %v2816
    %3210 = vmatprep.subr.mxu0 %v2821
    %3211 = vmatpush1.msra.mxu0 %v2820
    %3212 = vmatprep.subr.mxu0 %v2825
    %3213 = vmatpush1.msra.mxu0 %v2824
    %3214 = vmatprep.subr.mxu0 %v2829
    %3215 = vmatpush1.msra.mxu0 %v2828
    %3216 = vmatprep.subr.mxu0 %v2833
    %3217 = vmatpush1.msra.mxu0 %v2832
    %3218 = vmatprep.subr.mxu0 %v2837
    %3219 = vmatpush1.msra.mxu0 %v2836
    %3220 = vmatprep.subr.mxu0 %v2841
    %3221 = vmatpush1.msra.mxu0 %v2840
    %3222 = vmatprep.subr.mxu0 %v2845
    %3223 = vmatpush1.msra.mxu0 %v2844
    %3224 = vmatprep.subr.mxu0 %v2849
    %3225 = vmatpush1.msra.mxu0 %v2848
    %3226 = vmatprep.subr.mxu0 %v2853
    %3227 = vmatpush1.msra.mxu0 %v2852
    %3228 = vmatprep.subr.mxu0 %v2857
    %3229 = vmatpush1.msra.mxu0 %v2856
    %3230 = vmatprep.subr.mxu0 %v2861
    %3231 = vmatpush1.msra.mxu0 %v2860
    %3232 = vmatprep.subr.mxu0 %v2865
    %3233 = vmatpush1.msra.mxu0 %v2864
    %3234 = vmatprep.subr.mxu0 %v2869
    %3235 = vmatpush1.msra.mxu0 %v2868
    %3236 = vmatprep.subr.mxu0 %v2873
    %3237 = vmatpush1.msra.mxu0 %v2872
    %3238 = vmatprep.subr.mxu0 %v2877
    %3239 = vmatpush1.msra.mxu0 %v2876
    %3240 = vmatprep.subr.mxu0 %v2881
    %3241 = vmatpush1.msra.mxu0 %v2880
    %3242 = vmatprep.subr.mxu0 %v2885
    %3243 = vmatpush1.msra.mxu0 %v2884
    %3244 = vmatprep.mubr.f32.mxu0 %v2501
    %3245 = vmatmul.mubr.f32.gmra.mrb[0].mxu0 %v2500
    %v3246 = vpop.f32.mrb[0].mxu0
    %v3247 = vadd.f32 %v3176, %v3246
    %v3248 = vpop.f32.mrb[0].mxu0
    %v3249 = vadd.f32 %v3178, %v3248
    %3250 = vdwg.mxu0
    %3251 = vmatprep.subr.mxu0 %v2889
    %3252 = vmatpush1.msra.mxu0 %v2888
    %3253 = vmatprep.subr.mxu0 %v2893
    %3254 = vmatpush1.msra.mxu0 %v2892
    %3255 = vmatprep.subr.mxu0 %v2897
    %3256 = vmatpush1.msra.mxu0 %v2896
    %3257 = vmatprep.subr.mxu0 %v2901
    %3258 = vmatpush1.msra.mxu0 %v2900
    %3259 = vmatprep.subr.mxu0 %v2905
    %3260 = vmatpush1.msra.mxu0 %v2904
    %3261 = vmatprep.subr.mxu0 %v2909
    %3262 = vmatpush1.msra.mxu0 %v2908
    %3263 = vmatprep.subr.mxu0 %v2913
    %3264 = vmatpush1.msra.mxu0 %v2912
    %3265 = vmatprep.subr.mxu0 %v2917
    %3266 = vmatpush1.msra.mxu0 %v2916
    %3267 = vmatprep.subr.mxu0 %v2921
    %3268 = vmatpush1.msra.mxu0 %v2920
    %3269 = vmatprep.subr.mxu0 %v2925
    %3270 = vmatpush1.msra.mxu0 %v2924
    %3271 = vmatprep.subr.mxu0 %v2929
    %3272 = vmatpush1.msra.mxu0 %v2928
    %3273 = vmatprep.subr.mxu0 %v2933
    %3274 = vmatpush1.msra.mxu0 %v2932
    %3275 = vmatprep.subr.mxu0 %v2937
    %3276 = vmatpush1.msra.mxu0 %v2936
    %3277 = vmatprep.subr.mxu0 %v2941
    %3278 = vmatpush1.msra.mxu0 %v2940
    %3279 = vmatprep.subr.mxu0 %v2945
    %3280 = vmatpush1.msra.mxu0 %v2944
    %3281 = vmatprep.subr.mxu0 %v2949
    %3282 = vmatpush1.msra.mxu0 %v2948
    %3283 = vmatprep.subr.mxu0 %v2953
    %3284 = vmatpush1.msra.mxu0 %v2952
    %3285 = vmatprep.subr.mxu0 %v2957
    %3286 = vmatpush1.msra.mxu0 %v2956
    %3287 = vmatprep.subr.mxu0 %v2961
    %3288 = vmatpush1.msra.mxu0 %v2960
    %3289 = vmatprep.subr.mxu0 %v2965
    %3290 = vmatpush1.msra.mxu0 %v2964
    %3291 = vmatprep.subr.mxu0 %v2969
    %3292 = vmatpush1.msra.mxu0 %v2968
    %3293 = vmatprep.subr.mxu0 %v2973
    %3294 = vmatpush1.msra.mxu0 %v2972
    %3295 = vmatprep.subr.mxu0 %v2977
    %3296 = vmatpush1.msra.mxu0 %v2976
    %3297 = vmatprep.subr.mxu0 %v2981
    %3298 = vmatpush1.msra.mxu0 %v2980
    %3299 = vmatprep.subr.mxu0 %v2985
    %3300 = vmatpush1.msra.mxu0 %v2984
    %3301 = vmatprep.subr.mxu0 %v2989
    %3302 = vmatpush1.msra.mxu0 %v2988
    %3303 = vmatprep.subr.mxu0 %v2993
    %3304 = vmatpush1.msra.mxu0 %v2992
    %3305 = vmatprep.subr.mxu0 %v2997
    %3306 = vmatpush1.msra.mxu0 %v2996
    %3307 = vmatprep.subr.mxu0 %v3001
    %3308 = vmatpush1.msra.mxu0 %v3000
    %3309 = vmatprep.subr.mxu0 %v3005
    %3310 = vmatpush1.msra.mxu0 %v3004
    %3311 = vmatprep.subr.mxu0 %v3009
    %3312 = vmatpush1.msra.mxu0 %v3008
    %3313 = vmatprep.subr.mxu0 %v3013
    %3314 = vmatpush1.msra.mxu0 %v3012
    %3315 = vmatprep.mubr.f32.mxu0 %v2503
    %3316 = vmatmul.mubr.f32.gmra.mrb[0].mxu0 %v2502
    %v3317 = vpop.f32.mrb[0].mxu0
    %v3318 = vadd.f32 %v3247, %v3317
    %v3319 = vpop.f32.mrb[0].mxu0
    %v3320 = vadd.f32 %v3249, %v3319
    %3321 = vdwg.mxu0
    %3322 = vmatprep.subr.mxu0 %v2507
    %3323 = vmatpush1.msra.mxu0 %v2506
    %3324 = vmatprep.subr.mxu0 %v2511
    %3325 = vmatpush1.msra.mxu0 %v2510
    %3326 = vmatprep.subr.mxu0 %v2515
    %3327 = vmatpush1.msra.mxu0 %v2514
    %3328 = vmatprep.subr.mxu0 %v2519
    %3329 = vmatpush1.msra.mxu0 %v2518
    %3330 = vmatprep.subr.mxu0 %v2523
    %3331 = vmatpush1.msra.mxu0 %v2522
    %3332 = vmatprep.subr.mxu0 %v2527
    %3333 = vmatpush1.msra.mxu0 %v2526
    %3334 = vmatprep.subr.mxu0 %v2531
    %3335 = vmatpush1.msra.mxu0 %v2530
    %3336 = vmatprep.subr.mxu0 %v2535
    %3337 = vmatpush1.msra.mxu0 %v2534
    %3338 = vmatprep.subr.mxu0 %v2539
    %3339 = vmatpush1.msra.mxu0 %v2538
    %3340 = vmatprep.subr.mxu0 %v2543
    %3341 = vmatpush1.msra.mxu0 %v2542
    %3342 = vmatprep.subr.mxu0 %v2547
    %3343 = vmatpush1.msra.mxu0 %v2546
    %3344 = vmatprep.subr.mxu0 %v2551
    %3345 = vmatpush1.msra.mxu0 %v2550
    %3346 = vmatprep.subr.mxu0 %v2555
    %3347 = vmatpush1.msra.mxu0 %v2554
    %3348 = vmatprep.subr.mxu0 %v2559
    %3349 = vmatpush1.msra.mxu0 %v2558
    %3350 = vmatprep.subr.mxu0 %v2563
    %3351 = vmatpush1.msra.mxu0 %v2562
    %3352 = vmatprep.subr.mxu0 %v2567
    %3353 = vmatpush1.msra.mxu0 %v2566
    %3354 = vmatprep.subr.mxu0 %v2571
    %3355 = vmatpush1.msra.mxu0 %v2570
    %3356 = vmatprep.subr.mxu0 %v2575
    %3357 = vmatpush1.msra.mxu0 %v2574
    %3358 = vmatprep.subr.mxu0 %v2579
    %3359 = vmatpush1.msra.mxu0 %v2578
    %3360 = vmatprep.subr.mxu0 %v2583
    %3361 = vmatpush1.msra.mxu0 %v2582
    %3362 = vmatprep.subr.mxu0 %v2587
    %3363 = vmatpush1.msra.mxu0 %v2586
    %3364 = vmatprep.subr.mxu0 %v2591
    %3365 = vmatpush1.msra.mxu0 %v2590
    %3366 = vmatprep.subr.mxu0 %v2595
    %3367 = vmatpush1.msra.mxu0 %v2594
    %3368 = vmatprep.subr.mxu0 %v2599
    %3369 = vmatpush1.msra.mxu0 %v2598
    %3370 = vmatprep.subr.mxu0 %v2603
    %3371 = vmatpush1.msra.mxu0 %v2602
    %3372 = vmatprep.subr.mxu0 %v2607
    %3373 = vmatpush1.msra.mxu0 %v2606
    %3374 = vmatprep.subr.mxu0 %v2611
    %3375 = vmatpush1.msra.mxu0 %v2610
    %3376 = vmatprep.subr.mxu0 %v2615
    %3377 = vmatpush1.msra.mxu0 %v2614
    %3378 = vmatprep.subr.mxu0 %v2619
    %3379 = vmatpush1.msra.mxu0 %v2618
    %3380 = vmatprep.subr.mxu0 %v2623
    %3381 = vmatpush1.msra.mxu0 %v2622
    %3382 = vmatprep.subr.mxu0 %v2627
    %3383 = vmatpush1.msra.mxu0 %v2626
    %3384 = vmatprep.subr.mxu0 %v2631
    %3385 = vmatpush1.msra.mxu0 %v2630
    %3386 = vmatprep.mubr.f32.mxu0 %v2497
    %3387 = vmatmul.mubr.f32.gmra.mrb[0].mxu0 %v2496
    %v3388 = vpop.f32.mrb[0].mxu0
    %v3389 = vadd.f32 %v3029, %v3388
    %v3390 = vpop.f32.mrb[0].mxu0
    %v3391 = vadd.f32 %v3033, %v3390
    %3392 = vdwg.mxu0
    %3393 = vmatprep.subr.mxu0 %v2635
    %3394 = vmatpush1.msra.mxu0 %v2634
    %3395 = vmatprep.subr.mxu0 %v2639
    %3396 = vmatpush1.msra.mxu0 %v2638
    %3397 = vmatprep.subr.mxu0 %v2643
    %3398 = vmatpush1.msra.mxu0 %v2642
    %3399 = vmatprep.subr.mxu0 %v2647
    %3400 = vmatpush1.msra.mxu0 %v2646
    %3401 = vmatprep.subr.mxu0 %v2651
    %3402 = vmatpush1.msra.mxu0 %v2650
    %3403 = vmatprep.subr.mxu0 %v2655
    %3404 = vmatpush1.msra.mxu0 %v2654
    %3405 = vmatprep.subr.mxu0 %v2659
    %3406 = vmatpush1.msra.mxu0 %v2658
    %3407 = vmatprep.subr.mxu0 %v2663
    %3408 = vmatpush1.msra.mxu0 %v2662
    %3409 = vmatprep.subr.mxu0 %v2667
    %3410 = vmatpush1.msra.mxu0 %v2666
    %3411 = vmatprep.subr.mxu0 %v2671
    %3412 = vmatpush1.msra.mxu0 %v2670
    %3413 = vmatprep.subr.mxu0 %v2675
    %3414 = vmatpush1.msra.mxu0 %v2674
    %3415 = vmatprep.subr.mxu0 %v2679
    %3416 = vmatpush1.msra.mxu0 %v2678
    %3417 = vmatprep.subr.mxu0 %v2683
    %3418 = vmatpush1.msra.mxu0 %v2682
    %3419 = vmatprep.subr.mxu0 %v2687
    %3420 = vmatpush1.msra.mxu0 %v2686
    %3421 = vmatprep.subr.mxu0 %v2691
    %3422 = vmatpush1.msra.mxu0 %v2690
    %3423 = vmatprep.subr.mxu0 %v2695
    %3424 = vmatpush1.msra.mxu0 %v2694
    %3425 = vmatprep.subr.mxu0 %v2699
    %3426 = vmatpush1.msra.mxu0 %v2698
    %3427 = vmatprep.subr.mxu0 %v2703
    %3428 = vmatpush1.msra.mxu0 %v2702
    %3429 = vmatprep.subr.mxu0 %v2707
    %3430 = vmatpush1.msra.mxu0 %v2706
    %3431 = vmatprep.subr.mxu0 %v2711
    %3432 = vmatpush1.msra.mxu0 %v2710
    %3433 = vmatprep.subr.mxu0 %v2715
    %3434 = vmatpush1.msra.mxu0 %v2714
    %3435 = vmatprep.subr.mxu0 %v2719
    %3436 = vmatpush1.msra.mxu0 %v2718
    %3437 = vmatprep.subr.mxu0 %v2723
    %3438 = vmatpush1.msra.mxu0 %v2722
    %3439 = vmatprep.subr.mxu0 %v2727
    %3440 = vmatpush1.msra.mxu0 %v2726
    %3441 = vmatprep.subr.mxu0 %v2731
    %3442 = vmatpush1.msra.mxu0 %v2730
    %3443 = vmatprep.subr.mxu0 %v2735
    %3444 = vmatpush1.msra.mxu0 %v2734
    %3445 = vmatprep.subr.mxu0 %v2739
    %3446 = vmatpush1.msra.mxu0 %v2738
    %3447 = vmatprep.subr.mxu0 %v2743
    %3448 = vmatpush1.msra.mxu0 %v2742
    %3449 = vmatprep.subr.mxu0 %v2747
    %3450 = vmatpush1.msra.mxu0 %v2746
    %3451 = vmatprep.subr.mxu0 %v2751
    %3452 = vmatpush1.msra.mxu0 %v2750
    %3453 = vmatprep.subr.mxu0 %v2755
    %3454 = vmatpush1.msra.mxu0 %v2754
    %3455 = vmatprep.subr.mxu0 %v2759
    %3456 = vmatpush1.msra.mxu0 %v2758
    %3457 = vmatprep.mubr.f32.mxu0 %v2499
    %3458 = vmatmul.mubr.f32.gmra.mrb[0].mxu0 %v2498
    %v3459 = vpop.f32.mrb[0].mxu0
    %v3460 = vadd.f32 %v3389, %v3459
    %v3461 = vpop.f32.mrb[0].mxu0
    %v3462 = vadd.f32 %v3391, %v3461
    %3463 = vdwg.mxu0
    %3464 = vmatprep.subr.mxu0 %v2763
    %3465 = vmatpush1.msra.mxu0 %v2762
    %3466 = vmatprep.subr.mxu0 %v2767
    %3467 = vmatpush1.msra.mxu0 %v2766
    %3468 = vmatprep.subr.mxu0 %v2771
    %3469 = vmatpush1.msra.mxu0 %v2770
    %3470 = vmatprep.subr.mxu0 %v2775
    %3471 = vmatpush1.msra.mxu0 %v2774
    %3472 = vmatprep.subr.mxu0 %v2779
    %3473 = vmatpush1.msra.mxu0 %v2778
    %3474 = vmatprep.subr.mxu0 %v2783
    %3475 = vmatpush1.msra.mxu0 %v2782
    %3476 = vmatprep.subr.mxu0 %v2787
    %3477 = vmatpush1.msra.mxu0 %v2786
    %3478 = vmatprep.subr.mxu0 %v2791
    %3479 = vmatpush1.msra.mxu0 %v2790
    %3480 = vmatprep.subr.mxu0 %v2795
    %3481 = vmatpush1.msra.mxu0 %v2794
    %3482 = vmatprep.subr.mxu0 %v2799
    %3483 = vmatpush1.msra.mxu0 %v2798
    %3484 = vmatprep.subr.mxu0 %v2803
    %3485 = vmatpush1.msra.mxu0 %v2802
    %3486 = vmatprep.subr.mxu0 %v2807
    %3487 = vmatpush1.msra.mxu0 %v2806
    %3488 = vmatprep.subr.mxu0 %v2811
    %3489 = vmatpush1.msra.mxu0 %v2810
    %3490 = vmatprep.subr.mxu0 %v2815
    %3491 = vmatpush1.msra.mxu0 %v2814
    %3492 = vmatprep.subr.mxu0 %v2819
    %3493 = vmatpush1.msra.mxu0 %v2818
    %3494 = vmatprep.subr.mxu0 %v2823
    %3495 = vmatpush1.msra.mxu0 %v2822
    %3496 = vmatprep.subr.mxu0 %v2827
    %3497 = vmatpush1.msra.mxu0 %v2826
    %3498 = vmatprep.subr.mxu0 %v2831
    %3499 = vmatpush1.msra.mxu0 %v2830
    %3500 = vmatprep.subr.mxu0 %v2835
    %3501 = vmatpush1.msra.mxu0 %v2834
    %3502 = vmatprep.subr.mxu0 %v2839
    %3503 = vmatpush1.msra.mxu0 %v2838
    %3504 = vmatprep.subr.mxu0 %v2843
    %3505 = vmatpush1.msra.mxu0 %v2842
    %3506 = vmatprep.subr.mxu0 %v2847
    %3507 = vmatpush1.msra.mxu0 %v2846
    %3508 = vmatprep.subr.mxu0 %v2851
    %3509 = vmatpush1.msra.mxu0 %v2850
    %3510 = vmatprep.subr.mxu0 %v2855
    %3511 = vmatpush1.msra.mxu0 %v2854
    %3512 = vmatprep.subr.mxu0 %v2859
    %3513 = vmatpush1.msra.mxu0 %v2858
    %3514 = vmatprep.subr.mxu0 %v2863
    %3515 = vmatpush1.msra.mxu0 %v2862
    %3516 = vmatprep.subr.mxu0 %v2867
    %3517 = vmatpush1.msra.mxu0 %v2866
    %3518 = vmatprep.subr.mxu0 %v2871
    %3519 = vmatpush1.msra.mxu0 %v2870
    %3520 = vmatprep.subr.mxu0 %v2875
    %3521 = vmatpush1.msra.mxu0 %v2874
    %3522 = vmatprep.subr.mxu0 %v2879
    %3523 = vmatpush1.msra.mxu0 %v2878
    %3524 = vmatprep.subr.mxu0 %v2883
    %3525 = vmatpush1.msra.mxu0 %v2882
    %3526 = vmatprep.subr.mxu0 %v2887
    %3527 = vmatpush1.msra.mxu0 %v2886
    %3528 = vmatprep.mubr.f32.mxu0 %v2501
    %3529 = vmatmul.mubr.f32.gmra.mrb[0].mxu0 %v2500
    %v3530 = vpop.f32.mrb[0].mxu0
    %v3531 = vadd.f32 %v3460, %v3530
    %v3532 = vpop.f32.mrb[0].mxu0
    %v3533 = vadd.f32 %v3462, %v3532
    %3534 = vdwg.mxu0
    %3535 = vmatprep.subr.mxu0 %v2891
    %3536 = vmatpush1.msra.mxu0 %v2890
    %3537 = vmatprep.subr.mxu0 %v2895
    %3538 = vmatpush1.msra.mxu0 %v2894
    %3539 = vmatprep.subr.mxu0 %v2899
    %3540 = vmatpush1.msra.mxu0 %v2898
    %3541 = vmatprep.subr.mxu0 %v2903
    %3542 = vmatpush1.msra.mxu0 %v2902
    %3543 = vmatprep.subr.mxu0 %v2907
    %3544 = vmatpush1.msra.mxu0 %v2906
    %3545 = vmatprep.subr.mxu0 %v2911
    %3546 = vmatpush1.msra.mxu0 %v2910
    %3547 = vmatprep.subr.mxu0 %v2915
    %3548 = vmatpush1.msra.mxu0 %v2914
    %3549 = vmatprep.subr.mxu0 %v2919
    %3550 = vmatpush1.msra.mxu0 %v2918
    %3551 = vmatprep.subr.mxu0 %v2923
    %3552 = vmatpush1.msra.mxu0 %v2922
    %3553 = vmatprep.subr.mxu0 %v2927
    %3554 = vmatpush1.msra.mxu0 %v2926
    %3555 = vmatprep.subr.mxu0 %v2931
    %3556 = vmatpush1.msra.mxu0 %v2930
    %3557 = vmatprep.subr.mxu0 %v2935
    %3558 = vmatpush1.msra.mxu0 %v2934
    %3559 = vmatprep.subr.mxu0 %v2939
    %3560 = vmatpush1.msra.mxu0 %v2938
    %3561 = vmatprep.subr.mxu0 %v2943
    %3562 = vmatpush1.msra.mxu0 %v2942
    %3563 = vmatprep.subr.mxu0 %v2947
    %3564 = vmatpush1.msra.mxu0 %v2946
    %3565 = vmatprep.subr.mxu0 %v2951
    %3566 = vmatpush1.msra.mxu0 %v2950
    %3567 = vmatprep.subr.mxu0 %v2955
    %3568 = vmatpush1.msra.mxu0 %v2954
    %3569 = vmatprep.subr.mxu0 %v2959
    %3570 = vmatpush1.msra.mxu0 %v2958
    %3571 = vmatprep.subr.mxu0 %v2963
    %3572 = vmatpush1.msra.mxu0 %v2962
    %3573 = vmatprep.subr.mxu0 %v2967
    %3574 = vmatpush1.msra.mxu0 %v2966
    %3575 = vmatprep.subr.mxu0 %v2971
    %3576 = vmatpush1.msra.mxu0 %v2970
    %3577 = vmatprep.subr.mxu0 %v2975
    %3578 = vmatpush1.msra.mxu0 %v2974
    %3579 = vmatprep.subr.mxu0 %v2979
    %3580 = vmatpush1.msra.mxu0 %v2978
    %3581 = vmatprep.subr.mxu0 %v2983
    %3582 = vmatpush1.msra.mxu0 %v2982
    %3583 = vmatprep.subr.mxu0 %v2987
    %3584 = vmatpush1.msra.mxu0 %v2986
    %3585 = vmatprep.subr.mxu0 %v2991
    %3586 = vmatpush1.msra.mxu0 %v2990
    %3587 = vmatprep.subr.mxu0 %v2995
    %3588 = vmatpush1.msra.mxu0 %v2994
    %3589 = vmatprep.subr.mxu0 %v2999
    %3590 = vmatpush1.msra.mxu0 %v2998
    %3591 = vmatprep.subr.mxu0 %v3003
    %3592 = vmatpush1.msra.mxu0 %v3002
    %3593 = vmatprep.subr.mxu0 %v3007
    %3594 = vmatpush1.msra.mxu0 %v3006
    %3595 = vmatprep.subr.mxu0 %v3011
    %3596 = vmatpush1.msra.mxu0 %v3010
    %3597 = vmatprep.subr.mxu0 %v3015
    %3598 = vmatpush1.msra.mxu0 %v3014
    %3599 = vmatprep.mubr.f32.mxu0 %v2503
    %3600 = vmatmul.mubr.f32.gmra.mrb[0].mxu0 %v2502
    %v3601 = vpop.f32.mrb[0].mxu0
    %v3602 = vadd.f32 %v3531, %v3601
    %v3603 = vpop.f32.mrb[0].mxu0
    %v3604 = vadd.f32 %v3533, %v3603
    %3605 = vdwg.mxu0
    %v3606 = vmax.f32 %v3318, 0.0
    %v3607 = vmax.f32 %v3320, 0.0
    %v3608 = vmax.f32 %v3602, 0.0
    %v3609 = vmax.f32 %v3604, 0.0
    %v3610 = vld [vmem:[#allocation11] sm:$0xff]
    %v3611 = vld [vmem:[#allocation11 + $0x8] sm:$0xff]
    %v3612 = vld [vmem:[#allocation11 + $0x10] sm:$0xff]
    %v3613 = vld [vmem:[#allocation11 + $0x18] sm:$0xff]
    %v3614 = vld [vmem:[#allocation11 + $0x20] sm:$0xff]
    %v3615 = vld [vmem:[#allocation11 + $0x28] sm:$0xff]
    %v3616 = vld [vmem:[#allocation11 + $0x30] sm:$0xff]
    %v3617 = vld [vmem:[#allocation11 + $0x38] sm:$0xff]
    %v3618 = vld [vmem:[#allocation11 + $0x40] sm:$0xff]
    %v3619 = vld [vmem:[#allocation11 + $0x48] sm:$0xff]
    %v3620 = vld [vmem:[#allocation11 + $0x50] sm:$0xff]
    %v3621 = vld [vmem:[#allocation11 + $0x58] sm:$0xff]
    %v3622 = vld [vmem:[#allocation11 + $0x60] sm:$0xff]
    %v3623 = vld [vmem:[#allocation11 + $0x68] sm:$0xff]
    %v3624 = vld [vmem:[#allocation11 + $0x70] sm:$0xff]
    %v3625 = vld [vmem:[#allocation11 + $0x78] sm:$0xff]
    %v3626 = vld [vmem:[#allocation11 + $0x80] sm:$0xff]
    %v3627 = vld [vmem:[#allocation11 + $0x88] sm:$0xff]
    %v3628 = vld [vmem:[#allocation11 + $0x90] sm:$0xff]
    %v3629 = vld [vmem:[#allocation11 + $0x98] sm:$0xff]
    %v3630 = vld [vmem:[#allocation11 + $0xa0] sm:$0xff]
    %v3631 = vld [vmem:[#allocation11 + $0xa8] sm:$0xff]
    %v3632 = vld [vmem:[#allocation11 + $0xb0] sm:$0xff]
    %v3633 = vld [vmem:[#allocation11 + $0xb8] sm:$0xff]
    %v3634 = vld [vmem:[#allocation11 + $0xc0] sm:$0xff]
    %v3635 = vld [vmem:[#allocation11 + $0xc8] sm:$0xff]
    %v3636 = vld [vmem:[#allocation11 + $0xd0] sm:$0xff]
    %v3637 = vld [vmem:[#allocation11 + $0xd8] sm:$0xff]
    %v3638 = vld [vmem:[#allocation11 + $0xe0] sm:$0xff]
    %v3639 = vld [vmem:[#allocation11 + $0xe8] sm:$0xff]
    %v3640 = vld [vmem:[#allocation11 + $0xf0] sm:$0xff]
    %v3641 = vld [vmem:[#allocation11 + $0xf8] sm:$0xff]
    %v3642 = vld [vmem:[#allocation11 + $0x100] sm:$0xff]
    %v3643 = vld [vmem:[#allocation11 + $0x108] sm:$0xff]
    %v3644 = vld [vmem:[#allocation11 + $0x110] sm:$0xff]
    %v3645 = vld [vmem:[#allocation11 + $0x118] sm:$0xff]
    %v3646 = vld [vmem:[#allocation11 + $0x120] sm:$0xff]
    %v3647 = vld [vmem:[#allocation11 + $0x128] sm:$0xff]
    %v3648 = vld [vmem:[#allocation11 + $0x130] sm:$0xff]
    %v3649 = vld [vmem:[#allocation11 + $0x138] sm:$0xff]
    %v3650 = vld [vmem:[#allocation11 + $0x140] sm:$0xff]
    %v3651 = vld [vmem:[#allocation11 + $0x148] sm:$0xff]
    %v3652 = vld [vmem:[#allocation11 + $0x150] sm:$0xff]
    %v3653 = vld [vmem:[#allocation11 + $0x158] sm:$0xff]
    %v3654 = vld [vmem:[#allocation11 + $0x160] sm:$0xff]
    %v3655 = vld [vmem:[#allocation11 + $0x168] sm:$0xff]
    %v3656 = vld [vmem:[#allocation11 + $0x170] sm:$0xff]
    %v3657 = vld [vmem:[#allocation11 + $0x178] sm:$0xff]
    %v3658 = vld [vmem:[#allocation11 + $0x180] sm:$0xff]
    %v3659 = vld [vmem:[#allocation11 + $0x188] sm:$0xff]
    %v3660 = vld [vmem:[#allocation11 + $0x190] sm:$0xff]
    %v3661 = vld [vmem:[#allocation11 + $0x198] sm:$0xff]
    %v3662 = vld [vmem:[#allocation11 + $0x1a0] sm:$0xff]
    %v3663 = vld [vmem:[#allocation11 + $0x1a8] sm:$0xff]
    %v3664 = vld [vmem:[#allocation11 + $0x1b0] sm:$0xff]
    %v3665 = vld [vmem:[#allocation11 + $0x1b8] sm:$0xff]
    %v3666 = vld [vmem:[#allocation11 + $0x1c0] sm:$0xff]
    %v3667 = vld [vmem:[#allocation11 + $0x1c8] sm:$0xff]
    %v3668 = vld [vmem:[#allocation11 + $0x1d0] sm:$0xff]
    %v3669 = vld [vmem:[#allocation11 + $0x1d8] sm:$0xff]
    %v3670 = vld [vmem:[#allocation11 + $0x1e0] sm:$0xff]
    %v3671 = vld [vmem:[#allocation11 + $0x1e8] sm:$0xff]
    %v3672 = vld [vmem:[#allocation11 + $0x1f0] sm:$0xff]
    %v3673 = vld [vmem:[#allocation11 + $0x1f8] sm:$0xff]
    %v3674 = vld [vmem:[#allocation13] sm:$0x1]
    %v3676 = vlaneseq
    %v3677 = vshrl.u32 %v3676, 7
    %v3678 = vsub.s32 0, %v3677
    %v3679 = vrot.slane %v3674, %v3678
    %3681 = vmatprep.subr.mxu0 0.0
    %3682 = vmatpush1.msra.mxu0 %v3610
    %3683 = vmatprep.subr.mxu0 0.0
    %3684 = vmatpush1.msra.mxu0 %v3611
    %3685 = vmatprep.subr.mxu0 0.0
    %3686 = vmatpush1.msra.mxu0 %v3612
    %3687 = vmatprep.subr.mxu0 0.0
    %3688 = vmatpush1.msra.mxu0 %v3613
    %3689 = vmatprep.subr.mxu0 0.0
    %3690 = vmatpush1.msra.mxu0 %v3614
    %3691 = vmatprep.subr.mxu0 0.0
    %3692 = vmatpush1.msra.mxu0 %v3615
    %3693 = vmatprep.subr.mxu0 0.0
    %3694 = vmatpush1.msra.mxu0 %v3616
    %3695 = vmatprep.subr.mxu0 0.0
    %3696 = vmatpush1.msra.mxu0 %v3617
    %3697 = vmatprep.subr.mxu0 0.0
    %3698 = vmatpush1.msra.mxu0 %v3618
    %3699 = vmatprep.subr.mxu0 0.0
    %3700 = vmatpush1.msra.mxu0 %v3619
    %3701 = vmatprep.subr.mxu0 0.0
    %3702 = vmatpush1.msra.mxu0 %v3620
    %3703 = vmatprep.subr.mxu0 0.0
    %3704 = vmatpush1.msra.mxu0 %v3621
    %3705 = vmatprep.subr.mxu0 0.0
    %3706 = vmatpush1.msra.mxu0 %v3622
    %3707 = vmatprep.subr.mxu0 0.0
    %3708 = vmatpush1.msra.mxu0 %v3623
    %3709 = vmatprep.subr.mxu0 0.0
    %3710 = vmatpush1.msra.mxu0 %v3624
    %3711 = vmatprep.subr.mxu0 0.0
    %3712 = vmatpush1.msra.mxu0 %v3625
    %3713 = vmatprep.subr.mxu0 0.0
    %3714 = vmatpush1.msra.mxu0 %v3626
    %3715 = vmatprep.subr.mxu0 0.0
    %3716 = vmatpush1.msra.mxu0 %v3627
    %3717 = vmatprep.subr.mxu0 0.0
    %3718 = vmatpush1.msra.mxu0 %v3628
    %3719 = vmatprep.subr.mxu0 0.0
    %3720 = vmatpush1.msra.mxu0 %v3629
    %3721 = vmatprep.subr.mxu0 0.0
    %3722 = vmatpush1.msra.mxu0 %v3630
    %3723 = vmatprep.subr.mxu0 0.0
    %3724 = vmatpush1.msra.mxu0 %v3631
    %3725 = vmatprep.subr.mxu0 0.0
    %3726 = vmatpush1.msra.mxu0 %v3632
    %3727 = vmatprep.subr.mxu0 0.0
    %3728 = vmatpush1.msra.mxu0 %v3633
    %3729 = vmatprep.subr.mxu0 0.0
    %3730 = vmatpush1.msra.mxu0 %v3634
    %3731 = vmatprep.subr.mxu0 0.0
    %3732 = vmatpush1.msra.mxu0 %v3635
    %3733 = vmatprep.subr.mxu0 0.0
    %3734 = vmatpush1.msra.mxu0 %v3636
    %3735 = vmatprep.subr.mxu0 0.0
    %3736 = vmatpush1.msra.mxu0 %v3637
    %3737 = vmatprep.subr.mxu0 0.0
    %3738 = vmatpush1.msra.mxu0 %v3638
    %3739 = vmatprep.subr.mxu0 0.0
    %3740 = vmatpush1.msra.mxu0 %v3639
    %3741 = vmatprep.subr.mxu0 0.0
    %3742 = vmatpush1.msra.mxu0 %v3640
    %3743 = vmatprep.subr.mxu0 0.0
    %3744 = vmatpush1.msra.mxu0 %v3641
    %3745 = vmatprep.mubr.f32.mxu0 %v3607
    %3746 = vmatmul.mubr.f32.gmra.mrb[0].mxu0 %v3606
    %v3747 = vpop.f32.mrb[0].mxu0
    %v3748 = vadd.f32 %v3679, %v3747
    %v3749 = vpop.f32.mrb[0].mxu0
    %3750 = vdwg.mxu0
    %3751 = vmatprep.subr.mxu0 0.0
    %3752 = vmatpush1.msra.mxu0 %v3642
    %3753 = vmatprep.subr.mxu0 0.0
    %3754 = vmatpush1.msra.mxu0 %v3643
    %3755 = vmatprep.subr.mxu0 0.0
    %3756 = vmatpush1.msra.mxu0 %v3644
    %3757 = vmatprep.subr.mxu0 0.0
    %3758 = vmatpush1.msra.mxu0 %v3645
    %3759 = vmatprep.subr.mxu0 0.0
    %3760 = vmatpush1.msra.mxu0 %v3646
    %3761 = vmatprep.subr.mxu0 0.0
    %3762 = vmatpush1.msra.mxu0 %v3647
    %3763 = vmatprep.subr.mxu0 0.0
    %3764 = vmatpush1.msra.mxu0 %v3648
    %3765 = vmatprep.subr.mxu0 0.0
    %3766 = vmatpush1.msra.mxu0 %v3649
    %3767 = vmatprep.subr.mxu0 0.0
    %3768 = vmatpush1.msra.mxu0 %v3650
    %3769 = vmatprep.subr.mxu0 0.0
    %3770 = vmatpush1.msra.mxu0 %v3651
    %3771 = vmatprep.subr.mxu0 0.0
    %3772 = vmatpush1.msra.mxu0 %v3652
    %3773 = vmatprep.subr.mxu0 0.0
    %3774 = vmatpush1.msra.mxu0 %v3653
    %3775 = vmatprep.subr.mxu0 0.0
    %3776 = vmatpush1.msra.mxu0 %v3654
    %3777 = vmatprep.subr.mxu0 0.0
    %3778 = vmatpush1.msra.mxu0 %v3655
    %3779 = vmatprep.subr.mxu0 0.0
    %3780 = vmatpush1.msra.mxu0 %v3656
    %3781 = vmatprep.subr.mxu0 0.0
    %3782 = vmatpush1.msra.mxu0 %v3657
    %3783 = vmatprep.subr.mxu0 0.0
    %3784 = vmatpush1.msra.mxu0 %v3658
    %3785 = vmatprep.subr.mxu0 0.0
    %3786 = vmatpush1.msra.mxu0 %v3659
    %3787 = vmatprep.subr.mxu0 0.0
    %3788 = vmatpush1.msra.mxu0 %v3660
    %3789 = vmatprep.subr.mxu0 0.0
    %3790 = vmatpush1.msra.mxu0 %v3661
    %3791 = vmatprep.subr.mxu0 0.0
    %3792 = vmatpush1.msra.mxu0 %v3662
    %3793 = vmatprep.subr.mxu0 0.0
    %3794 = vmatpush1.msra.mxu0 %v3663
    %3795 = vmatprep.subr.mxu0 0.0
    %3796 = vmatpush1.msra.mxu0 %v3664
    %3797 = vmatprep.subr.mxu0 0.0
    %3798 = vmatpush1.msra.mxu0 %v3665
    %3799 = vmatprep.subr.mxu0 0.0
    %3800 = vmatpush1.msra.mxu0 %v3666
    %3801 = vmatprep.subr.mxu0 0.0
    %3802 = vmatpush1.msra.mxu0 %v3667
    %3803 = vmatprep.subr.mxu0 0.0
    %3804 = vmatpush1.msra.mxu0 %v3668
    %3805 = vmatprep.subr.mxu0 0.0
    %3806 = vmatpush1.msra.mxu0 %v3669
    %3807 = vmatprep.subr.mxu0 0.0
    %3808 = vmatpush1.msra.mxu0 %v3670
    %3809 = vmatprep.subr.mxu0 0.0
    %3810 = vmatpush1.msra.mxu0 %v3671
    %3811 = vmatprep.subr.mxu0 0.0
    %3812 = vmatpush1.msra.mxu0 %v3672
    %3813 = vmatprep.subr.mxu0 0.0
    %3814 = vmatpush1.msra.mxu0 %v3673
    %3815 = vmatprep.mubr.f32.mxu0 %v3609
    %3816 = vmatmul.mubr.f32.gmra.mrb[0].mxu0 %v3608
    %v3817 = vpop.f32.mrb[0].mxu0
    %v3818 = vadd.f32 %v3748, %v3817
    %v3819 = vpop.f32.mrb[0].mxu0
    %3820 = vdwg.mxu0
    %v3821 = vmax.f32 %v3818, 0.0
    %v3822 = vld [vmem:[#allocation14] sm:$0xff]
    %v3823 = vld [vmem:[#allocation14 + $0x8] sm:$0xff]
    %v3824 = vld [vmem:[#allocation14 + $0x10] sm:$0xff]
    %v3825 = vld [vmem:[#allocation14 + $0x18] sm:$0xff]
    %v3826 = vld [vmem:[#allocation14 + $0x20] sm:$0xff]
    %v3827 = vld [vmem:[#allocation14 + $0x28] sm:$0xff]
    %v3828 = vld [vmem:[#allocation14 + $0x30] sm:$0xff]
    %v3829 = vld [vmem:[#allocation14 + $0x38] sm:$0xff]
    %v3830 = vld [vmem:[#allocation14 + $0x40] sm:$0xff]
    %v3831 = vld [vmem:[#allocation14 + $0x48] sm:$0xff]
    %v3832 = vld [vmem:[#allocation14 + $0x50] sm:$0xff]
    %v3833 = vld [vmem:[#allocation14 + $0x58] sm:$0xff]
    %v3834 = vld [vmem:[#allocation14 + $0x60] sm:$0xff]
    %v3835 = vld [vmem:[#allocation14 + $0x68] sm:$0xff]
    %v3836 = vld [vmem:[#allocation14 + $0x70] sm:$0xff]
    %v3837 = vld [vmem:[#allocation14 + $0x78] sm:$0xff]
    %v3838 = vld [vmem:[#allocation16] sm:$0x1]
    %v3840 = vlaneseq
    %v3841 = vshrl.u32 %v3840, 7
    %v3842 = vsub.s32 0, %v3841
    %v3843 = vrot.slane %v3838, %v3842
    %3845 = vmatprep.subr.mxu0 0.0
    %3846 = vmatpush1.msra.mxu0 %v3822
    %3847 = vmatprep.subr.mxu0 0.0
    %3848 = vmatpush1.msra.mxu0 %v3823
    %3849 = vmatprep.subr.mxu0 0.0
    %3850 = vmatpush1.msra.mxu0 %v3824
    %3851 = vmatprep.subr.mxu0 0.0
    %3852 = vmatpush1.msra.mxu0 %v3825
    %3853 = vmatprep.subr.mxu0 0.0
    %3854 = vmatpush1.msra.mxu0 %v3826
    %3855 = vmatprep.subr.mxu0 0.0
    %3856 = vmatpush1.msra.mxu0 %v3827
    %3857 = vmatprep.subr.mxu0 0.0
    %3858 = vmatpush1.msra.mxu0 %v3828
    %3859 = vmatprep.subr.mxu0 0.0
    %3860 = vmatpush1.msra.mxu0 %v3829
    %3861 = vmatprep.subr.mxu0 0.0
    %3862 = vmatpush1.msra.mxu0 %v3830
    %3863 = vmatprep.subr.mxu0 0.0
    %3864 = vmatpush1.msra.mxu0 %v3831
    %3865 = vmatprep.subr.mxu0 0.0
    %3866 = vmatpush1.msra.mxu0 %v3832
    %3867 = vmatprep.subr.mxu0 0.0
    %3868 = vmatpush1.msra.mxu0 %v3833
    %3869 = vmatprep.subr.mxu0 0.0
    %3870 = vmatpush1.msra.mxu0 %v3834
    %3871 = vmatprep.subr.mxu0 0.0
    %3872 = vmatpush1.msra.mxu0 %v3835
    %3873 = vmatprep.subr.mxu0 0.0
    %3874 = vmatpush1.msra.mxu0 %v3836
    %3875 = vmatprep.subr.mxu0 0.0
    %3876 = vmatpush1.msra.mxu0 %v3837
    %3877 = vmatprep.subr.mxu0 0.0
    %3878 = vmatpush1.msra.mxu0 0.0
    %3879 = vmatprep.subr.mxu0 0.0
    %3880 = vmatpush1.msra.mxu0 0.0
    %3881 = vmatprep.subr.mxu0 0.0
    %3882 = vmatpush1.msra.mxu0 0.0
    %3883 = vmatprep.subr.mxu0 0.0
    %3884 = vmatpush1.msra.mxu0 0.0
    %3885 = vmatprep.subr.mxu0 0.0
    %3886 = vmatpush1.msra.mxu0 0.0
    %3887 = vmatprep.subr.mxu0 0.0
    %3888 = vmatpush1.msra.mxu0 0.0
    %3889 = vmatprep.subr.mxu0 0.0
    %3890 = vmatpush1.msra.mxu0 0.0
    %3891 = vmatprep.subr.mxu0 0.0
    %3892 = vmatpush1.msra.mxu0 0.0
    %3893 = vmatprep.subr.mxu0 0.0
    %3894 = vmatpush1.msra.mxu0 0.0
    %3895 = vmatprep.subr.mxu0 0.0
    %3896 = vmatpush1.msra.mxu0 0.0
    %3897 = vmatprep.subr.mxu0 0.0
    %3898 = vmatpush1.msra.mxu0 0.0
    %3899 = vmatprep.subr.mxu0 0.0
    %3900 = vmatpush1.msra.mxu0 0.0
    %3901 = vmatprep.subr.mxu0 0.0
    %3902 = vmatpush1.msra.mxu0 0.0
    %3903 = vmatprep.subr.mxu0 0.0
    %3904 = vmatpush1.msra.mxu0 0.0
    %3905 = vmatprep.subr.mxu0 0.0
    %3906 = vmatpush1.msra.mxu0 0.0
    %3907 = vmatprep.subr.mxu0 0.0
    %3908 = vmatpush1.msra.mxu0 0.0
    %3909 = vmatprep.mubr.f32.mxu0 0.0
    %3910 = vmatmul.mubr.f32.gmra.mrb[0].mxu0 %v3821
    %v3911 = vpop.f32.mrb[0].mxu0
    %v3912 = vadd.f32 %v3843, %v3911
    %v3913 = vpop.f32.mrb[0].mxu0
    %3914 = vdwg.mxu0
    %v3915 = vmax.f32 %v3912, 0.0
    %v3916 = vld [vmem:[%s10] sm:$0xff]
    %v3917 = vld [vmem:[%s10 + $0x8] sm:$0xff]
    %v3918 = vld [vmem:[%s10 + $0x10] sm:$0xff]
    %v3919 = vld [vmem:[%s10 + $0x18] sm:$0xff]
    %v3920 = vld [vmem:[%s10 + $0x20] sm:$0xff]
    %v3921 = vld [vmem:[%s10 + $0x28] sm:$0xff]
    %v3922 = vld [vmem:[%s10 + $0x30] sm:$0xff]
    %v3923 = vld [vmem:[%s10 + $0x38] sm:$0xff]
    %v3924 = vld [vmem:[%s10 + $0x40] sm:$0xff]
    %v3925 = vld [vmem:[%s10 + $0x48] sm:$0xff]
    %v3926 = vld [vmem:[%s10 + $0x50] sm:$0xff]
    %v3927 = vld [vmem:[%s10 + $0x58] sm:$0xff]
    %v3928 = vld [vmem:[%s10 + $0x60] sm:$0xff]
    %v3929 = vld [vmem:[%s10 + $0x68] sm:$0xff]
    %v3930 = vld [vmem:[%s10 + $0x70] sm:$0xff]
    %v3931 = vld [vmem:[%s10 + $0x78] sm:$0xff]
    %v3932 = vld [vmem:[#allocation17] sm:$0x1]
    %v3934 = vlaneseq
    %v3935 = vshrl.u32 %v3934, 7
    %v3936 = vsub.s32 0, %v3935
    %v3937 = vrot.slane %v3932, %v3936
    %3939 = vmatprep.subr.mxu0 0.0
    %3940 = vmatpush1.msra.mxu0 %v3916
    %3941 = vmatprep.subr.mxu0 0.0
    %3942 = vmatpush1.msra.mxu0 %v3917
    %3943 = vmatprep.subr.mxu0 0.0
    %3944 = vmatpush1.msra.mxu0 %v3918
    %3945 = vmatprep.subr.mxu0 0.0
    %3946 = vmatpush1.msra.mxu0 %v3919
    %3947 = vmatprep.subr.mxu0 0.0
    %3948 = vmatpush1.msra.mxu0 %v3920
    %3949 = vmatprep.subr.mxu0 0.0
    %3950 = vmatpush1.msra.mxu0 %v3921
    %3951 = vmatprep.subr.mxu0 0.0
    %3952 = vmatpush1.msra.mxu0 %v3922
    %3953 = vmatprep.subr.mxu0 0.0
    %3954 = vmatpush1.msra.mxu0 %v3923
    %3955 = vmatprep.subr.mxu0 0.0
    %3956 = vmatpush1.msra.mxu0 %v3924
    %3957 = vmatprep.subr.mxu0 0.0
    %3958 = vmatpush1.msra.mxu0 %v3925
    %3959 = vmatprep.subr.mxu0 0.0
    %3960 = vmatpush1.msra.mxu0 %v3926
    %3961 = vmatprep.subr.mxu0 0.0
    %3962 = vmatpush1.msra.mxu0 %v3927
    %3963 = vmatprep.subr.mxu0 0.0
    %3964 = vmatpush1.msra.mxu0 %v3928
    %3965 = vmatprep.subr.mxu0 0.0
    %3966 = vmatpush1.msra.mxu0 %v3929
    %3967 = vmatprep.subr.mxu0 0.0
    %3968 = vmatpush1.msra.mxu0 %v3930
    %3969 = vmatprep.subr.mxu0 0.0
    %3970 = vmatpush1.msra.mxu0 %v3931
    %3971 = vmatprep.subr.mxu0 0.0
    %3972 = vmatpush1.msra.mxu0 0.0
    %3973 = vmatprep.subr.mxu0 0.0
    %3974 = vmatpush1.msra.mxu0 0.0
    %3975 = vmatprep.subr.mxu0 0.0
    %3976 = vmatpush1.msra.mxu0 0.0
    %3977 = vmatprep.subr.mxu0 0.0
    %3978 = vmatpush1.msra.mxu0 0.0
    %3979 = vmatprep.subr.mxu0 0.0
    %3980 = vmatpush1.msra.mxu0 0.0
    %3981 = vmatprep.subr.mxu0 0.0
    %3982 = vmatpush1.msra.mxu0 0.0
    %3983 = vmatprep.subr.mxu0 0.0
    %3984 = vmatpush1.msra.mxu0 0.0
    %3985 = vmatprep.subr.mxu0 0.0
    %3986 = vmatpush1.msra.mxu0 0.0
    %3987 = vmatprep.subr.mxu0 0.0
    %3988 = vmatpush1.msra.mxu0 0.0
    %3989 = vmatprep.subr.mxu0 0.0
    %3990 = vmatpush1.msra.mxu0 0.0
    %3991 = vmatprep.subr.mxu0 0.0
    %3992 = vmatpush1.msra.mxu0 0.0
    %3993 = vmatprep.subr.mxu0 0.0
    %3994 = vmatpush1.msra.mxu0 0.0
    %3995 = vmatprep.subr.mxu0 0.0
    %3996 = vmatpush1.msra.mxu0 0.0
    %3997 = vmatprep.subr.mxu0 0.0
    %3998 = vmatpush1.msra.mxu0 0.0
    %3999 = vmatprep.subr.mxu0 0.0
    %4000 = vmatpush1.msra.mxu0 0.0
    %4001 = vmatprep.subr.mxu0 0.0
    %4002 = vmatpush1.msra.mxu0 0.0
    %4003 = vmatprep.mubr.f32.mxu0 0.0
    %4004 = vmatmul.mubr.f32.gmra.mrb[0].mxu0 %v3915
    %v4005 = vpop.f32.mrb[0].mxu0
    %v4006 = vadd.f32 %v3937, %v4005
    %v4007 = vpop.f32.mrb[0].mxu0
    %4008 = vdwg.mxu0
    %v4009 = vld [vmem:[#allocation2] sm:$0x3]
    %v4010 = vld [vmem:[#allocation19] sm:$0xff]
    %v4011 = vld [vmem:[#allocation19 + $0x8] sm:$0xff]
    %v4012 = vld [vmem:[#allocation20] sm:$0xff]
    %v4013 = vld [vmem:[#allocation20 + $0x8] sm:$0xff]
    %v4014 = vld [vmem:[#allocation20 + $0x10] sm:$0xff]
    %v4015 = vld [vmem:[#allocation20 + $0x18] sm:$0xff]
    %vm4016 = vcmask 261120
    %v4018 = vsel %vm4016, %v4006, 0
    %4020 = vmatprep.subr.mxu0 0.0
    %4021 = vmatpush1.msra.mxu0 %v4012
    %4022 = vmatprep.subr.mxu0 0.0
    %4023 = vmatpush1.msra.mxu0 %v4013
    %4024 = vmatprep.subr.mxu0 0.0
    %4025 = vmatpush1.msra.mxu0 %v4014
    %4026 = vmatprep.subr.mxu0 0.0
    %4027 = vmatpush1.msra.mxu0 %v4015
    %4028 = vmatprep.subr.mxu0 0.0
    %4029 = vmatpush1.msra.mxu0 0.0
    %4030 = vmatprep.subr.mxu0 0.0
    %4031 = vmatpush1.msra.mxu0 0.0
    %4032 = vmatprep.subr.mxu0 0.0
    %4033 = vmatpush1.msra.mxu0 0.0
    %4034 = vmatprep.subr.mxu0 0.0
    %4035 = vmatpush1.msra.mxu0 0.0
    %4036 = vmatprep.subr.mxu0 0.0
    %4037 = vmatpush1.msra.mxu0 0.0
    %4038 = vmatprep.subr.mxu0 0.0
    %4039 = vmatpush1.msra.mxu0 0.0
    %4040 = vmatprep.subr.mxu0 0.0
    %4041 = vmatpush1.msra.mxu0 0.0
    %4042 = vmatprep.subr.mxu0 0.0
    %4043 = vmatpush1.msra.mxu0 0.0
    %4044 = vmatprep.subr.mxu0 0.0
    %4045 = vmatpush1.msra.mxu0 0.0
    %4046 = vmatprep.subr.mxu0 0.0
    %4047 = vmatpush1.msra.mxu0 0.0
    %4048 = vmatprep.subr.mxu0 0.0
    %4049 = vmatpush1.msra.mxu0 0.0
    %4050 = vmatprep.subr.mxu0 0.0
    %4051 = vmatpush1.msra.mxu0 0.0
    %4052 = vmatprep.subr.mxu0 0.0
    %4053 = vmatpush1.msra.mxu0 0.0
    %4054 = vmatprep.subr.mxu0 0.0
    %4055 = vmatpush1.msra.mxu0 0.0
    %4056 = vmatprep.subr.mxu0 0.0
    %4057 = vmatpush1.msra.mxu0 0.0
    %4058 = vmatprep.subr.mxu0 0.0
    %4059 = vmatpush1.msra.mxu0 0.0
    %4060 = vmatprep.subr.mxu0 0.0
    %4061 = vmatpush1.msra.mxu0 0.0
    %4062 = vmatprep.subr.mxu0 0.0
    %4063 = vmatpush1.msra.mxu0 0.0
    %4064 = vmatprep.subr.mxu0 0.0
    %4065 = vmatpush1.msra.mxu0 0.0
    %4066 = vmatprep.subr.mxu0 0.0
    %4067 = vmatpush1.msra.mxu0 0.0
    %4068 = vmatprep.subr.mxu0 0.0
    %4069 = vmatpush1.msra.mxu0 0.0
    %4070 = vmatprep.subr.mxu0 0.0
    %4071 = vmatpush1.msra.mxu0 0.0
    %4072 = vmatprep.subr.mxu0 0.0
    %4073 = vmatpush1.msra.mxu0 0.0
    %4074 = vmatprep.subr.mxu0 0.0
    %4075 = vmatpush1.msra.mxu0 0.0
    %4076 = vmatprep.subr.mxu0 0.0
    %4077 = vmatpush1.msra.mxu0 0.0
    %4078 = vmatprep.subr.mxu0 0.0
    %4079 = vmatpush1.msra.mxu0 0.0
    %4080 = vmatprep.subr.mxu0 0.0
    %4081 = vmatpush1.msra.mxu0 0.0
    %4082 = vmatprep.subr.mxu0 0.0
    %4083 = vmatpush1.msra.mxu0 0.0
    %4084 = vmatprep.mubr.f32.mxu0 0.0
    %4085 = vmatmul.mubr.f32.gmra.mrb[0].mxu0 %v4018
    %v4086 = vpop.f32.mrb[0].mxu0
    %v4087 = vadd.f32 0.0, %v4086
    %v4088 = vpop.f32.mrb[0].mxu0
    %4089 = vdwg.mxu0
    %vm4090 = vcmask 130048
    %v4092 = vsel %vm4090, %v4009, 0
    %4094 = vmatprep.subr.mxu0 0.0
    %4095 = vmatpush1.msra.mxu0 %v4010
    %4096 = vmatprep.subr.mxu0 0.0
    %4097 = vmatpush1.msra.mxu0 %v4011
    %4098 = vmatprep.subr.mxu0 0.0
    %4099 = vmatpush1.msra.mxu0 0.0
    %4100 = vmatprep.subr.mxu0 0.0
    %4101 = vmatpush1.msra.mxu0 0.0
    %4102 = vmatprep.subr.mxu0 0.0
    %4103 = vmatpush1.msra.mxu0 0.0
    %4104 = vmatprep.subr.mxu0 0.0
    %4105 = vmatpush1.msra.mxu0 0.0
    %4106 = vmatprep.subr.mxu0 0.0
    %4107 = vmatpush1.msra.mxu0 0.0
    %4108 = vmatprep.subr.mxu0 0.0
    %4109 = vmatpush1.msra.mxu0 0.0
    %4110 = vmatprep.subr.mxu0 0.0
    %4111 = vmatpush1.msra.mxu0 0.0
    %4112 = vmatprep.subr.mxu0 0.0
    %4113 = vmatpush1.msra.mxu0 0.0
    %4114 = vmatprep.subr.mxu0 0.0
    %4115 = vmatpush1.msra.mxu0 0.0
    %4116 = vmatprep.subr.mxu0 0.0
    %4117 = vmatpush1.msra.mxu0 0.0
    %4118 = vmatprep.subr.mxu0 0.0
    %4119 = vmatpush1.msra.mxu0 0.0
    %4120 = vmatprep.subr.mxu0 0.0
    %4121 = vmatpush1.msra.mxu0 0.0
    %4122 = vmatprep.subr.mxu0 0.0
    %4123 = vmatpush1.msra.mxu0 0.0
    %4124 = vmatprep.subr.mxu0 0.0
    %4125 = vmatpush1.msra.mxu0 0.0
    %4126 = vmatprep.subr.mxu0 0.0
    %4127 = vmatpush1.msra.mxu0 0.0
    %4128 = vmatprep.subr.mxu0 0.0
    %4129 = vmatpush1.msra.mxu0 0.0
    %4130 = vmatprep.subr.mxu0 0.0
    %4131 = vmatpush1.msra.mxu0 0.0
    %4132 = vmatprep.subr.mxu0 0.0
    %4133 = vmatpush1.msra.mxu0 0.0
    %4134 = vmatprep.subr.mxu0 0.0
    %4135 = vmatpush1.msra.mxu0 0.0
    %4136 = vmatprep.subr.mxu0 0.0
    %4137 = vmatpush1.msra.mxu0 0.0
    %4138 = vmatprep.subr.mxu0 0.0
    %4139 = vmatpush1.msra.mxu0 0.0
    %4140 = vmatprep.subr.mxu0 0.0
    %4141 = vmatpush1.msra.mxu0 0.0
    %4142 = vmatprep.subr.mxu0 0.0
    %4143 = vmatpush1.msra.mxu0 0.0
    %4144 = vmatprep.subr.mxu0 0.0
    %4145 = vmatpush1.msra.mxu0 0.0
    %4146 = vmatprep.subr.mxu0 0.0
    %4147 = vmatpush1.msra.mxu0 0.0
    %4148 = vmatprep.subr.mxu0 0.0
    %4149 = vmatpush1.msra.mxu0 0.0
    %4150 = vmatprep.subr.mxu0 0.0
    %4151 = vmatpush1.msra.mxu0 0.0
    %4152 = vmatprep.subr.mxu0 0.0
    %4153 = vmatpush1.msra.mxu0 0.0
    %4154 = vmatprep.subr.mxu0 0.0
    %4155 = vmatpush1.msra.mxu0 0.0
    %4156 = vmatprep.subr.mxu0 0.0
    %4157 = vmatpush1.msra.mxu0 0.0
    %4158 = vmatprep.mubr.f32.mxu0 0.0
    %4159 = vmatmul.mubr.f32.gmra.mrb[0].mxu0 %v4092
    %v4160 = vpop.f32.mrb[0].mxu0
    %v4161 = vadd.f32 %v4087, %v4160
    %v4162 = vpop.f32.mrb[0].mxu0
    %4163 = vdwg.mxu0
    %v4164 = vld [vmem:[#allocation22] sm:$0x1]
    %v4166 = vlaneseq
    %v4167 = vshrl.u32 %v4166, 7
    %v4168 = vsub.s32 0, %v4167
    %v4169 = vrot.slane %v4164, %v4168
    %v4171 = vadd.f32 %v4161, %v4169
    %v4172 = vmax.f32 %v4171, 0.0
    %v4173 = vld [vmem:[%s15] sm:$0xff]
    %v4174 = vld [vmem:[%s15 + $0x8] sm:$0xff]
    %v4175 = vld [vmem:[%s15 + $0x10] sm:$0xff]
    %v4176 = vld [vmem:[%s15 + $0x18] sm:$0xff]
    %v4177 = vld [vmem:[%s15 + $0x20] sm:$0xff]
    %v4178 = vld [vmem:[%s15 + $0x28] sm:$0xff]
    %v4179 = vld [vmem:[%s15 + $0x30] sm:$0xff]
    %v4180 = vld [vmem:[%s15 + $0x38] sm:$0xff]
    %v4181 = vld [vmem:[%s15 + $0x40] sm:$0xff]
    %v4182 = vld [vmem:[%s15 + $0x48] sm:$0xff]
    %v4183 = vld [vmem:[%s15 + $0x50] sm:$0xff]
    %v4184 = vld [vmem:[%s15 + $0x58] sm:$0xff]
    %v4185 = vld [vmem:[%s15 + $0x60] sm:$0xff]
    %v4186 = vld [vmem:[%s15 + $0x68] sm:$0xff]
    %v4187 = vld [vmem:[%s15 + $0x70] sm:$0xff]
    %v4188 = vld [vmem:[%s15 + $0x78] sm:$0xff]
    %v4189 = vld [vmem:[#allocation23] sm:$0x1]
    %v4191 = vlaneseq
    %v4192 = vshrl.u32 %v4191, 7
    %v4193 = vsub.s32 0, %v4192
    %v4194 = vrot.slane %v4189, %v4193
    %4196 = vmatprep.subr.mxu0 0.0
    %4197 = vmatpush1.msra.mxu0 %v4173
    %4198 = vmatprep.subr.mxu0 0.0
    %4199 = vmatpush1.msra.mxu0 %v4174
    %4200 = vmatprep.subr.mxu0 0.0
    %4201 = vmatpush1.msra.mxu0 %v4175
    %4202 = vmatprep.subr.mxu0 0.0
    %4203 = vmatpush1.msra.mxu0 %v4176
    %4204 = vmatprep.subr.mxu0 0.0
    %4205 = vmatpush1.msra.mxu0 %v4177
    %4206 = vmatprep.subr.mxu0 0.0
    %4207 = vmatpush1.msra.mxu0 %v4178
    %4208 = vmatprep.subr.mxu0 0.0
    %4209 = vmatpush1.msra.mxu0 %v4179
    %4210 = vmatprep.subr.mxu0 0.0
    %4211 = vmatpush1.msra.mxu0 %v4180
    %4212 = vmatprep.subr.mxu0 0.0
    %4213 = vmatpush1.msra.mxu0 %v4181
    %4214 = vmatprep.subr.mxu0 0.0
    %4215 = vmatpush1.msra.mxu0 %v4182
    %4216 = vmatprep.subr.mxu0 0.0
    %4217 = vmatpush1.msra.mxu0 %v4183
    %4218 = vmatprep.subr.mxu0 0.0
    %4219 = vmatpush1.msra.mxu0 %v4184
    %4220 = vmatprep.subr.mxu0 0.0
    %4221 = vmatpush1.msra.mxu0 %v4185
    %4222 = vmatprep.subr.mxu0 0.0
    %4223 = vmatpush1.msra.mxu0 %v4186
    %4224 = vmatprep.subr.mxu0 0.0
    %4225 = vmatpush1.msra.mxu0 %v4187
    %4226 = vmatprep.subr.mxu0 0.0
    %4227 = vmatpush1.msra.mxu0 %v4188
    %4228 = vmatprep.subr.mxu0 0.0
    %4229 = vmatpush1.msra.mxu0 0.0
    %4230 = vmatprep.subr.mxu0 0.0
    %4231 = vmatpush1.msra.mxu0 0.0
    %4232 = vmatprep.subr.mxu0 0.0
    %4233 = vmatpush1.msra.mxu0 0.0
    %4234 = vmatprep.subr.mxu0 0.0
    %4235 = vmatpush1.msra.mxu0 0.0
    %4236 = vmatprep.subr.mxu0 0.0
    %4237 = vmatpush1.msra.mxu0 0.0
    %4238 = vmatprep.subr.mxu0 0.0
    %4239 = vmatpush1.msra.mxu0 0.0
    %4240 = vmatprep.subr.mxu0 0.0
    %4241 = vmatpush1.msra.mxu0 0.0
    %4242 = vmatprep.subr.mxu0 0.0
    %4243 = vmatpush1.msra.mxu0 0.0
    %4244 = vmatprep.subr.mxu0 0.0
    %4245 = vmatpush1.msra.mxu0 0.0
    %4246 = vmatprep.subr.mxu0 0.0
    %4247 = vmatpush1.msra.mxu0 0.0
    %4248 = vmatprep.subr.mxu0 0.0
    %4249 = vmatpush1.msra.mxu0 0.0
    %4250 = vmatprep.subr.mxu0 0.0
    %4251 = vmatpush1.msra.mxu0 0.0
    %4252 = vmatprep.subr.mxu0 0.0
    %4253 = vmatpush1.msra.mxu0 0.0
    %4254 = vmatprep.subr.mxu0 0.0
    %4255 = vmatpush1.msra.mxu0 0.0
    %4256 = vmatprep.subr.mxu0 0.0
    %4257 = vmatpush1.msra.mxu0 0.0
    %4258 = vmatprep.subr.mxu0 0.0
    %4259 = vmatpush1.msra.mxu0 0.0
    %4260 = vmatprep.mubr.f32.mxu0 0.0
    %4261 = vmatmul.mubr.f32.gmra.mrb[0].mxu0 %v4172
    %v4262 = vpop.f32.mrb[0].mxu0
    %v4263 = vadd.f32 %v4194, %v4262
    %v4264 = vpop.f32.mrb[0].mxu0
    %4265 = vdwg.mxu0
    %v4266 = vmax.f32 %v4263, 0.0
    %v4267 = vld [vmem:[%s17] sm:$0xff]
    %v4268 = vld [vmem:[%s17 + $0x8] sm:$0xff]
    %v4269 = vld [vmem:[%s17 + $0x10] sm:$0xff]
    %v4270 = vld [vmem:[%s17 + $0x18] sm:$0xff]
    %v4271 = vld [vmem:[%s17 + $0x20] sm:$0xff]
    %v4272 = vld [vmem:[%s17 + $0x28] sm:$0xff]
    %v4273 = vld [vmem:[%s17 + $0x30] sm:$0xff]
    %v4274 = vld [vmem:[%s17 + $0x38] sm:$0xff]
    %v4275 = vld [vmem:[#allocation25] sm:$0x1]
    %v4277 = vlaneseq
    %v4278 = vshrl.u32 %v4277, 7
    %v4279 = vsub.s32 0, %v4278
    %v4280 = vrot.slane %v4275, %v4279
    %vm4282 = vcmask 523264
    %v4284 = vsel %vm4282, %v4266, 0
    %4286 = vmatprep.subr.mxu0 0.0
    %4287 = vmatpush1.msra.mxu0 %v4267
    %4288 = vmatprep.subr.mxu0 0.0
    %4289 = vmatpush1.msra.mxu0 %v4268
    %4290 = vmatprep.subr.mxu0 0.0
    %4291 = vmatpush1.msra.mxu0 %v4269
    %4292 = vmatprep.subr.mxu0 0.0
    %4293 = vmatpush1.msra.mxu0 %v4270
    %4294 = vmatprep.subr.mxu0 0.0
    %4295 = vmatpush1.msra.mxu0 %v4271
    %4296 = vmatprep.subr.mxu0 0.0
    %4297 = vmatpush1.msra.mxu0 %v4272
    %4298 = vmatprep.subr.mxu0 0.0
    %4299 = vmatpush1.msra.mxu0 %v4273
    %4300 = vmatprep.subr.mxu0 0.0
    %4301 = vmatpush1.msra.mxu0 %v4274
    %4302 = vmatprep.subr.mxu0 0.0
    %4303 = vmatpush1.msra.mxu0 0.0
    %4304 = vmatprep.subr.mxu0 0.0
    %4305 = vmatpush1.msra.mxu0 0.0
    %4306 = vmatprep.subr.mxu0 0.0
    %4307 = vmatpush1.msra.mxu0 0.0
    %4308 = vmatprep.subr.mxu0 0.0
    %4309 = vmatpush1.msra.mxu0 0.0
    %4310 = vmatprep.subr.mxu0 0.0
    %4311 = vmatpush1.msra.mxu0 0.0
    %4312 = vmatprep.subr.mxu0 0.0
    %4313 = vmatpush1.msra.mxu0 0.0
    %4314 = vmatprep.subr.mxu0 0.0
    %4315 = vmatpush1.msra.mxu0 0.0
    %4316 = vmatprep.subr.mxu0 0.0
    %4317 = vmatpush1.msra.mxu0 0.0
    %4318 = vmatprep.subr.mxu0 0.0
    %4319 = vmatpush1.msra.mxu0 0.0
    %4320 = vmatprep.subr.mxu0 0.0
    %4321 = vmatpush1.msra.mxu0 0.0
    %4322 = vmatprep.subr.mxu0 0.0
    %4323 = vmatpush1.msra.mxu0 0.0
    %4324 = vmatprep.subr.mxu0 0.0
    %4325 = vmatpush1.msra.mxu0 0.0
    %4326 = vmatprep.subr.mxu0 0.0
    %4327 = vmatpush1.msra.mxu0 0.0
    %4328 = vmatprep.subr.mxu0 0.0
    %4329 = vmatpush1.msra.mxu0 0.0
    %4330 = vmatprep.subr.mxu0 0.0
    %4331 = vmatpush1.msra.mxu0 0.0
    %4332 = vmatprep.subr.mxu0 0.0
    %4333 = vmatpush1.msra.mxu0 0.0
    %4334 = vmatprep.subr.mxu0 0.0
    %4335 = vmatpush1.msra.mxu0 0.0
    %4336 = vmatprep.subr.mxu0 0.0
    %4337 = vmatpush1.msra.mxu0 0.0
    %4338 = vmatprep.subr.mxu0 0.0
    %4339 = vmatpush1.msra.mxu0 0.0
    %4340 = vmatprep.subr.mxu0 0.0
    %4341 = vmatpush1.msra.mxu0 0.0
    %4342 = vmatprep.subr.mxu0 0.0
    %4343 = vmatpush1.msra.mxu0 0.0
    %4344 = vmatprep.subr.mxu0 0.0
    %4345 = vmatpush1.msra.mxu0 0.0
    %4346 = vmatprep.subr.mxu0 0.0
    %4347 = vmatpush1.msra.mxu0 0.0
    %4348 = vmatprep.subr.mxu0 0.0
    %4349 = vmatpush1.msra.mxu0 0.0
    %4350 = vmatprep.mubr.f32.mxu0 0.0
    %4351 = vmatmul.mubr.f32.gmra.mrb[0].mxu0 %v4284
    %v4352 = vpop.f32.mrb[0].mxu0
    %v4353 = vadd.f32 %v4280, %v4352
    %v4354 = vpop.f32.mrb[0].mxu0
    %4355 = vdwg.mxu0
    %vm4356 = vcmask 58368
    %4357 = vst.msk [vmem:[#allocation26] sm:$0x3] %vm4356, %v4353
    // Predicated region
    $region138: #{enhanced_qnetwork_forward.1} parent=1 // pred_check
      _
    $region139: #{enhanced_qnetwork_forward.1} parent=1 // pred_check_branch
      %4359 = sbr.rel (0) target = $region141
    $region140: #{enhanced_qnetwork_forward.1} parent=1 // pred_region
      %s4361 = ssub.s32 32, 32
      %4362 = vsyncadd [#allocation4], %s4361
      %s4364 = sshll.u32 [#allocation26], 4
      %s4365 = int_to_ptr.vmem [resolvable:$true] %s4364
      %4367 = dma.vmem_to_hbm [thread:$0]  %s4365, 32, %s19, [#allocation4]
    $region141: #{enhanced_qnetwork_forward.1} parent=1 // pred_fallthru
      _
    // Predicated region
    $region142: #{enhanced_qnetwork_forward.1} parent=1 // pred_check
      _
    $region143: #{enhanced_qnetwork_forward.1} parent=1 // pred_check_branch
      %4369 = sbr.rel (0) target = $region145
    $region144: #{enhanced_qnetwork_forward.1} parent=1 // pred_region
      %4370 = dma.done [#allocation4], 32
    $region145: #{enhanced_qnetwork_forward.1} parent=1 // pred_fallthru
      _
    %4371 = vsyncpa [#allocation3], 1
    %4372 = vsyncpa [#allocation6], 1
    %4373 = vsyncpa [#allocation9], 1
    %4374 = vsyncpa [#allocation12], 1
    %4375 = vsyncpa [#allocation15], 1
    %4376 = vsyncpa [#allocation18], 1
    %4377 = vsyncpa [#allocation21], 1
    %4378 = vsyncpa [#allocation24], 1
    %4379 = vsyncpa [#allocation4], 1

</llo_original>
